<compile_context>
chip_gen: v5e
topology: v5e:2x2
jax: 0.10.0
libtpu: 0.0.40
codegen_flags: <defaults>
</compile_context>

<pallas_src>
import jax
import jax.numpy as jnp
from jax.experimental import pallas as pl
from jax.experimental.pallas import tpu as pltpu


def _round_up(x, m):
    return -(-x // m) * m


def _make_kernel(td, k, w, L):
    """One (n, depth-tile) grid step.

    Refs: x_0 .. x_{td+1}  (cin_p, L)        input depth slabs (flattened HxW)
          w_ref            (k^3, cout_p, cin_p)
          b_ref            (cout_p, 1)        f32
          o_ref            (td, cout_p, L)    lane-dense, channels-first
    """

    def kernel(*refs):
        x_refs = refs[: td + 2]
        w_ref, b_ref, o_ref = refs[td + 2], refs[td + 3], refs[td + 4]

        slabs = [r[...] for r in x_refs]        # (cin_p, L) compute_dtype
        bias = b_ref[...]                       # (cout_p, 1) f32

        for t in range(td):
            acc = None
            for kd in range(k):
                slab = slabs[t + kd]
                for kh in range(k):
                    for kw in range(k):
                        tap = (kd * k + kh) * k + kw
                        # Partial product over the whole (unshifted) slab; the
                        # (kh, kw) shift is a lane rotation of the f32 partial
                        # (XLU).  Columns that wrap land only in cropped
                        # output columns (j + s <= h*w - 1 for kept columns).
                        part = jnp.dot(w_ref[tap], slab,
                                       preferred_element_type=jnp.float32)
                        s = kh * w + kw
                        if s:
                            part = pltpu.roll(part, L - s, axis=1)
                        acc = part if acc is None else acc + part
            o_ref[t] = jnp.maximum(acc + bias, 0.0).astype(o_ref.dtype)

    return kernel


def down_conv_forward(x_ncdhw, weight_oidhw, bias, *, td=None,
                      compute_dtype=jnp.bfloat16):
    """DownConv.forward: Conv3d(in_ch, out_ch, 3, padding=0) -> ReLU (bn=False).

    Run under jax.jit so the layout glue fuses with the kernel call.
    """
    n, cin, d, h, w = x_ncdhw.shape
    cout = weight_oidhw.shape[0]
    k = 3
    do_, ho, wo = d - (k - 1), h - (k - 1), w - (k - 1)

    itemsize = 2 if compute_dtype == jnp.bfloat16 else 4
    sub = 16 if itemsize == 2 else 8
    cin_p = _round_up(cin, sub)          # bf16 sublane tile
    cout_p = _round_up(cout, 8)          # f32 output sublane tile
    L = _round_up(h * w, 128)            # lane-dense output / input slab width

    # --- depth-tile size: amortize grid overhead + halo re-reads, but keep
    # double-buffered blocks within a conservative budget (v7x: 64 MiB VMEM).
    if td is None:
        td = min(do_, 4)

    def _step_bytes(t):
        return (2 * (t + 2) * cin_p * L * itemsize   # input slabs (double-buf)
                + 2 * t * cout_p * L * 4             # output block (double-buf)
                + t * cout_p * L * 4)                # in-flight f32 partials

    while td > 1 and _step_bytes(td) > 24 * 1024 * 1024:
        td -= 1
    nd = -(-do_ // td)
    do_p = nd * td
    d_p = do_p + (k - 1)
    # TODO(synk): for very large H*W slices also tile H (halo'd row windows)
    # to bound the per-step block further and add another parallel grid axis.

    # --- layout glue (fuses under jit): NCDHW -> (N, D_pad, Cin_pad, L) ---
    x = jnp.transpose(x_ncdhw, (0, 2, 1, 3, 4)).reshape(n, d, cin, h * w)
    x = jnp.pad(x, ((0, 0), (0, d_p - d), (0, cin_p - cin), (0, L - h * w)))
    x = x.astype(compute_dtype)

    wt = jnp.transpose(weight_oidhw, (2, 3, 4, 0, 1))   # (kd, kh, kw, cout, cin)
    wt = jnp.pad(wt, ((0, 0), (0, 0), (0, 0),
                      (0, cout_p - cout), (0, cin_p - cin)))
    wt = wt.reshape(k * k * k, cout_p, cin_p).astype(compute_dtype)
    b = jnp.pad(bias, (0, cout_p - cout)).reshape(cout_p, 1).astype(jnp.float32)

    kernel = _make_kernel(td, k, w, L)

    def x_spec(j):
        return pl.BlockSpec((None, None, cin_p, L),
                            lambda ni, di, j=j: (ni, di * td + j, 0, 0))

    vmem_limit = int(max(32 * 1024 * 1024,
                         min(64 * 1024 * 1024,
                             3 * _step_bytes(td) + (4 << 20))))

    out_flat = pl.pallas_call(
        kernel,
        out_shape=jax.ShapeDtypeStruct((n, do_p, cout_p, L), x_ncdhw.dtype),
        grid=(n, nd),
        in_specs=(
            [x_spec(j) for j in range(td + 2)]
            + [pl.BlockSpec((k * k * k, cout_p, cin_p),
                            lambda ni, di: (0, 0, 0)),
               pl.BlockSpec((cout_p, 1), lambda ni, di: (0, 0))]),
        out_specs=pl.BlockSpec((None, td, cout_p, L),
                               lambda ni, di: (ni, di, 0, 0)),
        compiler_params=pltpu.CompilerParams(
            dimension_semantics=("parallel", "parallel"),
            vmem_limit_bytes=vmem_limit),
    )(*([x] * (td + 2)), wt, b)

    # (n, do_p, cout_p, L) -> crop pads -> NCDHW   (fuses under jit)
    out = out_flat[:, :do_, :cout, :ho * w].reshape(n, do_, cout, ho, w)[..., :wo]
    return jnp.transpose(out, (0, 2, 1, 3, 4))


def reference_forward(x_ncdhw, weight_oidhw, bias):
    y = jax.lax.conv_general_dilated(
        x_ncdhw, weight_oidhw, window_strides=(1, 1, 1), padding="VALID",
        dimension_numbers=("NCDHW", "OIDHW", "NCDHW"),
        precision=jax.lax.Precision.HIGHEST)
    y = y + bias[None, :, None, None, None]
    return jnp.maximum(y, 0.0)


if __name__ == "__main__":
    key = jax.random.PRNGKey(0)
    kx, kw_, kb = jax.random.split(key, 3)

    # Small shapes consistent with DownConv(in_ch=4, out_ch=8)
    N, Cin, Cout = 2, 4, 8
    D = H = W = 8

    x = jax.random.normal(kx, (N, Cin, D, H, W), dtype=jnp.float32)

    fan_in = Cin * 3 * 3 * 3
    bound = 1.0 / (fan_in ** 0.5)
    weight = jax.random.uniform(kw_, (Cout, Cin, 3, 3, 3), jnp.float32,
                                minval=-bound, maxval=bound)
    bias = jax.random.uniform(kb, (Cout,), jnp.float32,
                              minval=-bound, maxval=bound)

    fwd = jax.jit(down_conv_forward)
    out = jax.block_until_ready(fwd(x, weight, bias))

    ref = reference_forward(x, weight, bias)
    assert out.shape == (N, Cout, D - 2, H - 2, W - 2), out.shape
    # bf16 inputs with f32 accumulation vs f32 HIGHEST-precision reference.
    err = float(jnp.max(jnp.abs(out - ref)))
    assert bool(jnp.allclose(out, ref, rtol=2e-2, atol=2e-2)), err

    print("KERNEL_OK")
</pallas_src>

<mosaic_0001>
module attributes {stable_mosaic.version = 11 : i64} {
  func.func @kernel(%arg0: i32, %arg1: i32, %arg2: memref<1x1x16x128xbf16, #tpu.memory_space<vmem>>, %arg3: memref<1x1x16x128xbf16, #tpu.memory_space<vmem>>, %arg4: memref<1x1x16x128xbf16, #tpu.memory_space<vmem>>, %arg5: memref<1x1x16x128xbf16, #tpu.memory_space<vmem>>, %arg6: memref<1x1x16x128xbf16, #tpu.memory_space<vmem>>, %arg7: memref<1x1x16x128xbf16, #tpu.memory_space<vmem>>, %arg8: memref<27x8x16xbf16, #tpu.memory_space<vmem>>, %arg9: memref<8x1xf32, #tpu.memory_space<vmem>>, %arg10: memref<1x4x8x128xf32, #tpu.memory_space<vmem>>) attributes {dimension_semantics = [#tpu.dimension_semantics<parallel>, #tpu.dimension_semantics<parallel>], iteration_bounds = array<i64: 2, 2>, scalar_prefetch = 0 : i64, scratch_operands = 0 : i64, tpu.core_type = #tpu.core_type<tc>, window_params = [{transform_indices = @transform_0, window_bounds = array<i64: 1, 1, 16, 128>}, {transform_indices = @transform_1, window_bounds = array<i64: 1, 1, 16, 128>}, {transform_indices = @transform_2, window_bounds = array<i64: 1, 1, 16, 128>}, {transform_indices = @transform_3, window_bounds = array<i64: 1, 1, 16, 128>}, {transform_indices = @transform_4, window_bounds = array<i64: 1, 1, 16, 128>}, {transform_indices = @transform_5, window_bounds = array<i64: 1, 1, 16, 128>}, {pipeline_mode = #tpu.pipeline_mode<synchronous>, transform_indices = @transform_6, window_bounds = array<i64: 27, 8, 16>}, {pipeline_mode = #tpu.pipeline_mode<synchronous>, transform_indices = @transform_7, window_bounds = array<i64: 8, 1>}, {transform_indices = @transform_8, window_bounds = array<i64: 1, 4, 8, 128>}]} {
    %c0 = arith.constant 0 : index
    %c0_0 = arith.constant 0 : index
    %c0_1 = arith.constant 0 : index
    %c0_2 = arith.constant 0 : index
    %0 = vector.load %arg2[%c0, %c0_0, %c0_1, %c0_2] : memref<1x1x16x128xbf16, #tpu.memory_space<vmem>>, vector<1x1x16x128xbf16>
    %1 = vector.shape_cast %0 : vector<1x1x16x128xbf16> to vector<16x128xbf16>
    %c0_3 = arith.constant 0 : index
    %c0_4 = arith.constant 0 : index
    %c0_5 = arith.constant 0 : index
    %c0_6 = arith.constant 0 : index
    %2 = vector.load %arg3[%c0_3, %c0_4, %c0_5, %c0_6] : memref<1x1x16x128xbf16, #tpu.memory_space<vmem>>, vector<1x1x16x128xbf16>
    %3 = vector.shape_cast %2 : vector<1x1x16x128xbf16> to vector<16x128xbf16>
    %c0_7 = arith.constant 0 : index
    %c0_8 = arith.constant 0 : index
    %c0_9 = arith.constant 0 : index
    %c0_10 = arith.constant 0 : index
    %4 = vector.load %arg4[%c0_7, %c0_8, %c0_9, %c0_10] : memref<1x1x16x128xbf16, #tpu.memory_space<vmem>>, vector<1x1x16x128xbf16>
    %5 = vector.shape_cast %4 : vector<1x1x16x128xbf16> to vector<16x128xbf16>
    %c0_11 = arith.constant 0 : index
    %c0_12 = arith.constant 0 : index
    %c0_13 = arith.constant 0 : index
    %c0_14 = arith.constant 0 : index
    %6 = vector.load %arg5[%c0_11, %c0_12, %c0_13, %c0_14] : memref<1x1x16x128xbf16, #tpu.memory_space<vmem>>, vector<1x1x16x128xbf16>
    %7 = vector.shape_cast %6 : vector<1x1x16x128xbf16> to vector<16x128xbf16>
    %c0_15 = arith.constant 0 : index
    %c0_16 = arith.constant 0 : index
    %c0_17 = arith.constant 0 : index
    %c0_18 = arith.constant 0 : index
    %8 = vector.load %arg6[%c0_15, %c0_16, %c0_17, %c0_18] : memref<1x1x16x128xbf16, #tpu.memory_space<vmem>>, vector<1x1x16x128xbf16>
    %9 = vector.shape_cast %8 : vector<1x1x16x128xbf16> to vector<16x128xbf16>
    %c0_19 = arith.constant 0 : index
    %c0_20 = arith.constant 0 : index
    %c0_21 = arith.constant 0 : index
    %c0_22 = arith.constant 0 : index
    %10 = vector.load %arg7[%c0_19, %c0_20, %c0_21, %c0_22] : memref<1x1x16x128xbf16, #tpu.memory_space<vmem>>, vector<1x1x16x128xbf16>
    %11 = vector.shape_cast %10 : vector<1x1x16x128xbf16> to vector<16x128xbf16>
    %c0_23 = arith.constant 0 : index
    %c0_24 = arith.constant 0 : index
    %12 = vector.load %arg9[%c0_23, %c0_24] : memref<8x1xf32, #tpu.memory_space<vmem>>, vector<8x1xf32>
    %c0_25 = arith.constant 0 : index
    %c0_26 = arith.constant 0 : index
    %c0_27 = arith.constant 0 : index
    %13 = vector.load %arg8[%c0_25, %c0_26, %c0_27] : memref<27x8x16xbf16, #tpu.memory_space<vmem>>, vector<1x8x16xbf16>
    %14 = vector.shape_cast %13 : vector<1x8x16xbf16> to vector<8x16xbf16>
    %cst = arith.constant dense<0.000000e+00> : vector<8x128xf32>
    %15 = tpu.matmul %14, %1, %cst {dimension_numbers = #tpu.dot_dimension_numbers<[1], [0], [0], [1], [0, 0, 1, 1], [], []>} : vector<8x16xbf16>, vector<16x128xbf16>, vector<8x128xf32> -> vector<8x128xf32>
    %c1 = arith.constant 1 : index
    %c0_28 = arith.constant 0 : index
    %c0_29 = arith.constant 0 : index
    %16 = vector.load %arg8[%c1, %c0_28, %c0_29] : memref<27x8x16xbf16, #tpu.memory_space<vmem>>, vector<1x8x16xbf16>
    %17 = vector.shape_cast %16 : vector<1x8x16xbf16> to vector<8x16xbf16>
    %cst_30 = arith.constant dense<0.000000e+00> : vector<8x128xf32>
    %18 = tpu.matmul %17, %1, %cst_30 {dimension_numbers = #tpu.dot_dimension_numbers<[1], [0], [0], [1], [0, 0, 1, 1], [], []>} : vector<8x16xbf16>, vector<16x128xbf16>, vector<8x128xf32> -> vector<8x128xf32>
    %c127_i32 = arith.constant 127 : i32
    %19 = tpu.dynamic_rotate %18 by %c127_i32 dim 1 : vector<8x128xf32>, i32 -> vector<8x128xf32>
    %20 = arith.addf %15, %19 : vector<8x128xf32>
    %c2 = arith.constant 2 : index
    %c0_31 = arith.constant 0 : index
    %c0_32 = arith.constant 0 : index
    %21 = vector.load %arg8[%c2, %c0_31, %c0_32] : memref<27x8x16xbf16, #tpu.memory_space<vmem>>, vector<1x8x16xbf16>
    %22 = vector.shape_cast %21 : vector<1x8x16xbf16> to vector<8x16xbf16>
    %cst_33 = arith.constant dense<0.000000e+00> : vector<8x128xf32>
    %23 = tpu.matmul %22, %1, %cst_33 {dimension_numbers = #tpu.dot_dimension_numbers<[1], [0], [0], [1], [0, 0, 1, 1], [], []>} : vector<8x16xbf16>, vector<16x128xbf16>, vector<8x128xf32> -> vector<8x128xf32>
    %c126_i32 = arith.constant 126 : i32
    %24 = tpu.dynamic_rotate %23 by %c126_i32 dim 1 : vector<8x128xf32>, i32 -> vector<8x128xf32>
    %25 = arith.addf %20, %24 : vector<8x128xf32>
    %c3 = arith.constant 3 : index
    %c0_34 = arith.constant 0 : index
    %c0_35 = arith.constant 0 : index
    %26 = vector.load %arg8[%c3, %c0_34, %c0_35] : memref<27x8x16xbf16, #tpu.memory_space<vmem>>, vector<1x8x16xbf16>
    %27 = vector.shape_cast %26 : vector<1x8x16xbf16> to vector<8x16xbf16>
    %cst_36 = arith.constant dense<0.000000e+00> : vector<8x128xf32>
    %28 = tpu.matmul %27, %1, %cst_36 {dimension_numbers = #tpu.dot_dimension_numbers<[1], [0], [0], [1], [0, 0, 1, 1], [], []>} : vector<8x16xbf16>, vector<16x128xbf16>, vector<8x128xf32> -> vector<8x128xf32>
    %c120_i32 = arith.constant 120 : i32
    %29 = tpu.dynamic_rotate %28 by %c120_i32 dim 1 : vector<8x128xf32>, i32 -> vector<8x128xf32>
    %30 = arith.addf %25, %29 : vector<8x128xf32>
    %c4 = arith.constant 4 : index
    %c0_37 = arith.constant 0 : index
    %c0_38 = arith.constant 0 : index
    %31 = vector.load %arg8[%c4, %c0_37, %c0_38] : memref<27x8x16xbf16, #tpu.memory_space<vmem>>, vector<1x8x16xbf16>
    %32 = vector.shape_cast %31 : vector<1x8x16xbf16> to vector<8x16xbf16>
    %cst_39 = arith.constant dense<0.000000e+00> : vector<8x128xf32>
    %33 = tpu.matmul %32, %1, %cst_39 {dimension_numbers = #tpu.dot_dimension_numbers<[1], [0], [0], [1], [0, 0, 1, 1], [], []>} : vector<8x16xbf16>, vector<16x128xbf16>, vector<8x128xf32> -> vector<8x128xf32>
    %c119_i32 = arith.constant 119 : i32
    %34 = tpu.dynamic_rotate %33 by %c119_i32 dim 1 : vector<8x128xf32>, i32 -> vector<8x128xf32>
    %35 = arith.addf %30, %34 : vector<8x128xf32>
    %c5 = arith.constant 5 : index
    %c0_40 = arith.constant 0 : index
    %c0_41 = arith.constant 0 : index
    %36 = vector.load %arg8[%c5, %c0_40, %c0_41] : memref<27x8x16xbf16, #tpu.memory_space<vmem>>, vector<1x8x16xbf16>
    %37 = vector.shape_cast %36 : vector<1x8x16xbf16> to vector<8x16xbf16>
    %cst_42 = arith.constant dense<0.000000e+00> : vector<8x128xf32>
    %38 = tpu.matmul %37, %1, %cst_42 {dimension_numbers = #tpu.dot_dimension_numbers<[1], [0], [0], [1], [0, 0, 1, 1], [], []>} : vector<8x16xbf16>, vector<16x128xbf16>, vector<8x128xf32> -> vector<8x128xf32>
    %c118_i32 = arith.constant 118 : i32
    %39 = tpu.dynamic_rotate %38 by %c118_i32 dim 1 : vector<8x128xf32>, i32 -> vector<8x128xf32>
    %40 = arith.addf %35, %39 : vector<8x128xf32>
    %c6 = arith.constant 6 : index
    %c0_43 = arith.constant 0 : index
    %c0_44 = arith.constant 0 : index
    %41 = vector.load %arg8[%c6, %c0_43, %c0_44] : memref<27x8x16xbf16, #tpu.memory_space<vmem>>, vector<1x8x16xbf16>
    %42 = vector.shape_cast %41 : vector<1x8x16xbf16> to vector<8x16xbf16>
    %cst_45 = arith.constant dense<0.000000e+00> : vector<8x128xf32>
    %43 = tpu.matmul %42, %1, %cst_45 {dimension_numbers = #tpu.dot_dimension_numbers<[1], [0], [0], [1], [0, 0, 1, 1], [], []>} : vector<8x16xbf16>, vector<16x128xbf16>, vector<8x128xf32> -> vector<8x128xf32>
    %c112_i32 = arith.constant 112 : i32
    %44 = tpu.dynamic_rotate %43 by %c112_i32 dim 1 : vector<8x128xf32>, i32 -> vector<8x128xf32>
    %45 = arith.addf %40, %44 : vector<8x128xf32>
    %c7 = arith.constant 7 : index
    %c0_46 = arith.constant 0 : index
    %c0_47 = arith.constant 0 : index
    %46 = vector.load %arg8[%c7, %c0_46, %c0_47] : memref<27x8x16xbf16, #tpu.memory_space<vmem>>, vector<1x8x16xbf16>
    %47 = vector.shape_cast %46 : vector<1x8x16xbf16> to vector<8x16xbf16>
    %cst_48 = arith.constant dense<0.000000e+00> : vector<8x128xf32>
    %48 = tpu.matmul %47, %1, %cst_48 {dimension_numbers = #tpu.dot_dimension_numbers<[1], [0], [0], [1], [0, 0, 1, 1], [], []>} : vector<8x16xbf16>, vector<16x128xbf16>, vector<8x128xf32> -> vector<8x128xf32>
    %c111_i32 = arith.constant 111 : i32
    %49 = tpu.dynamic_rotate %48 by %c111_i32 dim 1 : vector<8x128xf32>, i32 -> vector<8x128xf32>
    %50 = arith.addf %45, %49 : vector<8x128xf32>
    %c8 = arith.constant 8 : index
    %c0_49 = arith.constant 0 : index
    %c0_50 = arith.constant 0 : index
    %51 = vector.load %arg8[%c8, %c0_49, %c0_50] : memref<27x8x16xbf16, #tpu.memory_space<vmem>>, vector<1x8x16xbf16>
    %52 = vector.shape_cast %51 : vector<1x8x16xbf16> to vector<8x16xbf16>
    %cst_51 = arith.constant dense<0.000000e+00> : vector<8x128xf32>
    %53 = tpu.matmul %52, %1, %cst_51 {dimension_numbers = #tpu.dot_dimension_numbers<[1], [0], [0], [1], [0, 0, 1, 1], [], []>} : vector<8x16xbf16>, vector<16x128xbf16>, vector<8x128xf32> -> vector<8x128xf32>
    %c110_i32 = arith.constant 110 : i32
    %54 = tpu.dynamic_rotate %53 by %c110_i32 dim 1 : vector<8x128xf32>, i32 -> vector<8x128xf32>
    %55 = arith.addf %50, %54 : vector<8x128xf32>
    %c9 = arith.constant 9 : index
    %c0_52 = arith.constant 0 : index
    %c0_53 = arith.constant 0 : index
    %56 = vector.load %arg8[%c9, %c0_52, %c0_53] : memref<27x8x16xbf16, #tpu.memory_space<vmem>>, vector<1x8x16xbf16>
    %57 = vector.shape_cast %56 : vector<1x8x16xbf16> to vector<8x16xbf16>
    %cst_54 = arith.constant dense<0.000000e+00> : vector<8x128xf32>
    %58 = tpu.matmul %57, %3, %cst_54 {dimension_numbers = #tpu.dot_dimension_numbers<[1], [0], [0], [1], [0, 0, 1, 1], [], []>} : vector<8x16xbf16>, vector<16x128xbf16>, vector<8x128xf32> -> vector<8x128xf32>
    %59 = arith.addf %55, %58 : vector<8x128xf32>
    %c10 = arith.constant 10 : index
    %c0_55 = arith.constant 0 : index
    %c0_56 = arith.constant 0 : index
    %60 = vector.load %arg8[%c10, %c0_55, %c0_56] : memref<27x8x16xbf16, #tpu.memory_space<vmem>>, vector<1x8x16xbf16>
    %61 = vector.shape_cast %60 : vector<1x8x16xbf16> to vector<8x16xbf16>
    %cst_57 = arith.constant dense<0.000000e+00> : vector<8x128xf32>
    %62 = tpu.matmul %61, %3, %cst_57 {dimension_numbers = #tpu.dot_dimension_numbers<[1], [0], [0], [1], [0, 0, 1, 1], [], []>} : vector<8x16xbf16>, vector<16x128xbf16>, vector<8x128xf32> -> vector<8x128xf32>
    %c127_i32_58 = arith.constant 127 : i32
    %63 = tpu.dynamic_rotate %62 by %c127_i32_58 dim 1 : vector<8x128xf32>, i32 -> vector<8x128xf32>
    %64 = arith.addf %59, %63 : vector<8x128xf32>
    %c11 = arith.constant 11 : index
    %c0_59 = arith.constant 0 : index
    %c0_60 = arith.constant 0 : index
    %65 = vector.load %arg8[%c11, %c0_59, %c0_60] : memref<27x8x16xbf16, #tpu.memory_space<vmem>>, vector<1x8x16xbf16>
    %66 = vector.shape_cast %65 : vector<1x8x16xbf16> to vector<8x16xbf16>
    %cst_61 = arith.constant dense<0.000000e+00> : vector<8x128xf32>
    %67 = tpu.matmul %66, %3, %cst_61 {dimension_numbers = #tpu.dot_dimension_numbers<[1], [0], [0], [1], [0, 0, 1, 1], [], []>} : vector<8x16xbf16>, vector<16x128xbf16>, vector<8x128xf32> -> vector<8x128xf32>
    %c126_i32_62 = arith.constant 126 : i32
    %68 = tpu.dynamic_rotate %67 by %c126_i32_62 dim 1 : vector<8x128xf32>, i32 -> vector<8x128xf32>
    %69 = arith.addf %64, %68 : vector<8x128xf32>
    %c12 = arith.constant 12 : index
    %c0_63 = arith.constant 0 : index
    %c0_64 = arith.constant 0 : index
    %70 = vector.load %arg8[%c12, %c0_63, %c0_64] : memref<27x8x16xbf16, #tpu.memory_space<vmem>>, vector<1x8x16xbf16>
    %71 = vector.shape_cast %70 : vector<1x8x16xbf16> to vector<8x16xbf16>
    %cst_65 = arith.constant dense<0.000000e+00> : vector<8x128xf32>
    %72 = tpu.matmul %71, %3, %cst_65 {dimension_numbers = #tpu.dot_dimension_numbers<[1], [0], [0], [1], [0, 0, 1, 1], [], []>} : vector<8x16xbf16>, vector<16x128xbf16>, vector<8x128xf32> -> vector<8x128xf32>
    %c120_i32_66 = arith.constant 120 : i32
    %73 = tpu.dynamic_rotate %72 by %c120_i32_66 dim 1 : vector<8x128xf32>, i32 -> vector<8x128xf32>
    %74 = arith.addf %69, %73 : vector<8x128xf32>
    %c13 = arith.constant 13 : index
    %c0_67 = arith.constant 0 : index
    %c0_68 = arith.constant 0 : index
    %75 = vector.load %arg8[%c13, %c0_67, %c0_68] : memref<27x8x16xbf16, #tpu.memory_space<vmem>>, vector<1x8x16xbf16>
    %76 = vector.shape_cast %75 : vector<1x8x16xbf16> to vector<8x16xbf16>
    %cst_69 = arith.constant dense<0.000000e+00> : vector<8x128xf32>
    %77 = tpu.matmul %76, %3, %cst_69 {dimension_numbers = #tpu.dot_dimension_numbers<[1], [0], [0], [1], [0, 0, 1, 1], [], []>} : vector<8x16xbf16>, vector<16x128xbf16>, vector<8x128xf32> -> vector<8x128xf32>
    %c119_i32_70 = arith.constant 119 : i32
    %78 = tpu.dynamic_rotate %77 by %c119_i32_70 dim 1 : vector<8x128xf32>, i32 -> vector<8x128xf32>
    %79 = arith.addf %74, %78 : vector<8x128xf32>
    %c14 = arith.constant 14 : index
    %c0_71 = arith.constant 0 : index
    %c0_72 = arith.constant 0 : index
    %80 = vector.load %arg8[%c14, %c0_71, %c0_72] : memref<27x8x16xbf16, #tpu.memory_space<vmem>>, vector<1x8x16xbf16>
    %81 = vector.shape_cast %80 : vector<1x8x16xbf16> to vector<8x16xbf16>
    %cst_73 = arith.constant dense<0.000000e+00> : vector<8x128xf32>
    %82 = tpu.matmul %81, %3, %cst_73 {dimension_numbers = #tpu.dot_dimension_numbers<[1], [0], [0], [1], [0, 0, 1, 1], [], []>} : vector<8x16xbf16>, vector<16x128xbf16>, vector<8x128xf32> -> vector<8x128xf32>
    %c118_i32_74 = arith.constant 118 : i32
    %83 = tpu.dynamic_rotate %82 by %c118_i32_74 dim 1 : vector<8x128xf32>, i32 -> vector<8x128xf32>
    %84 = arith.addf %79, %83 : vector<8x128xf32>
    %c15 = arith.constant 15 : index
    %c0_75 = arith.constant 0 : index
    %c0_76 = arith.constant 0 : index
    %85 = vector.load %arg8[%c15, %c0_75, %c0_76] : memref<27x8x16xbf16, #tpu.memory_space<vmem>>, vector<1x8x16xbf16>
    %86 = vector.shape_cast %85 : vector<1x8x16xbf16> to vector<8x16xbf16>
    %cst_77 = arith.constant dense<0.000000e+00> : vector<8x128xf32>
    %87 = tpu.matmul %86, %3, %cst_77 {dimension_numbers = #tpu.dot_dimension_numbers<[1], [0], [0], [1], [0, 0, 1, 1], [], []>} : vector<8x16xbf16>, vector<16x128xbf16>, vector<8x128xf32> -> vector<8x128xf32>
    %c112_i32_78 = arith.constant 112 : i32
    %88 = tpu.dynamic_rotate %87 by %c112_i32_78 dim 1 : vector<8x128xf32>, i32 -> vector<8x128xf32>
    %89 = arith.addf %84, %88 : vector<8x128xf32>
    %c16 = arith.constant 16 : index
    %c0_79 = arith.constant 0 : index
    %c0_80 = arith.constant 0 : index
    %90 = vector.load %arg8[%c16, %c0_79, %c0_80] : memref<27x8x16xbf16, #tpu.memory_space<vmem>>, vector<1x8x16xbf16>
    %91 = vector.shape_cast %90 : vector<1x8x16xbf16> to vector<8x16xbf16>
    %cst_81 = arith.constant dense<0.000000e+00> : vector<8x128xf32>
    %92 = tpu.matmul %91, %3, %cst_81 {dimension_numbers = #tpu.dot_dimension_numbers<[1], [0], [0], [1], [0, 0, 1, 1], [], []>} : vector<8x16xbf16>, vector<16x128xbf16>, vector<8x128xf32> -> vector<8x128xf32>
    %c111_i32_82 = arith.constant 111 : i32
    %93 = tpu.dynamic_rotate %92 by %c111_i32_82 dim 1 : vector<8x128xf32>, i32 -> vector<8x128xf32>
    %94 = arith.addf %89, %93 : vector<8x128xf32>
    %c17 = arith.constant 17 : index
    %c0_83 = arith.constant 0 : index
    %c0_84 = arith.constant 0 : index
    %95 = vector.load %arg8[%c17, %c0_83, %c0_84] : memref<27x8x16xbf16, #tpu.memory_space<vmem>>, vector<1x8x16xbf16>
    %96 = vector.shape_cast %95 : vector<1x8x16xbf16> to vector<8x16xbf16>
    %cst_85 = arith.constant dense<0.000000e+00> : vector<8x128xf32>
    %97 = tpu.matmul %96, %3, %cst_85 {dimension_numbers = #tpu.dot_dimension_numbers<[1], [0], [0], [1], [0, 0, 1, 1], [], []>} : vector<8x16xbf16>, vector<16x128xbf16>, vector<8x128xf32> -> vector<8x128xf32>
    %c110_i32_86 = arith.constant 110 : i32
    %98 = tpu.dynamic_rotate %97 by %c110_i32_86 dim 1 : vector<8x128xf32>, i32 -> vector<8x128xf32>
    %99 = arith.addf %94, %98 : vector<8x128xf32>
    %c18 = arith.constant 18 : index
    %c0_87 = arith.constant 0 : index
    %c0_88 = arith.constant 0 : index
    %100 = vector.load %arg8[%c18, %c0_87, %c0_88] : memref<27x8x16xbf16, #tpu.memory_space<vmem>>, vector<1x8x16xbf16>
    %101 = vector.shape_cast %100 : vector<1x8x16xbf16> to vector<8x16xbf16>
    %cst_89 = arith.constant dense<0.000000e+00> : vector<8x128xf32>
    %102 = tpu.matmul %101, %5, %cst_89 {dimension_numbers = #tpu.dot_dimension_numbers<[1], [0], [0], [1], [0, 0, 1, 1], [], []>} : vector<8x16xbf16>, vector<16x128xbf16>, vector<8x128xf32> -> vector<8x128xf32>
    %103 = arith.addf %99, %102 : vector<8x128xf32>
    %c19 = arith.constant 19 : index
    %c0_90 = arith.constant 0 : index
    %c0_91 = arith.constant 0 : index
    %104 = vector.load %arg8[%c19, %c0_90, %c0_91] : memref<27x8x16xbf16, #tpu.memory_space<vmem>>, vector<1x8x16xbf16>
    %105 = vector.shape_cast %104 : vector<1x8x16xbf16> to vector<8x16xbf16>
    %cst_92 = arith.constant dense<0.000000e+00> : vector<8x128xf32>
    %106 = tpu.matmul %105, %5, %cst_92 {dimension_numbers = #tpu.dot_dimension_numbers<[1], [0], [0], [1], [0, 0, 1, 1], [], []>} : vector<8x16xbf16>, vector<16x128xbf16>, vector<8x128xf32> -> vector<8x128xf32>
    %c127_i32_93 = arith.constant 127 : i32
    %107 = tpu.dynamic_rotate %106 by %c127_i32_93 dim 1 : vector<8x128xf32>, i32 -> vector<8x128xf32>
    %108 = arith.addf %103, %107 : vector<8x128xf32>
    %c20 = arith.constant 20 : index
    %c0_94 = arith.constant 0 : index
    %c0_95 = arith.constant 0 : index
    %109 = vector.load %arg8[%c20, %c0_94, %c0_95] : memref<27x8x16xbf16, #tpu.memory_space<vmem>>, vector<1x8x16xbf16>
    %110 = vector.shape_cast %109 : vector<1x8x16xbf16> to vector<8x16xbf16>
    %cst_96 = arith.constant dense<0.000000e+00> : vector<8x128xf32>
    %111 = tpu.matmul %110, %5, %cst_96 {dimension_numbers = #tpu.dot_dimension_numbers<[1], [0], [0], [1], [0, 0, 1, 1], [], []>} : vector<8x16xbf16>, vector<16x128xbf16>, vector<8x128xf32> -> vector<8x128xf32>
    %c126_i32_97 = arith.constant 126 : i32
    %112 = tpu.dynamic_rotate %111 by %c126_i32_97 dim 1 : vector<8x128xf32>, i32 -> vector<8x128xf32>
    %113 = arith.addf %108, %112 : vector<8x128xf32>
    %c21 = arith.constant 21 : index
    %c0_98 = arith.constant 0 : index
    %c0_99 = arith.constant 0 : index
    %114 = vector.load %arg8[%c21, %c0_98, %c0_99] : memref<27x8x16xbf16, #tpu.memory_space<vmem>>, vector<1x8x16xbf16>
    %115 = vector.shape_cast %114 : vector<1x8x16xbf16> to vector<8x16xbf16>
    %cst_100 = arith.constant dense<0.000000e+00> : vector<8x128xf32>
    %116 = tpu.matmul %115, %5, %cst_100 {dimension_numbers = #tpu.dot_dimension_numbers<[1], [0], [0], [1], [0, 0, 1, 1], [], []>} : vector<8x16xbf16>, vector<16x128xbf16>, vector<8x128xf32> -> vector<8x128xf32>
    %c120_i32_101 = arith.constant 120 : i32
    %117 = tpu.dynamic_rotate %116 by %c120_i32_101 dim 1 : vector<8x128xf32>, i32 -> vector<8x128xf32>
    %118 = arith.addf %113, %117 : vector<8x128xf32>
    %c22 = arith.constant 22 : index
    %c0_102 = arith.constant 0 : index
    %c0_103 = arith.constant 0 : index
    %119 = vector.load %arg8[%c22, %c0_102, %c0_103] : memref<27x8x16xbf16, #tpu.memory_space<vmem>>, vector<1x8x16xbf16>
    %120 = vector.shape_cast %119 : vector<1x8x16xbf16> to vector<8x16xbf16>
    %cst_104 = arith.constant dense<0.000000e+00> : vector<8x128xf32>
    %121 = tpu.matmul %120, %5, %cst_104 {dimension_numbers = #tpu.dot_dimension_numbers<[1], [0], [0], [1], [0, 0, 1, 1], [], []>} : vector<8x16xbf16>, vector<16x128xbf16>, vector<8x128xf32> -> vector<8x128xf32>
    %c119_i32_105 = arith.constant 119 : i32
    %122 = tpu.dynamic_rotate %121 by %c119_i32_105 dim 1 : vector<8x128xf32>, i32 -> vector<8x128xf32>
    %123 = arith.addf %118, %122 : vector<8x128xf32>
    %c23 = arith.constant 23 : index
    %c0_106 = arith.constant 0 : index
    %c0_107 = arith.constant 0 : index
    %124 = vector.load %arg8[%c23, %c0_106, %c0_107] : memref<27x8x16xbf16, #tpu.memory_space<vmem>>, vector<1x8x16xbf16>
    %125 = vector.shape_cast %124 : vector<1x8x16xbf16> to vector<8x16xbf16>
    %cst_108 = arith.constant dense<0.000000e+00> : vector<8x128xf32>
    %126 = tpu.matmul %125, %5, %cst_108 {dimension_numbers = #tpu.dot_dimension_numbers<[1], [0], [0], [1], [0, 0, 1, 1], [], []>} : vector<8x16xbf16>, vector<16x128xbf16>, vector<8x128xf32> -> vector<8x128xf32>
    %c118_i32_109 = arith.constant 118 : i32
    %127 = tpu.dynamic_rotate %126 by %c118_i32_109 dim 1 : vector<8x128xf32>, i32 -> vector<8x128xf32>
    %128 = arith.addf %123, %127 : vector<8x128xf32>
    %c24 = arith.constant 24 : index
    %c0_110 = arith.constant 0 : index
    %c0_111 = arith.constant 0 : index
    %129 = vector.load %arg8[%c24, %c0_110, %c0_111] : memref<27x8x16xbf16, #tpu.memory_space<vmem>>, vector<1x8x16xbf16>
    %130 = vector.shape_cast %129 : vector<1x8x16xbf16> to vector<8x16xbf16>
    %cst_112 = arith.constant dense<0.000000e+00> : vector<8x128xf32>
    %131 = tpu.matmul %130, %5, %cst_112 {dimension_numbers = #tpu.dot_dimension_numbers<[1], [0], [0], [1], [0, 0, 1, 1], [], []>} : vector<8x16xbf16>, vector<16x128xbf16>, vector<8x128xf32> -> vector<8x128xf32>
    %c112_i32_113 = arith.constant 112 : i32
    %132 = tpu.dynamic_rotate %131 by %c112_i32_113 dim 1 : vector<8x128xf32>, i32 -> vector<8x128xf32>
    %133 = arith.addf %128, %132 : vector<8x128xf32>
    %c25 = arith.constant 25 : index
    %c0_114 = arith.constant 0 : index
    %c0_115 = arith.constant 0 : index
    %134 = vector.load %arg8[%c25, %c0_114, %c0_115] : memref<27x8x16xbf16, #tpu.memory_space<vmem>>, vector<1x8x16xbf16>
    %135 = vector.shape_cast %134 : vector<1x8x16xbf16> to vector<8x16xbf16>
    %cst_116 = arith.constant dense<0.000000e+00> : vector<8x128xf32>
    %136 = tpu.matmul %135, %5, %cst_116 {dimension_numbers = #tpu.dot_dimension_numbers<[1], [0], [0], [1], [0, 0, 1, 1], [], []>} : vector<8x16xbf16>, vector<16x128xbf16>, vector<8x128xf32> -> vector<8x128xf32>
    %c111_i32_117 = arith.constant 111 : i32
    %137 = tpu.dynamic_rotate %136 by %c111_i32_117 dim 1 : vector<8x128xf32>, i32 -> vector<8x128xf32>
    %138 = arith.addf %133, %137 : vector<8x128xf32>
    %c26 = arith.constant 26 : index
    %c0_118 = arith.constant 0 : index
    %c0_119 = arith.constant 0 : index
    %139 = vector.load %arg8[%c26, %c0_118, %c0_119] : memref<27x8x16xbf16, #tpu.memory_space<vmem>>, vector<1x8x16xbf16>
    %140 = vector.shape_cast %139 : vector<1x8x16xbf16> to vector<8x16xbf16>
    %cst_120 = arith.constant dense<0.000000e+00> : vector<8x128xf32>
    %141 = tpu.matmul %140, %5, %cst_120 {dimension_numbers = #tpu.dot_dimension_numbers<[1], [0], [0], [1], [0, 0, 1, 1], [], []>} : vector<8x16xbf16>, vector<16x128xbf16>, vector<8x128xf32> -> vector<8x128xf32>
    %c110_i32_121 = arith.constant 110 : i32
    %142 = tpu.dynamic_rotate %141 by %c110_i32_121 dim 1 : vector<8x128xf32>, i32 -> vector<8x128xf32>
    %143 = arith.addf %138, %142 : vector<8x128xf32>
    %144 = vector.broadcast %12 : vector<8x1xf32> to vector<8x128xf32>
    %145 = arith.addf %143, %144 : vector<8x128xf32>
    %cst_122 = arith.constant 0.000000e+00 : f32
    %146 = vector.broadcast %cst_122 : f32 to vector<8x128xf32>
    %147 = arith.maximumf %145, %146 : vector<8x128xf32>
    %c0_123 = arith.constant 0 : index
    %c0_124 = arith.constant 0 : index
    %c0_125 = arith.constant 0 : index
    %c0_126 = arith.constant 0 : index
    %148 = vector.load %arg10[%c0_123, %c0_124, %c0_125, %c0_126] : memref<1x4x8x128xf32, #tpu.memory_space<vmem>>, vector<1x1x8x128xf32>
    %149 = vector.shape_cast %148 : vector<1x1x8x128xf32> to vector<8x128xf32>
    %150 = vector.shape_cast %147 : vector<8x128xf32> to vector<1x1x8x128xf32>
    tpu.vector_store %arg10[%c0_123, %c0_124, %c0_125, %c0_126], %150 {strides = array<i32>} : memref<1x4x8x128xf32, #tpu.memory_space<vmem>>, vector<1x1x8x128xf32>,
    %c0_127 = arith.constant 0 : index
    %c0_128 = arith.constant 0 : index
    %c0_129 = arith.constant 0 : index
    %151 = vector.load %arg8[%c0_127, %c0_128, %c0_129] : memref<27x8x16xbf16, #tpu.memory_space<vmem>>, vector<1x8x16xbf16>
    %152 = vector.shape_cast %151 : vector<1x8x16xbf16> to vector<8x16xbf16>
    %cst_130 = arith.constant dense<0.000000e+00> : vector<8x128xf32>
    %153 = tpu.matmul %152, %3, %cst_130 {dimension_numbers = #tpu.dot_dimension_numbers<[1], [0], [0], [1], [0, 0, 1, 1], [], []>} : vector<8x16xbf16>, vector<16x128xbf16>, vector<8x128xf32> -> vector<8x128xf32>
    %c1_131 = arith.constant 1 : index
    %c0_132 = arith.constant 0 : index
    %c0_133 = arith.constant 0 : index
    %154 = vector.load %arg8[%c1_131, %c0_132, %c0_133] : memref<27x8x16xbf16, #tpu.memory_space<vmem>>, vector<1x8x16xbf16>
    %155 = vector.shape_cast %154 : vector<1x8x16xbf16> to vector<8x16xbf16>
    %cst_134 = arith.constant dense<0.000000e+00> : vector<8x128xf32>
    %156 = tpu.matmul %155, %3, %cst_134 {dimension_numbers = #tpu.dot_dimension_numbers<[1], [0], [0], [1], [0, 0, 1, 1], [], []>} : vector<8x16xbf16>, vector<16x128xbf16>, vector<8x128xf32> -> vector<8x128xf32>
    %c127_i32_135 = arith.constant 127 : i32
    %157 = tpu.dynamic_rotate %156 by %c127_i32_135 dim 1 : vector<8x128xf32>, i32 -> vector<8x128xf32>
    %158 = arith.addf %153, %157 : vector<8x128xf32>
    %c2_136 = arith.constant 2 : index
    %c0_137 = arith.constant 0 : index
    %c0_138 = arith.constant 0 : index
    %159 = vector.load %arg8[%c2_136, %c0_137, %c0_138] : memref<27x8x16xbf16, #tpu.memory_space<vmem>>, vector<1x8x16xbf16>
    %160 = vector.shape_cast %159 : vector<1x8x16xbf16> to vector<8x16xbf16>
    %cst_139 = arith.constant dense<0.000000e+00> : vector<8x128xf32>
    %161 = tpu.matmul %160, %3, %cst_139 {dimension_numbers = #tpu.dot_dimension_numbers<[1], [0], [0], [1], [0, 0, 1, 1], [], []>} : vector<8x16xbf16>, vector<16x128xbf16>, vector<8x128xf32> -> vector<8x128xf32>
    %c126_i32_140 = arith.constant 126 : i32
    %162 = tpu.dynamic_rotate %161 by %c126_i32_140 dim 1 : vector<8x128xf32>, i32 -> vector<8x128xf32>
    %163 = arith.addf %158, %162 : vector<8x128xf32>
    %c3_141 = arith.constant 3 : index
    %c0_142 = arith.constant 0 : index
    %c0_143 = arith.constant 0 : index
    %164 = vector.load %arg8[%c3_141, %c0_142, %c0_143] : memref<27x8x16xbf16, #tpu.memory_space<vmem>>, vector<1x8x16xbf16>
    %165 = vector.shape_cast %164 : vector<1x8x16xbf16> to vector<8x16xbf16>
    %cst_144 = arith.constant dense<0.000000e+00> : vector<8x128xf32>
    %166 = tpu.matmul %165, %3, %cst_144 {dimension_numbers = #tpu.dot_dimension_numbers<[1], [0], [0], [1], [0, 0, 1, 1], [], []>} : vector<8x16xbf16>, vector<16x128xbf16>, vector<8x128xf32> -> vector<8x128xf32>
    %c120_i32_145 = arith.constant 120 : i32
    %167 = tpu.dynamic_rotate %166 by %c120_i32_145 dim 1 : vector<8x128xf32>, i32 -> vector<8x128xf32>
    %168 = arith.addf %163, %167 : vector<8x128xf32>
    %c4_146 = arith.constant 4 : index
    %c0_147 = arith.constant 0 : index
    %c0_148 = arith.constant 0 : index
    %169 = vector.load %arg8[%c4_146, %c0_147, %c0_148] : memref<27x8x16xbf16, #tpu.memory_space<vmem>>, vector<1x8x16xbf16>
    %170 = vector.shape_cast %169 : vector<1x8x16xbf16> to vector<8x16xbf16>
    %cst_149 = arith.constant dense<0.000000e+00> : vector<8x128xf32>
    %171 = tpu.matmul %170, %3, %cst_149 {dimension_numbers = #tpu.dot_dimension_numbers<[1], [0], [0], [1], [0, 0, 1, 1], [], []>} : vector<8x16xbf16>, vector<16x128xbf16>, vector<8x128xf32> -> vector<8x128xf32>
    %c119_i32_150 = arith.constant 119 : i32
    %172 = tpu.dynamic_rotate %171 by %c119_i32_150 dim 1 : vector<8x128xf32>, i32 -> vector<8x128xf32>
    %173 = arith.addf %168, %172 : vector<8x128xf32>
    %c5_151 = arith.constant 5 : index
    %c0_152 = arith.constant 0 : index
    %c0_153 = arith.constant 0 : index
    %174 = vector.load %arg8[%c5_151, %c0_152, %c0_153] : memref<27x8x16xbf16, #tpu.memory_space<vmem>>, vector<1x8x16xbf16>
    %175 = vector.shape_cast %174 : vector<1x8x16xbf16> to vector<8x16xbf16>
    %cst_154 = arith.constant dense<0.000000e+00> : vector<8x128xf32>
    %176 = tpu.matmul %175, %3, %cst_154 {dimension_numbers = #tpu.dot_dimension_numbers<[1], [0], [0], [1], [0, 0, 1, 1], [], []>} : vector<8x16xbf16>, vector<16x128xbf16>, vector<8x128xf32> -> vector<8x128xf32>
    %c118_i32_155 = arith.constant 118 : i32
    %177 = tpu.dynamic_rotate %176 by %c118_i32_155 dim 1 : vector<8x128xf32>, i32 -> vector<8x128xf32>
    %178 = arith.addf %173, %177 : vector<8x128xf32>
    %c6_156 = arith.constant 6 : index
    %c0_157 = arith.constant 0 : index
    %c0_158 = arith.constant 0 : index
    %179 = vector.load %arg8[%c6_156, %c0_157, %c0_158] : memref<27x8x16xbf16, #tpu.memory_space<vmem>>, vector<1x8x16xbf16>
    %180 = vector.shape_cast %179 : vector<1x8x16xbf16> to vector<8x16xbf16>
    %cst_159 = arith.constant dense<0.000000e+00> : vector<8x128xf32>
    %181 = tpu.matmul %180, %3, %cst_159 {dimension_numbers = #tpu.dot_dimension_numbers<[1], [0], [0], [1], [0, 0, 1, 1], [], []>} : vector<8x16xbf16>, vector<16x128xbf16>, vector<8x128xf32> -> vector<8x128xf32>
    %c112_i32_160 = arith.constant 112 : i32
    %182 = tpu.dynamic_rotate %181 by %c112_i32_160 dim 1 : vector<8x128xf32>, i32 -> vector<8x128xf32>
    %183 = arith.addf %178, %182 : vector<8x128xf32>
    %c7_161 = arith.constant 7 : index
    %c0_162 = arith.constant 0 : index
    %c0_163 = arith.constant 0 : index
    %184 = vector.load %arg8[%c7_161, %c0_162, %c0_163] : memref<27x8x16xbf16, #tpu.memory_space<vmem>>, vector<1x8x16xbf16>
    %185 = vector.shape_cast %184 : vector<1x8x16xbf16> to vector<8x16xbf16>
    %cst_164 = arith.constant dense<0.000000e+00> : vector<8x128xf32>
    %186 = tpu.matmul %185, %3, %cst_164 {dimension_numbers = #tpu.dot_dimension_numbers<[1], [0], [0], [1], [0, 0, 1, 1], [], []>} : vector<8x16xbf16>, vector<16x128xbf16>, vector<8x128xf32> -> vector<8x128xf32>
    %c111_i32_165 = arith.constant 111 : i32
    %187 = tpu.dynamic_rotate %186 by %c111_i32_165 dim 1 : vector<8x128xf32>, i32 -> vector<8x128xf32>
    %188 = arith.addf %183, %187 : vector<8x128xf32>
    %c8_166 = arith.constant 8 : index
    %c0_167 = arith.constant 0 : index
    %c0_168 = arith.constant 0 : index
    %189 = vector.load %arg8[%c8_166, %c0_167, %c0_168] : memref<27x8x16xbf16, #tpu.memory_space<vmem>>, vector<1x8x16xbf16>
    %190 = vector.shape_cast %189 : vector<1x8x16xbf16> to vector<8x16xbf16>
    %cst_169 = arith.constant dense<0.000000e+00> : vector<8x128xf32>
    %191 = tpu.matmul %190, %3, %cst_169 {dimension_numbers = #tpu.dot_dimension_numbers<[1], [0], [0], [1], [0, 0, 1, 1], [], []>} : vector<8x16xbf16>, vector<16x128xbf16>, vector<8x128xf32> -> vector<8x128xf32>
    %c110_i32_170 = arith.constant 110 : i32
    %192 = tpu.dynamic_rotate %191 by %c110_i32_170 dim 1 : vector<8x128xf32>, i32 -> vector<8x128xf32>
    %193 = arith.addf %188, %192 : vector<8x128xf32>
    %c9_171 = arith.constant 9 : index
    %c0_172 = arith.constant 0 : index
    %c0_173 = arith.constant 0 : index
    %194 = vector.load %arg8[%c9_171, %c0_172, %c0_173] : memref<27x8x16xbf16, #tpu.memory_space<vmem>>, vector<1x8x16xbf16>
    %195 = vector.shape_cast %194 : vector<1x8x16xbf16> to vector<8x16xbf16>
    %cst_174 = arith.constant dense<0.000000e+00> : vector<8x128xf32>
    %196 = tpu.matmul %195, %5, %cst_174 {dimension_numbers = #tpu.dot_dimension_numbers<[1], [0], [0], [1], [0, 0, 1, 1], [], []>} : vector<8x16xbf16>, vector<16x128xbf16>, vector<8x128xf32> -> vector<8x128xf32>
    %197 = arith.addf %193, %196 : vector<8x128xf32>
    %c10_175 = arith.constant 10 : index
    %c0_176 = arith.constant 0 : index
    %c0_177 = arith.constant 0 : index
    %198 = vector.load %arg8[%c10_175, %c0_176, %c0_177] : memref<27x8x16xbf16, #tpu.memory_space<vmem>>, vector<1x8x16xbf16>
    %199 = vector.shape_cast %198 : vector<1x8x16xbf16> to vector<8x16xbf16>
    %cst_178 = arith.constant dense<0.000000e+00> : vector<8x128xf32>
    %200 = tpu.matmul %199, %5, %cst_178 {dimension_numbers = #tpu.dot_dimension_numbers<[1], [0], [0], [1], [0, 0, 1, 1], [], []>} : vector<8x16xbf16>, vector<16x128xbf16>, vector<8x128xf32> -> vector<8x128xf32>
    %c127_i32_179 = arith.constant 127 : i32
    %201 = tpu.dynamic_rotate %200 by %c127_i32_179 dim 1 : vector<8x128xf32>, i32 -> vector<8x128xf32>
    %202 = arith.addf %197, %201 : vector<8x128xf32>
    %c11_180 = arith.constant 11 : index
    %c0_181 = arith.constant 0 : index
    %c0_182 = arith.constant 0 : index
    %203 = vector.load %arg8[%c11_180, %c0_181, %c0_182] : memref<27x8x16xbf16, #tpu.memory_space<vmem>>, vector<1x8x16xbf16>
    %204 = vector.shape_cast %203 : vector<1x8x16xbf16> to vector<8x16xbf16>
    %cst_183 = arith.constant dense<0.000000e+00> : vector<8x128xf32>
    %205 = tpu.matmul %204, %5, %cst_183 {dimension_numbers = #tpu.dot_dimension_numbers<[1], [0], [0], [1], [0, 0, 1, 1], [], []>} : vector<8x16xbf16>, vector<16x128xbf16>, vector<8x128xf32> -> vector<8x128xf32>
    %c126_i32_184 = arith.constant 126 : i32
    %206 = tpu.dynamic_rotate %205 by %c126_i32_184 dim 1 : vector<8x128xf32>, i32 -> vector<8x128xf32>
    %207 = arith.addf %202, %206 : vector<8x128xf32>
    %c12_185 = arith.constant 12 : index
    %c0_186 = arith.constant 0 : index
    %c0_187 = arith.constant 0 : index
    %208 = vector.load %arg8[%c12_185, %c0_186, %c0_187] : memref<27x8x16xbf16, #tpu.memory_space<vmem>>, vector<1x8x16xbf16>
    %209 = vector.shape_cast %208 : vector<1x8x16xbf16> to vector<8x16xbf16>
    %cst_188 = arith.constant dense<0.000000e+00> : vector<8x128xf32>
    %210 = tpu.matmul %209, %5, %cst_188 {dimension_numbers = #tpu.dot_dimension_numbers<[1], [0], [0], [1], [0, 0, 1, 1], [], []>} : vector<8x16xbf16>, vector<16x128xbf16>, vector<8x128xf32> -> vector<8x128xf32>
    %c120_i32_189 = arith.constant 120 : i32
    %211 = tpu.dynamic_rotate %210 by %c120_i32_189 dim 1 : vector<8x128xf32>, i32 -> vector<8x128xf32>
    %212 = arith.addf %207, %211 : vector<8x128xf32>
    %c13_190 = arith.constant 13 : index
    %c0_191 = arith.constant 0 : index
    %c0_192 = arith.constant 0 : index
    %213 = vector.load %arg8[%c13_190, %c0_191, %c0_192] : memref<27x8x16xbf16, #tpu.memory_space<vmem>>, vector<1x8x16xbf16>
    %214 = vector.shape_cast %213 : vector<1x8x16xbf16> to vector<8x16xbf16>
    %cst_193 = arith.constant dense<0.000000e+00> : vector<8x128xf32>
    %215 = tpu.matmul %214, %5, %cst_193 {dimension_numbers = #tpu.dot_dimension_numbers<[1], [0], [0], [1], [0, 0, 1, 1], [], []>} : vector<8x16xbf16>, vector<16x128xbf16>, vector<8x128xf32> -> vector<8x128xf32>
    %c119_i32_194 = arith.constant 119 : i32
    %216 = tpu.dynamic_rotate %215 by %c119_i32_194 dim 1 : vector<8x128xf32>, i32 -> vector<8x128xf32>
    %217 = arith.addf %212, %216 : vector<8x128xf32>
    %c14_195 = arith.constant 14 : index
    %c0_196 = arith.constant 0 : index
    %c0_197 = arith.constant 0 : index
    %218 = vector.load %arg8[%c14_195, %c0_196, %c0_197] : memref<27x8x16xbf16, #tpu.memory_space<vmem>>, vector<1x8x16xbf16>
    %219 = vector.shape_cast %218 : vector<1x8x16xbf16> to vector<8x16xbf16>
    %cst_198 = arith.constant dense<0.000000e+00> : vector<8x128xf32>
    %220 = tpu.matmul %219, %5, %cst_198 {dimension_numbers = #tpu.dot_dimension_numbers<[1], [0], [0], [1], [0, 0, 1, 1], [], []>} : vector<8x16xbf16>, vector<16x128xbf16>, vector<8x128xf32> -> vector<8x128xf32>
    %c118_i32_199 = arith.constant 118 : i32
    %221 = tpu.dynamic_rotate %220 by %c118_i32_199 dim 1 : vector<8x128xf32>, i32 -> vector<8x128xf32>
    %222 = arith.addf %217, %221 : vector<8x128xf32>
    %c15_200 = arith.constant 15 : index
    %c0_201 = arith.constant 0 : index
    %c0_202 = arith.constant 0 : index
    %223 = vector.load %arg8[%c15_200, %c0_201, %c0_202] : memref<27x8x16xbf16, #tpu.memory_space<vmem>>, vector<1x8x16xbf16>
    %224 = vector.shape_cast %223 : vector<1x8x16xbf16> to vector<8x16xbf16>
    %cst_203 = arith.constant dense<0.000000e+00> : vector<8x128xf32>
    %225 = tpu.matmul %224, %5, %cst_203 {dimension_numbers = #tpu.dot_dimension_numbers<[1], [0], [0], [1], [0, 0, 1, 1], [], []>} : vector<8x16xbf16>, vector<16x128xbf16>, vector<8x128xf32> -> vector<8x128xf32>
    %c112_i32_204 = arith.constant 112 : i32
    %226 = tpu.dynamic_rotate %225 by %c112_i32_204 dim 1 : vector<8x128xf32>, i32 -> vector<8x128xf32>
    %227 = arith.addf %222, %226 : vector<8x128xf32>
    %c16_205 = arith.constant 16 : index
    %c0_206 = arith.constant 0 : index
    %c0_207 = arith.constant 0 : index
    %228 = vector.load %arg8[%c16_205, %c0_206, %c0_207] : memref<27x8x16xbf16, #tpu.memory_space<vmem>>, vector<1x8x16xbf16>
    %229 = vector.shape_cast %228 : vector<1x8x16xbf16> to vector<8x16xbf16>
    %cst_208 = arith.constant dense<0.000000e+00> : vector<8x128xf32>
    %230 = tpu.matmul %229, %5, %cst_208 {dimension_numbers = #tpu.dot_dimension_numbers<[1], [0], [0], [1], [0, 0, 1, 1], [], []>} : vector<8x16xbf16>, vector<16x128xbf16>, vector<8x128xf32> -> vector<8x128xf32>
    %c111_i32_209 = arith.constant 111 : i32
    %231 = tpu.dynamic_rotate %230 by %c111_i32_209 dim 1 : vector<8x128xf32>, i32 -> vector<8x128xf32>
    %232 = arith.addf %227, %231 : vector<8x128xf32>
    %c17_210 = arith.constant 17 : index
    %c0_211 = arith.constant 0 : index
    %c0_212 = arith.constant 0 : index
    %233 = vector.load %arg8[%c17_210, %c0_211, %c0_212] : memref<27x8x16xbf16, #tpu.memory_space<vmem>>, vector<1x8x16xbf16>
    %234 = vector.shape_cast %233 : vector<1x8x16xbf16> to vector<8x16xbf16>
    %cst_213 = arith.constant dense<0.000000e+00> : vector<8x128xf32>
    %235 = tpu.matmul %234, %5, %cst_213 {dimension_numbers = #tpu.dot_dimension_numbers<[1], [0], [0], [1], [0, 0, 1, 1], [], []>} : vector<8x16xbf16>, vector<16x128xbf16>, vector<8x128xf32> -> vector<8x128xf32>
    %c110_i32_214 = arith.constant 110 : i32
    %236 = tpu.dynamic_rotate %235 by %c110_i32_214 dim 1 : vector<8x128xf32>, i32 -> vector<8x128xf32>
    %237 = arith.addf %232, %236 : vector<8x128xf32>
    %c18_215 = arith.constant 18 : index
    %c0_216 = arith.constant 0 : index
    %c0_217 = arith.constant 0 : index
    %238 = vector.load %arg8[%c18_215, %c0_216, %c0_217] : memref<27x8x16xbf16, #tpu.memory_space<vmem>>, vector<1x8x16xbf16>
    %239 = vector.shape_cast %238 : vector<1x8x16xbf16> to vector<8x16xbf16>
    %cst_218 = arith.constant dense<0.000000e+00> : vector<8x128xf32>
    %240 = tpu.matmul %239, %7, %cst_218 {dimension_numbers = #tpu.dot_dimension_numbers<[1], [0], [0], [1], [0, 0, 1, 1], [], []>} : vector<8x16xbf16>, vector<16x128xbf16>, vector<8x128xf32> -> vector<8x128xf32>
    %241 = arith.addf %237, %240 : vector<8x128xf32>
    %c19_219 = arith.constant 19 : index
    %c0_220 = arith.constant 0 : index
    %c0_221 = arith.constant 0 : index
    %242 = vector.load %arg8[%c19_219, %c0_220, %c0_221] : memref<27x8x16xbf16, #tpu.memory_space<vmem>>, vector<1x8x16xbf16>
    %243 = vector.shape_cast %242 : vector<1x8x16xbf16> to vector<8x16xbf16>
    %cst_222 = arith.constant dense<0.000000e+00> : vector<8x128xf32>
    %244 = tpu.matmul %243, %7, %cst_222 {dimension_numbers = #tpu.dot_dimension_numbers<[1], [0], [0], [1], [0, 0, 1, 1], [], []>} : vector<8x16xbf16>, vector<16x128xbf16>, vector<8x128xf32> -> vector<8x128xf32>
    %c127_i32_223 = arith.constant 127 : i32
    %245 = tpu.dynamic_rotate %244 by %c127_i32_223 dim 1 : vector<8x128xf32>, i32 -> vector<8x128xf32>
    %246 = arith.addf %241, %245 : vector<8x128xf32>
    %c20_224 = arith.constant 20 : index
    %c0_225 = arith.constant 0 : index
    %c0_226 = arith.constant 0 : index
    %247 = vector.load %arg8[%c20_224, %c0_225, %c0_226] : memref<27x8x16xbf16, #tpu.memory_space<vmem>>, vector<1x8x16xbf16>
    %248 = vector.shape_cast %247 : vector<1x8x16xbf16> to vector<8x16xbf16>
    %cst_227 = arith.constant dense<0.000000e+00> : vector<8x128xf32>
    %249 = tpu.matmul %248, %7, %cst_227 {dimension_numbers = #tpu.dot_dimension_numbers<[1], [0], [0], [1], [0, 0, 1, 1], [], []>} : vector<8x16xbf16>, vector<16x128xbf16>, vector<8x128xf32> -> vector<8x128xf32>
    %c126_i32_228 = arith.constant 126 : i32
    %250 = tpu.dynamic_rotate %249 by %c126_i32_228 dim 1 : vector<8x128xf32>, i32 -> vector<8x128xf32>
    %251 = arith.addf %246, %250 : vector<8x128xf32>
    %c21_229 = arith.constant 21 : index
    %c0_230 = arith.constant 0 : index
    %c0_231 = arith.constant 0 : index
    %252 = vector.load %arg8[%c21_229, %c0_230, %c0_231] : memref<27x8x16xbf16, #tpu.memory_space<vmem>>, vector<1x8x16xbf16>
    %253 = vector.shape_cast %252 : vector<1x8x16xbf16> to vector<8x16xbf16>
    %cst_232 = arith.constant dense<0.000000e+00> : vector<8x128xf32>
    %254 = tpu.matmul %253, %7, %cst_232 {dimension_numbers = #tpu.dot_dimension_numbers<[1], [0], [0], [1], [0, 0, 1, 1], [], []>} : vector<8x16xbf16>, vector<16x128xbf16>, vector<8x128xf32> -> vector<8x128xf32>
    %c120_i32_233 = arith.constant 120 : i32
    %255 = tpu.dynamic_rotate %254 by %c120_i32_233 dim 1 : vector<8x128xf32>, i32 -> vector<8x128xf32>
    %256 = arith.addf %251, %255 : vector<8x128xf32>
    %c22_234 = arith.constant 22 : index
    %c0_235 = arith.constant 0 : index
    %c0_236 = arith.constant 0 : index
    %257 = vector.load %arg8[%c22_234, %c0_235, %c0_236] : memref<27x8x16xbf16, #tpu.memory_space<vmem>>, vector<1x8x16xbf16>
    %258 = vector.shape_cast %257 : vector<1x8x16xbf16> to vector<8x16xbf16>
    %cst_237 = arith.constant dense<0.000000e+00> : vector<8x128xf32>
    %259 = tpu.matmul %258, %7, %cst_237 {dimension_numbers = #tpu.dot_dimension_numbers<[1], [0], [0], [1], [0, 0, 1, 1], [], []>} : vector<8x16xbf16>, vector<16x128xbf16>, vector<8x128xf32> -> vector<8x128xf32>
    %c119_i32_238 = arith.constant 119 : i32
    %260 = tpu.dynamic_rotate %259 by %c119_i32_238 dim 1 : vector<8x128xf32>, i32 -> vector<8x128xf32>
    %261 = arith.addf %256, %260 : vector<8x128xf32>
    %c23_239 = arith.constant 23 : index
    %c0_240 = arith.constant 0 : index
    %c0_241 = arith.constant 0 : index
    %262 = vector.load %arg8[%c23_239, %c0_240, %c0_241] : memref<27x8x16xbf16, #tpu.memory_space<vmem>>, vector<1x8x16xbf16>
    %263 = vector.shape_cast %262 : vector<1x8x16xbf16> to vector<8x16xbf16>
    %cst_242 = arith.constant dense<0.000000e+00> : vector<8x128xf32>
    %264 = tpu.matmul %263, %7, %cst_242 {dimension_numbers = #tpu.dot_dimension_numbers<[1], [0], [0], [1], [0, 0, 1, 1], [], []>} : vector<8x16xbf16>, vector<16x128xbf16>, vector<8x128xf32> -> vector<8x128xf32>
    %c118_i32_243 = arith.constant 118 : i32
    %265 = tpu.dynamic_rotate %264 by %c118_i32_243 dim 1 : vector<8x128xf32>, i32 -> vector<8x128xf32>
    %266 = arith.addf %261, %265 : vector<8x128xf32>
    %c24_244 = arith.constant 24 : index
    %c0_245 = arith.constant 0 : index
    %c0_246 = arith.constant 0 : index
    %267 = vector.load %arg8[%c24_244, %c0_245, %c0_246] : memref<27x8x16xbf16, #tpu.memory_space<vmem>>, vector<1x8x16xbf16>
    %268 = vector.shape_cast %267 : vector<1x8x16xbf16> to vector<8x16xbf16>
    %cst_247 = arith.constant dense<0.000000e+00> : vector<8x128xf32>
    %269 = tpu.matmul %268, %7, %cst_247 {dimension_numbers = #tpu.dot_dimension_numbers<[1], [0], [0], [1], [0, 0, 1, 1], [], []>} : vector<8x16xbf16>, vector<16x128xbf16>, vector<8x128xf32> -> vector<8x128xf32>
    %c112_i32_248 = arith.constant 112 : i32
    %270 = tpu.dynamic_rotate %269 by %c112_i32_248 dim 1 : vector<8x128xf32>, i32 -> vector<8x128xf32>
    %271 = arith.addf %266, %270 : vector<8x128xf32>
    %c25_249 = arith.constant 25 : index
    %c0_250 = arith.constant 0 : index
    %c0_251 = arith.constant 0 : index
    %272 = vector.load %arg8[%c25_249, %c0_250, %c0_251] : memref<27x8x16xbf16, #tpu.memory_space<vmem>>, vector<1x8x16xbf16>
    %273 = vector.shape_cast %272 : vector<1x8x16xbf16> to vector<8x16xbf16>
    %cst_252 = arith.constant dense<0.000000e+00> : vector<8x128xf32>
    %274 = tpu.matmul %273, %7, %cst_252 {dimension_numbers = #tpu.dot_dimension_numbers<[1], [0], [0], [1], [0, 0, 1, 1], [], []>} : vector<8x16xbf16>, vector<16x128xbf16>, vector<8x128xf32> -> vector<8x128xf32>
    %c111_i32_253 = arith.constant 111 : i32
    %275 = tpu.dynamic_rotate %274 by %c111_i32_253 dim 1 : vector<8x128xf32>, i32 -> vector<8x128xf32>
    %276 = arith.addf %271, %275 : vector<8x128xf32>
    %c26_254 = arith.constant 26 : index
    %c0_255 = arith.constant 0 : index
    %c0_256 = arith.constant 0 : index
    %277 = vector.load %arg8[%c26_254, %c0_255, %c0_256] : memref<27x8x16xbf16, #tpu.memory_space<vmem>>, vector<1x8x16xbf16>
    %278 = vector.shape_cast %277 : vector<1x8x16xbf16> to vector<8x16xbf16>
    %cst_257 = arith.constant dense<0.000000e+00> : vector<8x128xf32>
    %279 = tpu.matmul %278, %7, %cst_257 {dimension_numbers = #tpu.dot_dimension_numbers<[1], [0], [0], [1], [0, 0, 1, 1], [], []>} : vector<8x16xbf16>, vector<16x128xbf16>, vector<8x128xf32> -> vector<8x128xf32>
    %c110_i32_258 = arith.constant 110 : i32
    %280 = tpu.dynamic_rotate %279 by %c110_i32_258 dim 1 : vector<8x128xf32>, i32 -> vector<8x128xf32>
    %281 = arith.addf %276, %280 : vector<8x128xf32>
    %282 = vector.broadcast %12 : vector<8x1xf32> to vector<8x128xf32>
    %283 = arith.addf %281, %282 : vector<8x128xf32>
    %cst_259 = arith.constant 0.000000e+00 : f32
    %284 = vector.broadcast %cst_259 : f32 to vector<8x128xf32>
    %285 = arith.maximumf %283, %284 : vector<8x128xf32>
    %c0_260 = arith.constant 0 : index
    %c1_261 = arith.constant 1 : index
    %c0_262 = arith.constant 0 : index
    %c0_263 = arith.constant 0 : index
    %286 = vector.load %arg10[%c0_260, %c1_261, %c0_262, %c0_263] : memref<1x4x8x128xf32, #tpu.memory_space<vmem>>, vector<1x1x8x128xf32>
    %287 = vector.shape_cast %286 : vector<1x1x8x128xf32> to vector<8x128xf32>
    %288 = vector.shape_cast %285 : vector<8x128xf32> to vector<1x1x8x128xf32>
    tpu.vector_store %arg10[%c0_260, %c1_261, %c0_262, %c0_263], %288 {strides = array<i32>} : memref<1x4x8x128xf32, #tpu.memory_space<vmem>>, vector<1x1x8x128xf32>,
    %c0_264 = arith.constant 0 : index
    %c0_265 = arith.constant 0 : index
    %c0_266 = arith.constant 0 : index
    %289 = vector.load %arg8[%c0_264, %c0_265, %c0_266] : memref<27x8x16xbf16, #tpu.memory_space<vmem>>, vector<1x8x16xbf16>
    %290 = vector.shape_cast %289 : vector<1x8x16xbf16> to vector<8x16xbf16>
    %cst_267 = arith.constant dense<0.000000e+00> : vector<8x128xf32>
    %291 = tpu.matmul %290, %5, %cst_267 {dimension_numbers = #tpu.dot_dimension_numbers<[1], [0], [0], [1], [0, 0, 1, 1], [], []>} : vector<8x16xbf16>, vector<16x128xbf16>, vector<8x128xf32> -> vector<8x128xf32>
    %c1_268 = arith.constant 1 : index
    %c0_269 = arith.constant 0 : index
    %c0_270 = arith.constant 0 : index
    %292 = vector.load %arg8[%c1_268, %c0_269, %c0_270] : memref<27x8x16xbf16, #tpu.memory_space<vmem>>, vector<1x8x16xbf16>
    %293 = vector.shape_cast %292 : vector<1x8x16xbf16> to vector<8x16xbf16>
    %cst_271 = arith.constant dense<0.000000e+00> : vector<8x128xf32>
    %294 = tpu.matmul %293, %5, %cst_271 {dimension_numbers = #tpu.dot_dimension_numbers<[1], [0], [0], [1], [0, 0, 1, 1], [], []>} : vector<8x16xbf16>, vector<16x128xbf16>, vector<8x128xf32> -> vector<8x128xf32>
    %c127_i32_272 = arith.constant 127 : i32
    %295 = tpu.dynamic_rotate %294 by %c127_i32_272 dim 1 : vector<8x128xf32>, i32 -> vector<8x128xf32>
    %296 = arith.addf %291, %295 : vector<8x128xf32>
    %c2_273 = arith.constant 2 : index
    %c0_274 = arith.constant 0 : index
    %c0_275 = arith.constant 0 : index
    %297 = vector.load %arg8[%c2_273, %c0_274, %c0_275] : memref<27x8x16xbf16, #tpu.memory_space<vmem>>, vector<1x8x16xbf16>
    %298 = vector.shape_cast %297 : vector<1x8x16xbf16> to vector<8x16xbf16>
    %cst_276 = arith.constant dense<0.000000e+00> : vector<8x128xf32>
    %299 = tpu.matmul %298, %5, %cst_276 {dimension_numbers = #tpu.dot_dimension_numbers<[1], [0], [0], [1], [0, 0, 1, 1], [], []>} : vector<8x16xbf16>, vector<16x128xbf16>, vector<8x128xf32> -> vector<8x128xf32>
    %c126_i32_277 = arith.constant 126 : i32
    %300 = tpu.dynamic_rotate %299 by %c126_i32_277 dim 1 : vector<8x128xf32>, i32 -> vector<8x128xf32>
    %301 = arith.addf %296, %300 : vector<8x128xf32>
    %c3_278 = arith.constant 3 : index
    %c0_279 = arith.constant 0 : index
    %c0_280 = arith.constant 0 : index
    %302 = vector.load %arg8[%c3_278, %c0_279, %c0_280] : memref<27x8x16xbf16, #tpu.memory_space<vmem>>, vector<1x8x16xbf16>
    %303 = vector.shape_cast %302 : vector<1x8x16xbf16> to vector<8x16xbf16>
    %cst_281 = arith.constant dense<0.000000e+00> : vector<8x128xf32>
    %304 = tpu.matmul %303, %5, %cst_281 {dimension_numbers = #tpu.dot_dimension_numbers<[1], [0], [0], [1], [0, 0, 1, 1], [], []>} : vector<8x16xbf16>, vector<16x128xbf16>, vector<8x128xf32> -> vector<8x128xf32>
    %c120_i32_282 = arith.constant 120 : i32
    %305 = tpu.dynamic_rotate %304 by %c120_i32_282 dim 1 : vector<8x128xf32>, i32 -> vector<8x128xf32>
    %306 = arith.addf %301, %305 : vector<8x128xf32>
    %c4_283 = arith.constant 4 : index
    %c0_284 = arith.constant 0 : index
    %c0_285 = arith.constant 0 : index
    %307 = vector.load %arg8[%c4_283, %c0_284, %c0_285] : memref<27x8x16xbf16, #tpu.memory_space<vmem>>, vector<1x8x16xbf16>
    %308 = vector.shape_cast %307 : vector<1x8x16xbf16> to vector<8x16xbf16>
    %cst_286 = arith.constant dense<0.000000e+00> : vector<8x128xf32>
    %309 = tpu.matmul %308, %5, %cst_286 {dimension_numbers = #tpu.dot_dimension_numbers<[1], [0], [0], [1], [0, 0, 1, 1], [], []>} : vector<8x16xbf16>, vector<16x128xbf16>, vector<8x128xf32> -> vector<8x128xf32>
    %c119_i32_287 = arith.constant 119 : i32
    %310 = tpu.dynamic_rotate %309 by %c119_i32_287 dim 1 : vector<8x128xf32>, i32 -> vector<8x128xf32>
    %311 = arith.addf %306, %310 : vector<8x128xf32>
    %c5_288 = arith.constant 5 : index
    %c0_289 = arith.constant 0 : index
    %c0_290 = arith.constant 0 : index
    %312 = vector.load %arg8[%c5_288, %c0_289, %c0_290] : memref<27x8x16xbf16, #tpu.memory_space<vmem>>, vector<1x8x16xbf16>
    %313 = vector.shape_cast %312 : vector<1x8x16xbf16> to vector<8x16xbf16>
    %cst_291 = arith.constant dense<0.000000e+00> : vector<8x128xf32>
    %314 = tpu.matmul %313, %5, %cst_291 {dimension_numbers = #tpu.dot_dimension_numbers<[1], [0], [0], [1], [0, 0, 1, 1], [], []>} : vector<8x16xbf16>, vector<16x128xbf16>, vector<8x128xf32> -> vector<8x128xf32>
    %c118_i32_292 = arith.constant 118 : i32
    %315 = tpu.dynamic_rotate %314 by %c118_i32_292 dim 1 : vector<8x128xf32>, i32 -> vector<8x128xf32>
    %316 = arith.addf %311, %315 : vector<8x128xf32>
    %c6_293 = arith.constant 6 : index
    %c0_294 = arith.constant 0 : index
    %c0_295 = arith.constant 0 : index
    %317 = vector.load %arg8[%c6_293, %c0_294, %c0_295] : memref<27x8x16xbf16, #tpu.memory_space<vmem>>, vector<1x8x16xbf16>
    %318 = vector.shape_cast %317 : vector<1x8x16xbf16> to vector<8x16xbf16>
    %cst_296 = arith.constant dense<0.000000e+00> : vector<8x128xf32>
    %319 = tpu.matmul %318, %5, %cst_296 {dimension_numbers = #tpu.dot_dimension_numbers<[1], [0], [0], [1], [0, 0, 1, 1], [], []>} : vector<8x16xbf16>, vector<16x128xbf16>, vector<8x128xf32> -> vector<8x128xf32>
    %c112_i32_297 = arith.constant 112 : i32
    %320 = tpu.dynamic_rotate %319 by %c112_i32_297 dim 1 : vector<8x128xf32>, i32 -> vector<8x128xf32>
    %321 = arith.addf %316, %320 : vector<8x128xf32>
    %c7_298 = arith.constant 7 : index
    %c0_299 = arith.constant 0 : index
    %c0_300 = arith.constant 0 : index
    %322 = vector.load %arg8[%c7_298, %c0_299, %c0_300] : memref<27x8x16xbf16, #tpu.memory_space<vmem>>, vector<1x8x16xbf16>
    %323 = vector.shape_cast %322 : vector<1x8x16xbf16> to vector<8x16xbf16>
    %cst_301 = arith.constant dense<0.000000e+00> : vector<8x128xf32>
    %324 = tpu.matmul %323, %5, %cst_301 {dimension_numbers = #tpu.dot_dimension_numbers<[1], [0], [0], [1], [0, 0, 1, 1], [], []>} : vector<8x16xbf16>, vector<16x128xbf16>, vector<8x128xf32> -> vector<8x128xf32>
    %c111_i32_302 = arith.constant 111 : i32
    %325 = tpu.dynamic_rotate %324 by %c111_i32_302 dim 1 : vector<8x128xf32>, i32 -> vector<8x128xf32>
    %326 = arith.addf %321, %325 : vector<8x128xf32>
    %c8_303 = arith.constant 8 : index
    %c0_304 = arith.constant 0 : index
    %c0_305 = arith.constant 0 : index
    %327 = vector.load %arg8[%c8_303, %c0_304, %c0_305] : memref<27x8x16xbf16, #tpu.memory_space<vmem>>, vector<1x8x16xbf16>
    %328 = vector.shape_cast %327 : vector<1x8x16xbf16> to vector<8x16xbf16>
    %cst_306 = arith.constant dense<0.000000e+00> : vector<8x128xf32>
    %329 = tpu.matmul %328, %5, %cst_306 {dimension_numbers = #tpu.dot_dimension_numbers<[1], [0], [0], [1], [0, 0, 1, 1], [], []>} : vector<8x16xbf16>, vector<16x128xbf16>, vector<8x128xf32> -> vector<8x128xf32>
    %c110_i32_307 = arith.constant 110 : i32
    %330 = tpu.dynamic_rotate %329 by %c110_i32_307 dim 1 : vector<8x128xf32>, i32 -> vector<8x128xf32>
    %331 = arith.addf %326, %330 : vector<8x128xf32>
    %c9_308 = arith.constant 9 : index
    %c0_309 = arith.constant 0 : index
    %c0_310 = arith.constant 0 : index
    %332 = vector.load %arg8[%c9_308, %c0_309, %c0_310] : memref<27x8x16xbf16, #tpu.memory_space<vmem>>, vector<1x8x16xbf16>
    %333 = vector.shape_cast %332 : vector<1x8x16xbf16> to vector<8x16xbf16>
    %cst_311 = arith.constant dense<0.000000e+00> : vector<8x128xf32>
    %334 = tpu.matmul %333, %7, %cst_311 {dimension_numbers = #tpu.dot_dimension_numbers<[1], [0], [0], [1], [0, 0, 1, 1], [], []>} : vector<8x16xbf16>, vector<16x128xbf16>, vector<8x128xf32> -> vector<8x128xf32>
    %335 = arith.addf %331, %334 : vector<8x128xf32>
    %c10_312 = arith.constant 10 : index
    %c0_313 = arith.constant 0 : index
    %c0_314 = arith.constant 0 : index
    %336 = vector.load %arg8[%c10_312, %c0_313, %c0_314] : memref<27x8x16xbf16, #tpu.memory_space<vmem>>, vector<1x8x16xbf16>
    %337 = vector.shape_cast %336 : vector<1x8x16xbf16> to vector<8x16xbf16>
    %cst_315 = arith.constant dense<0.000000e+00> : vector<8x128xf32>
    %338 = tpu.matmul %337, %7, %cst_315 {dimension_numbers = #tpu.dot_dimension_numbers<[1], [0], [0], [1], [0, 0, 1, 1], [], []>} : vector<8x16xbf16>, vector<16x128xbf16>, vector<8x128xf32> -> vector<8x128xf32>
    %c127_i32_316 = arith.constant 127 : i32
    %339 = tpu.dynamic_rotate %338 by %c127_i32_316 dim 1 : vector<8x128xf32>, i32 -> vector<8x128xf32>
    %340 = arith.addf %335, %339 : vector<8x128xf32>
    %c11_317 = arith.constant 11 : index
    %c0_318 = arith.constant 0 : index
    %c0_319 = arith.constant 0 : index
    %341 = vector.load %arg8[%c11_317, %c0_318, %c0_319] : memref<27x8x16xbf16, #tpu.memory_space<vmem>>, vector<1x8x16xbf16>
    %342 = vector.shape_cast %341 : vector<1x8x16xbf16> to vector<8x16xbf16>
    %cst_320 = arith.constant dense<0.000000e+00> : vector<8x128xf32>
    %343 = tpu.matmul %342, %7, %cst_320 {dimension_numbers = #tpu.dot_dimension_numbers<[1], [0], [0], [1], [0, 0, 1, 1], [], []>} : vector<8x16xbf16>, vector<16x128xbf16>, vector<8x128xf32> -> vector<8x128xf32>
    %c126_i32_321 = arith.constant 126 : i32
    %344 = tpu.dynamic_rotate %343 by %c126_i32_321 dim 1 : vector<8x128xf32>, i32 -> vector<8x128xf32>
    %345 = arith.addf %340, %344 : vector<8x128xf32>
    %c12_322 = arith.constant 12 : index
    %c0_323 = arith.constant 0 : index
    %c0_324 = arith.constant 0 : index
    %346 = vector.load %arg8[%c12_322, %c0_323, %c0_324] : memref<27x8x16xbf16, #tpu.memory_space<vmem>>, vector<1x8x16xbf16>
    %347 = vector.shape_cast %346 : vector<1x8x16xbf16> to vector<8x16xbf16>
    %cst_325 = arith.constant dense<0.000000e+00> : vector<8x128xf32>
    %348 = tpu.matmul %347, %7, %cst_325 {dimension_numbers = #tpu.dot_dimension_numbers<[1], [0], [0], [1], [0, 0, 1, 1], [], []>} : vector<8x16xbf16>, vector<16x128xbf16>, vector<8x128xf32> -> vector<8x128xf32>
    %c120_i32_326 = arith.constant 120 : i32
    %349 = tpu.dynamic_rotate %348 by %c120_i32_326 dim 1 : vector<8x128xf32>, i32 -> vector<8x128xf32>
    %350 = arith.addf %345, %349 : vector<8x128xf32>
    %c13_327 = arith.constant 13 : index
    %c0_328 = arith.constant 0 : index
    %c0_329 = arith.constant 0 : index
    %351 = vector.load %arg8[%c13_327, %c0_328, %c0_329] : memref<27x8x16xbf16, #tpu.memory_space<vmem>>, vector<1x8x16xbf16>
    %352 = vector.shape_cast %351 : vector<1x8x16xbf16> to vector<8x16xbf16>
    %cst_330 = arith.constant dense<0.000000e+00> : vector<8x128xf32>
    %353 = tpu.matmul %352, %7, %cst_330 {dimension_numbers = #tpu.dot_dimension_numbers<[1], [0], [0], [1], [0, 0, 1, 1], [], []>} : vector<8x16xbf16>, vector<16x128xbf16>, vector<8x128xf32> -> vector<8x128xf32>
    %c119_i32_331 = arith.constant 119 : i32
    %354 = tpu.dynamic_rotate %353 by %c119_i32_331 dim 1 : vector<8x128xf32>, i32 -> vector<8x128xf32>
    %355 = arith.addf %350, %354 : vector<8x128xf32>
    %c14_332 = arith.constant 14 : index
    %c0_333 = arith.constant 0 : index
    %c0_334 = arith.constant 0 : index
    %356 = vector.load %arg8[%c14_332, %c0_333, %c0_334] : memref<27x8x16xbf16, #tpu.memory_space<vmem>>, vector<1x8x16xbf16>
    %357 = vector.shape_cast %356 : vector<1x8x16xbf16> to vector<8x16xbf16>
    %cst_335 = arith.constant dense<0.000000e+00> : vector<8x128xf32>
    %358 = tpu.matmul %357, %7, %cst_335 {dimension_numbers = #tpu.dot_dimension_numbers<[1], [0], [0], [1], [0, 0, 1, 1], [], []>} : vector<8x16xbf16>, vector<16x128xbf16>, vector<8x128xf32> -> vector<8x128xf32>
    %c118_i32_336 = arith.constant 118 : i32
    %359 = tpu.dynamic_rotate %358 by %c118_i32_336 dim 1 : vector<8x128xf32>, i32 -> vector<8x128xf32>
    %360 = arith.addf %355, %359 : vector<8x128xf32>
    %c15_337 = arith.constant 15 : index
    %c0_338 = arith.constant 0 : index
    %c0_339 = arith.constant 0 : index
    %361 = vector.load %arg8[%c15_337, %c0_338, %c0_339] : memref<27x8x16xbf16, #tpu.memory_space<vmem>>, vector<1x8x16xbf16>
    %362 = vector.shape_cast %361 : vector<1x8x16xbf16> to vector<8x16xbf16>
    %cst_340 = arith.constant dense<0.000000e+00> : vector<8x128xf32>
    %363 = tpu.matmul %362, %7, %cst_340 {dimension_numbers = #tpu.dot_dimension_numbers<[1], [0], [0], [1], [0, 0, 1, 1], [], []>} : vector<8x16xbf16>, vector<16x128xbf16>, vector<8x128xf32> -> vector<8x128xf32>
    %c112_i32_341 = arith.constant 112 : i32
    %364 = tpu.dynamic_rotate %363 by %c112_i32_341 dim 1 : vector<8x128xf32>, i32 -> vector<8x128xf32>
    %365 = arith.addf %360, %364 : vector<8x128xf32>
    %c16_342 = arith.constant 16 : index
    %c0_343 = arith.constant 0 : index
    %c0_344 = arith.constant 0 : index
    %366 = vector.load %arg8[%c16_342, %c0_343, %c0_344] : memref<27x8x16xbf16, #tpu.memory_space<vmem>>, vector<1x8x16xbf16>
    %367 = vector.shape_cast %366 : vector<1x8x16xbf16> to vector<8x16xbf16>
    %cst_345 = arith.constant dense<0.000000e+00> : vector<8x128xf32>
    %368 = tpu.matmul %367, %7, %cst_345 {dimension_numbers = #tpu.dot_dimension_numbers<[1], [0], [0], [1], [0, 0, 1, 1], [], []>} : vector<8x16xbf16>, vector<16x128xbf16>, vector<8x128xf32> -> vector<8x128xf32>
    %c111_i32_346 = arith.constant 111 : i32
    %369 = tpu.dynamic_rotate %368 by %c111_i32_346 dim 1 : vector<8x128xf32>, i32 -> vector<8x128xf32>
    %370 = arith.addf %365, %369 : vector<8x128xf32>
    %c17_347 = arith.constant 17 : index
    %c0_348 = arith.constant 0 : index
    %c0_349 = arith.constant 0 : index
    %371 = vector.load %arg8[%c17_347, %c0_348, %c0_349] : memref<27x8x16xbf16, #tpu.memory_space<vmem>>, vector<1x8x16xbf16>
    %372 = vector.shape_cast %371 : vector<1x8x16xbf16> to vector<8x16xbf16>
    %cst_350 = arith.constant dense<0.000000e+00> : vector<8x128xf32>
    %373 = tpu.matmul %372, %7, %cst_350 {dimension_numbers = #tpu.dot_dimension_numbers<[1], [0], [0], [1], [0, 0, 1, 1], [], []>} : vector<8x16xbf16>, vector<16x128xbf16>, vector<8x128xf32> -> vector<8x128xf32>
    %c110_i32_351 = arith.constant 110 : i32
    %374 = tpu.dynamic_rotate %373 by %c110_i32_351 dim 1 : vector<8x128xf32>, i32 -> vector<8x128xf32>
    %375 = arith.addf %370, %374 : vector<8x128xf32>
    %c18_352 = arith.constant 18 : index
    %c0_353 = arith.constant 0 : index
    %c0_354 = arith.constant 0 : index
    %376 = vector.load %arg8[%c18_352, %c0_353, %c0_354] : memref<27x8x16xbf16, #tpu.memory_space<vmem>>, vector<1x8x16xbf16>
    %377 = vector.shape_cast %376 : vector<1x8x16xbf16> to vector<8x16xbf16>
    %cst_355 = arith.constant dense<0.000000e+00> : vector<8x128xf32>
    %378 = tpu.matmul %377, %9, %cst_355 {dimension_numbers = #tpu.dot_dimension_numbers<[1], [0], [0], [1], [0, 0, 1, 1], [], []>} : vector<8x16xbf16>, vector<16x128xbf16>, vector<8x128xf32> -> vector<8x128xf32>
    %379 = arith.addf %375, %378 : vector<8x128xf32>
    %c19_356 = arith.constant 19 : index
    %c0_357 = arith.constant 0 : index
    %c0_358 = arith.constant 0 : index
    %380 = vector.load %arg8[%c19_356, %c0_357, %c0_358] : memref<27x8x16xbf16, #tpu.memory_space<vmem>>, vector<1x8x16xbf16>
    %381 = vector.shape_cast %380 : vector<1x8x16xbf16> to vector<8x16xbf16>
    %cst_359 = arith.constant dense<0.000000e+00> : vector<8x128xf32>
    %382 = tpu.matmul %381, %9, %cst_359 {dimension_numbers = #tpu.dot_dimension_numbers<[1], [0], [0], [1], [0, 0, 1, 1], [], []>} : vector<8x16xbf16>, vector<16x128xbf16>, vector<8x128xf32> -> vector<8x128xf32>
    %c127_i32_360 = arith.constant 127 : i32
    %383 = tpu.dynamic_rotate %382 by %c127_i32_360 dim 1 : vector<8x128xf32>, i32 -> vector<8x128xf32>
    %384 = arith.addf %379, %383 : vector<8x128xf32>
    %c20_361 = arith.constant 20 : index
    %c0_362 = arith.constant 0 : index
    %c0_363 = arith.constant 0 : index
    %385 = vector.load %arg8[%c20_361, %c0_362, %c0_363] : memref<27x8x16xbf16, #tpu.memory_space<vmem>>, vector<1x8x16xbf16>
    %386 = vector.shape_cast %385 : vector<1x8x16xbf16> to vector<8x16xbf16>
    %cst_364 = arith.constant dense<0.000000e+00> : vector<8x128xf32>
    %387 = tpu.matmul %386, %9, %cst_364 {dimension_numbers = #tpu.dot_dimension_numbers<[1], [0], [0], [1], [0, 0, 1, 1], [], []>} : vector<8x16xbf16>, vector<16x128xbf16>, vector<8x128xf32> -> vector<8x128xf32>
    %c126_i32_365 = arith.constant 126 : i32
    %388 = tpu.dynamic_rotate %387 by %c126_i32_365 dim 1 : vector<8x128xf32>, i32 -> vector<8x128xf32>
    %389 = arith.addf %384, %388 : vector<8x128xf32>
    %c21_366 = arith.constant 21 : index
    %c0_367 = arith.constant 0 : index
    %c0_368 = arith.constant 0 : index
    %390 = vector.load %arg8[%c21_366, %c0_367, %c0_368] : memref<27x8x16xbf16, #tpu.memory_space<vmem>>, vector<1x8x16xbf16>
    %391 = vector.shape_cast %390 : vector<1x8x16xbf16> to vector<8x16xbf16>
    %cst_369 = arith.constant dense<0.000000e+00> : vector<8x128xf32>
    %392 = tpu.matmul %391, %9, %cst_369 {dimension_numbers = #tpu.dot_dimension_numbers<[1], [0], [0], [1], [0, 0, 1, 1], [], []>} : vector<8x16xbf16>, vector<16x128xbf16>, vector<8x128xf32> -> vector<8x128xf32>
    %c120_i32_370 = arith.constant 120 : i32
    %393 = tpu.dynamic_rotate %392 by %c120_i32_370 dim 1 : vector<8x128xf32>, i32 -> vector<8x128xf32>
    %394 = arith.addf %389, %393 : vector<8x128xf32>
    %c22_371 = arith.constant 22 : index
    %c0_372 = arith.constant 0 : index
    %c0_373 = arith.constant 0 : index
    %395 = vector.load %arg8[%c22_371, %c0_372, %c0_373] : memref<27x8x16xbf16, #tpu.memory_space<vmem>>, vector<1x8x16xbf16>
    %396 = vector.shape_cast %395 : vector<1x8x16xbf16> to vector<8x16xbf16>
    %cst_374 = arith.constant dense<0.000000e+00> : vector<8x128xf32>
    %397 = tpu.matmul %396, %9, %cst_374 {dimension_numbers = #tpu.dot_dimension_numbers<[1], [0], [0], [1], [0, 0, 1, 1], [], []>} : vector<8x16xbf16>, vector<16x128xbf16>, vector<8x128xf32> -> vector<8x128xf32>
    %c119_i32_375 = arith.constant 119 : i32
    %398 = tpu.dynamic_rotate %397 by %c119_i32_375 dim 1 : vector<8x128xf32>, i32 -> vector<8x128xf32>
    %399 = arith.addf %394, %398 : vector<8x128xf32>
    %c23_376 = arith.constant 23 : index
    %c0_377 = arith.constant 0 : index
    %c0_378 = arith.constant 0 : index
    %400 = vector.load %arg8[%c23_376, %c0_377, %c0_378] : memref<27x8x16xbf16, #tpu.memory_space<vmem>>, vector<1x8x16xbf16>
    %401 = vector.shape_cast %400 : vector<1x8x16xbf16> to vector<8x16xbf16>
    %cst_379 = arith.constant dense<0.000000e+00> : vector<8x128xf32>
    %402 = tpu.matmul %401, %9, %cst_379 {dimension_numbers = #tpu.dot_dimension_numbers<[1], [0], [0], [1], [0, 0, 1, 1], [], []>} : vector<8x16xbf16>, vector<16x128xbf16>, vector<8x128xf32> -> vector<8x128xf32>
    %c118_i32_380 = arith.constant 118 : i32
    %403 = tpu.dynamic_rotate %402 by %c118_i32_380 dim 1 : vector<8x128xf32>, i32 -> vector<8x128xf32>
    %404 = arith.addf %399, %403 : vector<8x128xf32>
    %c24_381 = arith.constant 24 : index
    %c0_382 = arith.constant 0 : index
    %c0_383 = arith.constant 0 : index
    %405 = vector.load %arg8[%c24_381, %c0_382, %c0_383] : memref<27x8x16xbf16, #tpu.memory_space<vmem>>, vector<1x8x16xbf16>
    %406 = vector.shape_cast %405 : vector<1x8x16xbf16> to vector<8x16xbf16>
    %cst_384 = arith.constant dense<0.000000e+00> : vector<8x128xf32>
    %407 = tpu.matmul %406, %9, %cst_384 {dimension_numbers = #tpu.dot_dimension_numbers<[1], [0], [0], [1], [0, 0, 1, 1], [], []>} : vector<8x16xbf16>, vector<16x128xbf16>, vector<8x128xf32> -> vector<8x128xf32>
    %c112_i32_385 = arith.constant 112 : i32
    %408 = tpu.dynamic_rotate %407 by %c112_i32_385 dim 1 : vector<8x128xf32>, i32 -> vector<8x128xf32>
    %409 = arith.addf %404, %408 : vector<8x128xf32>
    %c25_386 = arith.constant 25 : index
    %c0_387 = arith.constant 0 : index
    %c0_388 = arith.constant 0 : index
    %410 = vector.load %arg8[%c25_386, %c0_387, %c0_388] : memref<27x8x16xbf16, #tpu.memory_space<vmem>>, vector<1x8x16xbf16>
    %411 = vector.shape_cast %410 : vector<1x8x16xbf16> to vector<8x16xbf16>
    %cst_389 = arith.constant dense<0.000000e+00> : vector<8x128xf32>
    %412 = tpu.matmul %411, %9, %cst_389 {dimension_numbers = #tpu.dot_dimension_numbers<[1], [0], [0], [1], [0, 0, 1, 1], [], []>} : vector<8x16xbf16>, vector<16x128xbf16>, vector<8x128xf32> -> vector<8x128xf32>
    %c111_i32_390 = arith.constant 111 : i32
    %413 = tpu.dynamic_rotate %412 by %c111_i32_390 dim 1 : vector<8x128xf32>, i32 -> vector<8x128xf32>
    %414 = arith.addf %409, %413 : vector<8x128xf32>
    %c26_391 = arith.constant 26 : index
    %c0_392 = arith.constant 0 : index
    %c0_393 = arith.constant 0 : index
    %415 = vector.load %arg8[%c26_391, %c0_392, %c0_393] : memref<27x8x16xbf16, #tpu.memory_space<vmem>>, vector<1x8x16xbf16>
    %416 = vector.shape_cast %415 : vector<1x8x16xbf16> to vector<8x16xbf16>
    %cst_394 = arith.constant dense<0.000000e+00> : vector<8x128xf32>
    %417 = tpu.matmul %416, %9, %cst_394 {dimension_numbers = #tpu.dot_dimension_numbers<[1], [0], [0], [1], [0, 0, 1, 1], [], []>} : vector<8x16xbf16>, vector<16x128xbf16>, vector<8x128xf32> -> vector<8x128xf32>
    %c110_i32_395 = arith.constant 110 : i32
    %418 = tpu.dynamic_rotate %417 by %c110_i32_395 dim 1 : vector<8x128xf32>, i32 -> vector<8x128xf32>
    %419 = arith.addf %414, %418 : vector<8x128xf32>
    %420 = vector.broadcast %12 : vector<8x1xf32> to vector<8x128xf32>
    %421 = arith.addf %419, %420 : vector<8x128xf32>
    %cst_396 = arith.constant 0.000000e+00 : f32
    %422 = vector.broadcast %cst_396 : f32 to vector<8x128xf32>
    %423 = arith.maximumf %421, %422 : vector<8x128xf32>
    %c0_397 = arith.constant 0 : index
    %c2_398 = arith.constant 2 : index
    %c0_399 = arith.constant 0 : index
    %c0_400 = arith.constant 0 : index
    %424 = vector.load %arg10[%c0_397, %c2_398, %c0_399, %c0_400] : memref<1x4x8x128xf32, #tpu.memory_space<vmem>>, vector<1x1x8x128xf32>
    %425 = vector.shape_cast %424 : vector<1x1x8x128xf32> to vector<8x128xf32>
    %426 = vector.shape_cast %423 : vector<8x128xf32> to vector<1x1x8x128xf32>
    tpu.vector_store %arg10[%c0_397, %c2_398, %c0_399, %c0_400], %426 {strides = array<i32>} : memref<1x4x8x128xf32, #tpu.memory_space<vmem>>, vector<1x1x8x128xf32>,
    %c0_401 = arith.constant 0 : index
    %c0_402 = arith.constant 0 : index
    %c0_403 = arith.constant 0 : index
    %427 = vector.load %arg8[%c0_401, %c0_402, %c0_403] : memref<27x8x16xbf16, #tpu.memory_space<vmem>>, vector<1x8x16xbf16>
    %428 = vector.shape_cast %427 : vector<1x8x16xbf16> to vector<8x16xbf16>
    %cst_404 = arith.constant dense<0.000000e+00> : vector<8x128xf32>
    %429 = tpu.matmul %428, %7, %cst_404 {dimension_numbers = #tpu.dot_dimension_numbers<[1], [0], [0], [1], [0, 0, 1, 1], [], []>} : vector<8x16xbf16>, vector<16x128xbf16>, vector<8x128xf32> -> vector<8x128xf32>
    %c1_405 = arith.constant 1 : index
    %c0_406 = arith.constant 0 : index
    %c0_407 = arith.constant 0 : index
    %430 = vector.load %arg8[%c1_405, %c0_406, %c0_407] : memref<27x8x16xbf16, #tpu.memory_space<vmem>>, vector<1x8x16xbf16>
    %431 = vector.shape_cast %430 : vector<1x8x16xbf16> to vector<8x16xbf16>
    %cst_408 = arith.constant dense<0.000000e+00> : vector<8x128xf32>
    %432 = tpu.matmul %431, %7, %cst_408 {dimension_numbers = #tpu.dot_dimension_numbers<[1], [0], [0], [1], [0, 0, 1, 1], [], []>} : vector<8x16xbf16>, vector<16x128xbf16>, vector<8x128xf32> -> vector<8x128xf32>
    %c127_i32_409 = arith.constant 127 : i32
    %433 = tpu.dynamic_rotate %432 by %c127_i32_409 dim 1 : vector<8x128xf32>, i32 -> vector<8x128xf32>
    %434 = arith.addf %429, %433 : vector<8x128xf32>
    %c2_410 = arith.constant 2 : index
    %c0_411 = arith.constant 0 : index
    %c0_412 = arith.constant 0 : index
    %435 = vector.load %arg8[%c2_410, %c0_411, %c0_412] : memref<27x8x16xbf16, #tpu.memory_space<vmem>>, vector<1x8x16xbf16>
    %436 = vector.shape_cast %435 : vector<1x8x16xbf16> to vector<8x16xbf16>
    %cst_413 = arith.constant dense<0.000000e+00> : vector<8x128xf32>
    %437 = tpu.matmul %436, %7, %cst_413 {dimension_numbers = #tpu.dot_dimension_numbers<[1], [0], [0], [1], [0, 0, 1, 1], [], []>} : vector<8x16xbf16>, vector<16x128xbf16>, vector<8x128xf32> -> vector<8x128xf32>
    %c126_i32_414 = arith.constant 126 : i32
    %438 = tpu.dynamic_rotate %437 by %c126_i32_414 dim 1 : vector<8x128xf32>, i32 -> vector<8x128xf32>
    %439 = arith.addf %434, %438 : vector<8x128xf32>
    %c3_415 = arith.constant 3 : index
    %c0_416 = arith.constant 0 : index
    %c0_417 = arith.constant 0 : index
    %440 = vector.load %arg8[%c3_415, %c0_416, %c0_417] : memref<27x8x16xbf16, #tpu.memory_space<vmem>>, vector<1x8x16xbf16>
    %441 = vector.shape_cast %440 : vector<1x8x16xbf16> to vector<8x16xbf16>
    %cst_418 = arith.constant dense<0.000000e+00> : vector<8x128xf32>
    %442 = tpu.matmul %441, %7, %cst_418 {dimension_numbers = #tpu.dot_dimension_numbers<[1], [0], [0], [1], [0, 0, 1, 1], [], []>} : vector<8x16xbf16>, vector<16x128xbf16>, vector<8x128xf32> -> vector<8x128xf32>
    %c120_i32_419 = arith.constant 120 : i32
    %443 = tpu.dynamic_rotate %442 by %c120_i32_419 dim 1 : vector<8x128xf32>, i32 -> vector<8x128xf32>
    %444 = arith.addf %439, %443 : vector<8x128xf32>
    %c4_420 = arith.constant 4 : index
    %c0_421 = arith.constant 0 : index
    %c0_422 = arith.constant 0 : index
    %445 = vector.load %arg8[%c4_420, %c0_421, %c0_422] : memref<27x8x16xbf16, #tpu.memory_space<vmem>>, vector<1x8x16xbf16>
    %446 = vector.shape_cast %445 : vector<1x8x16xbf16> to vector<8x16xbf16>
    %cst_423 = arith.constant dense<0.000000e+00> : vector<8x128xf32>
    %447 = tpu.matmul %446, %7, %cst_423 {dimension_numbers = #tpu.dot_dimension_numbers<[1], [0], [0], [1], [0, 0, 1, 1], [], []>} : vector<8x16xbf16>, vector<16x128xbf16>, vector<8x128xf32> -> vector<8x128xf32>
    %c119_i32_424 = arith.constant 119 : i32
    %448 = tpu.dynamic_rotate %447 by %c119_i32_424 dim 1 : vector<8x128xf32>, i32 -> vector<8x128xf32>
    %449 = arith.addf %444, %448 : vector<8x128xf32>
    %c5_425 = arith.constant 5 : index
    %c0_426 = arith.constant 0 : index
    %c0_427 = arith.constant 0 : index
    %450 = vector.load %arg8[%c5_425, %c0_426, %c0_427] : memref<27x8x16xbf16, #tpu.memory_space<vmem>>, vector<1x8x16xbf16>
    %451 = vector.shape_cast %450 : vector<1x8x16xbf16> to vector<8x16xbf16>
    %cst_428 = arith.constant dense<0.000000e+00> : vector<8x128xf32>
    %452 = tpu.matmul %451, %7, %cst_428 {dimension_numbers = #tpu.dot_dimension_numbers<[1], [0], [0], [1], [0, 0, 1, 1], [], []>} : vector<8x16xbf16>, vector<16x128xbf16>, vector<8x128xf32> -> vector<8x128xf32>
    %c118_i32_429 = arith.constant 118 : i32
    %453 = tpu.dynamic_rotate %452 by %c118_i32_429 dim 1 : vector<8x128xf32>, i32 -> vector<8x128xf32>
    %454 = arith.addf %449, %453 : vector<8x128xf32>
    %c6_430 = arith.constant 6 : index
    %c0_431 = arith.constant 0 : index
    %c0_432 = arith.constant 0 : index
    %455 = vector.load %arg8[%c6_430, %c0_431, %c0_432] : memref<27x8x16xbf16, #tpu.memory_space<vmem>>, vector<1x8x16xbf16>
    %456 = vector.shape_cast %455 : vector<1x8x16xbf16> to vector<8x16xbf16>
    %cst_433 = arith.constant dense<0.000000e+00> : vector<8x128xf32>
    %457 = tpu.matmul %456, %7, %cst_433 {dimension_numbers = #tpu.dot_dimension_numbers<[1], [0], [0], [1], [0, 0, 1, 1], [], []>} : vector<8x16xbf16>, vector<16x128xbf16>, vector<8x128xf32> -> vector<8x128xf32>
    %c112_i32_434 = arith.constant 112 : i32
    %458 = tpu.dynamic_rotate %457 by %c112_i32_434 dim 1 : vector<8x128xf32>, i32 -> vector<8x128xf32>
    %459 = arith.addf %454, %458 : vector<8x128xf32>
    %c7_435 = arith.constant 7 : index
    %c0_436 = arith.constant 0 : index
    %c0_437 = arith.constant 0 : index
    %460 = vector.load %arg8[%c7_435, %c0_436, %c0_437] : memref<27x8x16xbf16, #tpu.memory_space<vmem>>, vector<1x8x16xbf16>
    %461 = vector.shape_cast %460 : vector<1x8x16xbf16> to vector<8x16xbf16>
    %cst_438 = arith.constant dense<0.000000e+00> : vector<8x128xf32>
    %462 = tpu.matmul %461, %7, %cst_438 {dimension_numbers = #tpu.dot_dimension_numbers<[1], [0], [0], [1], [0, 0, 1, 1], [], []>} : vector<8x16xbf16>, vector<16x128xbf16>, vector<8x128xf32> -> vector<8x128xf32>
    %c111_i32_439 = arith.constant 111 : i32
    %463 = tpu.dynamic_rotate %462 by %c111_i32_439 dim 1 : vector<8x128xf32>, i32 -> vector<8x128xf32>
    %464 = arith.addf %459, %463 : vector<8x128xf32>
    %c8_440 = arith.constant 8 : index
    %c0_441 = arith.constant 0 : index
    %c0_442 = arith.constant 0 : index
    %465 = vector.load %arg8[%c8_440, %c0_441, %c0_442] : memref<27x8x16xbf16, #tpu.memory_space<vmem>>, vector<1x8x16xbf16>
    %466 = vector.shape_cast %465 : vector<1x8x16xbf16> to vector<8x16xbf16>
    %cst_443 = arith.constant dense<0.000000e+00> : vector<8x128xf32>
    %467 = tpu.matmul %466, %7, %cst_443 {dimension_numbers = #tpu.dot_dimension_numbers<[1], [0], [0], [1], [0, 0, 1, 1], [], []>} : vector<8x16xbf16>, vector<16x128xbf16>, vector<8x128xf32> -> vector<8x128xf32>
    %c110_i32_444 = arith.constant 110 : i32
    %468 = tpu.dynamic_rotate %467 by %c110_i32_444 dim 1 : vector<8x128xf32>, i32 -> vector<8x128xf32>
    %469 = arith.addf %464, %468 : vector<8x128xf32>
    %c9_445 = arith.constant 9 : index
    %c0_446 = arith.constant 0 : index
    %c0_447 = arith.constant 0 : index
    %470 = vector.load %arg8[%c9_445, %c0_446, %c0_447] : memref<27x8x16xbf16, #tpu.memory_space<vmem>>, vector<1x8x16xbf16>
    %471 = vector.shape_cast %470 : vector<1x8x16xbf16> to vector<8x16xbf16>
    %cst_448 = arith.constant dense<0.000000e+00> : vector<8x128xf32>
    %472 = tpu.matmul %471, %9, %cst_448 {dimension_numbers = #tpu.dot_dimension_numbers<[1], [0], [0], [1], [0, 0, 1, 1], [], []>} : vector<8x16xbf16>, vector<16x128xbf16>, vector<8x128xf32> -> vector<8x128xf32>
    %473 = arith.addf %469, %472 : vector<8x128xf32>
    %c10_449 = arith.constant 10 : index
    %c0_450 = arith.constant 0 : index
    %c0_451 = arith.constant 0 : index
    %474 = vector.load %arg8[%c10_449, %c0_450, %c0_451] : memref<27x8x16xbf16, #tpu.memory_space<vmem>>, vector<1x8x16xbf16>
    %475 = vector.shape_cast %474 : vector<1x8x16xbf16> to vector<8x16xbf16>
    %cst_452 = arith.constant dense<0.000000e+00> : vector<8x128xf32>
    %476 = tpu.matmul %475, %9, %cst_452 {dimension_numbers = #tpu.dot_dimension_numbers<[1], [0], [0], [1], [0, 0, 1, 1], [], []>} : vector<8x16xbf16>, vector<16x128xbf16>, vector<8x128xf32> -> vector<8x128xf32>
    %c127_i32_453 = arith.constant 127 : i32
    %477 = tpu.dynamic_rotate %476 by %c127_i32_453 dim 1 : vector<8x128xf32>, i32 -> vector<8x128xf32>
    %478 = arith.addf %473, %477 : vector<8x128xf32>
    %c11_454 = arith.constant 11 : index
    %c0_455 = arith.constant 0 : index
    %c0_456 = arith.constant 0 : index
    %479 = vector.load %arg8[%c11_454, %c0_455, %c0_456] : memref<27x8x16xbf16, #tpu.memory_space<vmem>>, vector<1x8x16xbf16>
    %480 = vector.shape_cast %479 : vector<1x8x16xbf16> to vector<8x16xbf16>
    %cst_457 = arith.constant dense<0.000000e+00> : vector<8x128xf32>
    %481 = tpu.matmul %480, %9, %cst_457 {dimension_numbers = #tpu.dot_dimension_numbers<[1], [0], [0], [1], [0, 0, 1, 1], [], []>} : vector<8x16xbf16>, vector<16x128xbf16>, vector<8x128xf32> -> vector<8x128xf32>
    %c126_i32_458 = arith.constant 126 : i32
    %482 = tpu.dynamic_rotate %481 by %c126_i32_458 dim 1 : vector<8x128xf32>, i32 -> vector<8x128xf32>
    %483 = arith.addf %478, %482 : vector<8x128xf32>
    %c12_459 = arith.constant 12 : index
    %c0_460 = arith.constant 0 : index
    %c0_461 = arith.constant 0 : index
    %484 = vector.load %arg8[%c12_459, %c0_460, %c0_461] : memref<27x8x16xbf16, #tpu.memory_space<vmem>>, vector<1x8x16xbf16>
    %485 = vector.shape_cast %484 : vector<1x8x16xbf16> to vector<8x16xbf16>
    %cst_462 = arith.constant dense<0.000000e+00> : vector<8x128xf32>
    %486 = tpu.matmul %485, %9, %cst_462 {dimension_numbers = #tpu.dot_dimension_numbers<[1], [0], [0], [1], [0, 0, 1, 1], [], []>} : vector<8x16xbf16>, vector<16x128xbf16>, vector<8x128xf32> -> vector<8x128xf32>
    %c120_i32_463 = arith.constant 120 : i32
    %487 = tpu.dynamic_rotate %486 by %c120_i32_463 dim 1 : vector<8x128xf32>, i32 -> vector<8x128xf32>
    %488 = arith.addf %483, %487 : vector<8x128xf32>
    %c13_464 = arith.constant 13 : index
    %c0_465 = arith.constant 0 : index
    %c0_466 = arith.constant 0 : index
    %489 = vector.load %arg8[%c13_464, %c0_465, %c0_466] : memref<27x8x16xbf16, #tpu.memory_space<vmem>>, vector<1x8x16xbf16>
    %490 = vector.shape_cast %489 : vector<1x8x16xbf16> to vector<8x16xbf16>
    %cst_467 = arith.constant dense<0.000000e+00> : vector<8x128xf32>
    %491 = tpu.matmul %490, %9, %cst_467 {dimension_numbers = #tpu.dot_dimension_numbers<[1], [0], [0], [1], [0, 0, 1, 1], [], []>} : vector<8x16xbf16>, vector<16x128xbf16>, vector<8x128xf32> -> vector<8x128xf32>
    %c119_i32_468 = arith.constant 119 : i32
    %492 = tpu.dynamic_rotate %491 by %c119_i32_468 dim 1 : vector<8x128xf32>, i32 -> vector<8x128xf32>
    %493 = arith.addf %488, %492 : vector<8x128xf32>
    %c14_469 = arith.constant 14 : index
    %c0_470 = arith.constant 0 : index
    %c0_471 = arith.constant 0 : index
    %494 = vector.load %arg8[%c14_469, %c0_470, %c0_471] : memref<27x8x16xbf16, #tpu.memory_space<vmem>>, vector<1x8x16xbf16>
    %495 = vector.shape_cast %494 : vector<1x8x16xbf16> to vector<8x16xbf16>
    %cst_472 = arith.constant dense<0.000000e+00> : vector<8x128xf32>
    %496 = tpu.matmul %495, %9, %cst_472 {dimension_numbers = #tpu.dot_dimension_numbers<[1], [0], [0], [1], [0, 0, 1, 1], [], []>} : vector<8x16xbf16>, vector<16x128xbf16>, vector<8x128xf32> -> vector<8x128xf32>
    %c118_i32_473 = arith.constant 118 : i32
    %497 = tpu.dynamic_rotate %496 by %c118_i32_473 dim 1 : vector<8x128xf32>, i32 -> vector<8x128xf32>
    %498 = arith.addf %493, %497 : vector<8x128xf32>
    %c15_474 = arith.constant 15 : index
    %c0_475 = arith.constant 0 : index
    %c0_476 = arith.constant 0 : index
    %499 = vector.load %arg8[%c15_474, %c0_475, %c0_476] : memref<27x8x16xbf16, #tpu.memory_space<vmem>>, vector<1x8x16xbf16>
    %500 = vector.shape_cast %499 : vector<1x8x16xbf16> to vector<8x16xbf16>
    %cst_477 = arith.constant dense<0.000000e+00> : vector<8x128xf32>
    %501 = tpu.matmul %500, %9, %cst_477 {dimension_numbers = #tpu.dot_dimension_numbers<[1], [0], [0], [1], [0, 0, 1, 1], [], []>} : vector<8x16xbf16>, vector<16x128xbf16>, vector<8x128xf32> -> vector<8x128xf32>
    %c112_i32_478 = arith.constant 112 : i32
    %502 = tpu.dynamic_rotate %501 by %c112_i32_478 dim 1 : vector<8x128xf32>, i32 -> vector<8x128xf32>
    %503 = arith.addf %498, %502 : vector<8x128xf32>
    %c16_479 = arith.constant 16 : index
    %c0_480 = arith.constant 0 : index
    %c0_481 = arith.constant 0 : index
    %504 = vector.load %arg8[%c16_479, %c0_480, %c0_481] : memref<27x8x16xbf16, #tpu.memory_space<vmem>>, vector<1x8x16xbf16>
    %505 = vector.shape_cast %504 : vector<1x8x16xbf16> to vector<8x16xbf16>
    %cst_482 = arith.constant dense<0.000000e+00> : vector<8x128xf32>
    %506 = tpu.matmul %505, %9, %cst_482 {dimension_numbers = #tpu.dot_dimension_numbers<[1], [0], [0], [1], [0, 0, 1, 1], [], []>} : vector<8x16xbf16>, vector<16x128xbf16>, vector<8x128xf32> -> vector<8x128xf32>
    %c111_i32_483 = arith.constant 111 : i32
    %507 = tpu.dynamic_rotate %506 by %c111_i32_483 dim 1 : vector<8x128xf32>, i32 -> vector<8x128xf32>
    %508 = arith.addf %503, %507 : vector<8x128xf32>
    %c17_484 = arith.constant 17 : index
    %c0_485 = arith.constant 0 : index
    %c0_486 = arith.constant 0 : index
    %509 = vector.load %arg8[%c17_484, %c0_485, %c0_486] : memref<27x8x16xbf16, #tpu.memory_space<vmem>>, vector<1x8x16xbf16>
    %510 = vector.shape_cast %509 : vector<1x8x16xbf16> to vector<8x16xbf16>
    %cst_487 = arith.constant dense<0.000000e+00> : vector<8x128xf32>
    %511 = tpu.matmul %510, %9, %cst_487 {dimension_numbers = #tpu.dot_dimension_numbers<[1], [0], [0], [1], [0, 0, 1, 1], [], []>} : vector<8x16xbf16>, vector<16x128xbf16>, vector<8x128xf32> -> vector<8x128xf32>
    %c110_i32_488 = arith.constant 110 : i32
    %512 = tpu.dynamic_rotate %511 by %c110_i32_488 dim 1 : vector<8x128xf32>, i32 -> vector<8x128xf32>
    %513 = arith.addf %508, %512 : vector<8x128xf32>
    %c18_489 = arith.constant 18 : index
    %c0_490 = arith.constant 0 : index
    %c0_491 = arith.constant 0 : index
    %514 = vector.load %arg8[%c18_489, %c0_490, %c0_491] : memref<27x8x16xbf16, #tpu.memory_space<vmem>>, vector<1x8x16xbf16>
    %515 = vector.shape_cast %514 : vector<1x8x16xbf16> to vector<8x16xbf16>
    %cst_492 = arith.constant dense<0.000000e+00> : vector<8x128xf32>
    %516 = tpu.matmul %515, %11, %cst_492 {dimension_numbers = #tpu.dot_dimension_numbers<[1], [0], [0], [1], [0, 0, 1, 1], [], []>} : vector<8x16xbf16>, vector<16x128xbf16>, vector<8x128xf32> -> vector<8x128xf32>
    %517 = arith.addf %513, %516 : vector<8x128xf32>
    %c19_493 = arith.constant 19 : index
    %c0_494 = arith.constant 0 : index
    %c0_495 = arith.constant 0 : index
    %518 = vector.load %arg8[%c19_493, %c0_494, %c0_495] : memref<27x8x16xbf16, #tpu.memory_space<vmem>>, vector<1x8x16xbf16>
    %519 = vector.shape_cast %518 : vector<1x8x16xbf16> to vector<8x16xbf16>
    %cst_496 = arith.constant dense<0.000000e+00> : vector<8x128xf32>
    %520 = tpu.matmul %519, %11, %cst_496 {dimension_numbers = #tpu.dot_dimension_numbers<[1], [0], [0], [1], [0, 0, 1, 1], [], []>} : vector<8x16xbf16>, vector<16x128xbf16>, vector<8x128xf32> -> vector<8x128xf32>
    %c127_i32_497 = arith.constant 127 : i32
    %521 = tpu.dynamic_rotate %520 by %c127_i32_497 dim 1 : vector<8x128xf32>, i32 -> vector<8x128xf32>
    %522 = arith.addf %517, %521 : vector<8x128xf32>
    %c20_498 = arith.constant 20 : index
    %c0_499 = arith.constant 0 : index
    %c0_500 = arith.constant 0 : index
    %523 = vector.load %arg8[%c20_498, %c0_499, %c0_500] : memref<27x8x16xbf16, #tpu.memory_space<vmem>>, vector<1x8x16xbf16>
    %524 = vector.shape_cast %523 : vector<1x8x16xbf16> to vector<8x16xbf16>
    %cst_501 = arith.constant dense<0.000000e+00> : vector<8x128xf32>
    %525 = tpu.matmul %524, %11, %cst_501 {dimension_numbers = #tpu.dot_dimension_numbers<[1], [0], [0], [1], [0, 0, 1, 1], [], []>} : vector<8x16xbf16>, vector<16x128xbf16>, vector<8x128xf32> -> vector<8x128xf32>
    %c126_i32_502 = arith.constant 126 : i32
    %526 = tpu.dynamic_rotate %525 by %c126_i32_502 dim 1 : vector<8x128xf32>, i32 -> vector<8x128xf32>
    %527 = arith.addf %522, %526 : vector<8x128xf32>
    %c21_503 = arith.constant 21 : index
    %c0_504 = arith.constant 0 : index
    %c0_505 = arith.constant 0 : index
    %528 = vector.load %arg8[%c21_503, %c0_504, %c0_505] : memref<27x8x16xbf16, #tpu.memory_space<vmem>>, vector<1x8x16xbf16>
    %529 = vector.shape_cast %528 : vector<1x8x16xbf16> to vector<8x16xbf16>
    %cst_506 = arith.constant dense<0.000000e+00> : vector<8x128xf32>
    %530 = tpu.matmul %529, %11, %cst_506 {dimension_numbers = #tpu.dot_dimension_numbers<[1], [0], [0], [1], [0, 0, 1, 1], [], []>} : vector<8x16xbf16>, vector<16x128xbf16>, vector<8x128xf32> -> vector<8x128xf32>
    %c120_i32_507 = arith.constant 120 : i32
    %531 = tpu.dynamic_rotate %530 by %c120_i32_507 dim 1 : vector<8x128xf32>, i32 -> vector<8x128xf32>
    %532 = arith.addf %527, %531 : vector<8x128xf32>
    %c22_508 = arith.constant 22 : index
    %c0_509 = arith.constant 0 : index
    %c0_510 = arith.constant 0 : index
    %533 = vector.load %arg8[%c22_508, %c0_509, %c0_510] : memref<27x8x16xbf16, #tpu.memory_space<vmem>>, vector<1x8x16xbf16>
    %534 = vector.shape_cast %533 : vector<1x8x16xbf16> to vector<8x16xbf16>
    %cst_511 = arith.constant dense<0.000000e+00> : vector<8x128xf32>
    %535 = tpu.matmul %534, %11, %cst_511 {dimension_numbers = #tpu.dot_dimension_numbers<[1], [0], [0], [1], [0, 0, 1, 1], [], []>} : vector<8x16xbf16>, vector<16x128xbf16>, vector<8x128xf32> -> vector<8x128xf32>
    %c119_i32_512 = arith.constant 119 : i32
    %536 = tpu.dynamic_rotate %535 by %c119_i32_512 dim 1 : vector<8x128xf32>, i32 -> vector<8x128xf32>
    %537 = arith.addf %532, %536 : vector<8x128xf32>
    %c23_513 = arith.constant 23 : index
    %c0_514 = arith.constant 0 : index
    %c0_515 = arith.constant 0 : index
    %538 = vector.load %arg8[%c23_513, %c0_514, %c0_515] : memref<27x8x16xbf16, #tpu.memory_space<vmem>>, vector<1x8x16xbf16>
    %539 = vector.shape_cast %538 : vector<1x8x16xbf16> to vector<8x16xbf16>
    %cst_516 = arith.constant dense<0.000000e+00> : vector<8x128xf32>
    %540 = tpu.matmul %539, %11, %cst_516 {dimension_numbers = #tpu.dot_dimension_numbers<[1], [0], [0], [1], [0, 0, 1, 1], [], []>} : vector<8x16xbf16>, vector<16x128xbf16>, vector<8x128xf32> -> vector<8x128xf32>
    %c118_i32_517 = arith.constant 118 : i32
    %541 = tpu.dynamic_rotate %540 by %c118_i32_517 dim 1 : vector<8x128xf32>, i32 -> vector<8x128xf32>
    %542 = arith.addf %537, %541 : vector<8x128xf32>
    %c24_518 = arith.constant 24 : index
    %c0_519 = arith.constant 0 : index
    %c0_520 = arith.constant 0 : index
    %543 = vector.load %arg8[%c24_518, %c0_519, %c0_520] : memref<27x8x16xbf16, #tpu.memory_space<vmem>>, vector<1x8x16xbf16>
    %544 = vector.shape_cast %543 : vector<1x8x16xbf16> to vector<8x16xbf16>
    %cst_521 = arith.constant dense<0.000000e+00> : vector<8x128xf32>
    %545 = tpu.matmul %544, %11, %cst_521 {dimension_numbers = #tpu.dot_dimension_numbers<[1], [0], [0], [1], [0, 0, 1, 1], [], []>} : vector<8x16xbf16>, vector<16x128xbf16>, vector<8x128xf32> -> vector<8x128xf32>
    %c112_i32_522 = arith.constant 112 : i32
    %546 = tpu.dynamic_rotate %545 by %c112_i32_522 dim 1 : vector<8x128xf32>, i32 -> vector<8x128xf32>
    %547 = arith.addf %542, %546 : vector<8x128xf32>
    %c25_523 = arith.constant 25 : index
    %c0_524 = arith.constant 0 : index
    %c0_525 = arith.constant 0 : index
    %548 = vector.load %arg8[%c25_523, %c0_524, %c0_525] : memref<27x8x16xbf16, #tpu.memory_space<vmem>>, vector<1x8x16xbf16>
    %549 = vector.shape_cast %548 : vector<1x8x16xbf16> to vector<8x16xbf16>
    %cst_526 = arith.constant dense<0.000000e+00> : vector<8x128xf32>
    %550 = tpu.matmul %549, %11, %cst_526 {dimension_numbers = #tpu.dot_dimension_numbers<[1], [0], [0], [1], [0, 0, 1, 1], [], []>} : vector<8x16xbf16>, vector<16x128xbf16>, vector<8x128xf32> -> vector<8x128xf32>
    %c111_i32_527 = arith.constant 111 : i32
    %551 = tpu.dynamic_rotate %550 by %c111_i32_527 dim 1 : vector<8x128xf32>, i32 -> vector<8x128xf32>
    %552 = arith.addf %547, %551 : vector<8x128xf32>
    %c26_528 = arith.constant 26 : index
    %c0_529 = arith.constant 0 : index
    %c0_530 = arith.constant 0 : index
    %553 = vector.load %arg8[%c26_528, %c0_529, %c0_530] : memref<27x8x16xbf16, #tpu.memory_space<vmem>>, vector<1x8x16xbf16>
    %554 = vector.shape_cast %553 : vector<1x8x16xbf16> to vector<8x16xbf16>
    %cst_531 = arith.constant dense<0.000000e+00> : vector<8x128xf32>
    %555 = tpu.matmul %554, %11, %cst_531 {dimension_numbers = #tpu.dot_dimension_numbers<[1], [0], [0], [1], [0, 0, 1, 1], [], []>} : vector<8x16xbf16>, vector<16x128xbf16>, vector<8x128xf32> -> vector<8x128xf32>
    %c110_i32_532 = arith.constant 110 : i32
    %556 = tpu.dynamic_rotate %555 by %c110_i32_532 dim 1 : vector<8x128xf32>, i32 -> vector<8x128xf32>
    %557 = arith.addf %552, %556 : vector<8x128xf32>
    %558 = vector.broadcast %12 : vector<8x1xf32> to vector<8x128xf32>
    %559 = arith.addf %557, %558 : vector<8x128xf32>
    %cst_533 = arith.constant 0.000000e+00 : f32
    %560 = vector.broadcast %cst_533 : f32 to vector<8x128xf32>
    %561 = arith.maximumf %559, %560 : vector<8x128xf32>
    %c0_534 = arith.constant 0 : index
    %c3_535 = arith.constant 3 : index
    %c0_536 = arith.constant 0 : index
    %c0_537 = arith.constant 0 : index
    %562 = vector.load %arg10[%c0_534, %c3_535, %c0_536, %c0_537] : memref<1x4x8x128xf32, #tpu.memory_space<vmem>>, vector<1x1x8x128xf32>
    %563 = vector.shape_cast %562 : vector<1x1x8x128xf32> to vector<8x128xf32>
    %564 = vector.shape_cast %561 : vector<8x128xf32> to vector<1x1x8x128xf32>
    tpu.vector_store %arg10[%c0_534, %c3_535, %c0_536, %c0_537], %564 {strides = array<i32>} : memref<1x4x8x128xf32, #tpu.memory_space<vmem>>, vector<1x1x8x128xf32>,
    return
  }
  func.func @transform_0(%arg0: i32, %arg1: i32) -> (i32, i32, i32, i32) {
    %c4_i32 = arith.constant 4 : i32
    %0 = arith.muli %arg1, %c4_i32 : i32
    %c0_i32 = arith.constant 0 : i32
    %1 = arith.addi %0, %c0_i32 : i32
    %c0_i32_0 = arith.constant 0 : i32
    %c0_i32_1 = arith.constant 0 : i32
    %c0_i32_2 = arith.constant 0 : i32
    return %arg0, %1, %c0_i32_0, %c0_i32_1 : i32, i32, i32, i32
  }
  func.func @transform_1(%arg0: i32, %arg1: i32) -> (i32, i32, i32, i32) {
    %c4_i32 = arith.constant 4 : i32
    %0 = arith.muli %arg1, %c4_i32 : i32
    %c1_i32 = arith.constant 1 : i32
    %1 = arith.addi %0, %c1_i32 : i32
    %c0_i32 = arith.constant 0 : i32
    %c0_i32_0 = arith.constant 0 : i32
    %c0_i32_1 = arith.constant 0 : i32
    return %arg0, %1, %c0_i32, %c0_i32_0 : i32, i32, i32, i32
  }
  func.func @transform_2(%arg0: i32, %arg1: i32) -> (i32, i32, i32, i32) {
    %c4_i32 = arith.constant 4 : i32
    %0 = arith.muli %arg1, %c4_i32 : i32
    %c2_i32 = arith.constant 2 : i32
    %1 = arith.addi %0, %c2_i32 : i32
    %c0_i32 = arith.constant 0 : i32
    %c0_i32_0 = arith.constant 0 : i32
    %c0_i32_1 = arith.constant 0 : i32
    return %arg0, %1, %c0_i32, %c0_i32_0 : i32, i32, i32, i32
  }
  func.func @transform_3(%arg0: i32, %arg1: i32) -> (i32, i32, i32, i32) {
    %c4_i32 = arith.constant 4 : i32
    %0 = arith.muli %arg1, %c4_i32 : i32
    %c3_i32 = arith.constant 3 : i32
    %1 = arith.addi %0, %c3_i32 : i32
    %c0_i32 = arith.constant 0 : i32
    %c0_i32_0 = arith.constant 0 : i32
    %c0_i32_1 = arith.constant 0 : i32
    return %arg0, %1, %c0_i32, %c0_i32_0 : i32, i32, i32, i32
  }
  func.func @transform_4(%arg0: i32, %arg1: i32) -> (i32, i32, i32, i32) {
    %c4_i32 = arith.constant 4 : i32
    %0 = arith.muli %arg1, %c4_i32 : i32
    %c4_i32_0 = arith.constant 4 : i32
    %1 = arith.addi %0, %c4_i32_0 : i32
    %c0_i32 = arith.constant 0 : i32
    %c0_i32_1 = arith.constant 0 : i32
    %c0_i32_2 = arith.constant 0 : i32
    return %arg0, %1, %c0_i32, %c0_i32_1 : i32, i32, i32, i32
  }
  func.func @transform_5(%arg0: i32, %arg1: i32) -> (i32, i32, i32, i32) {
    %c4_i32 = arith.constant 4 : i32
    %0 = arith.muli %arg1, %c4_i32 : i32
    %c5_i32 = arith.constant 5 : i32
    %1 = arith.addi %0, %c5_i32 : i32
    %c0_i32 = arith.constant 0 : i32
    %c0_i32_0 = arith.constant 0 : i32
    %c0_i32_1 = arith.constant 0 : i32
    return %arg0, %1, %c0_i32, %c0_i32_0 : i32, i32, i32, i32
  }
  func.func @transform_6(%arg0: i32, %arg1: i32) -> (i32, i32, i32) {
    %c0_i32 = arith.constant 0 : i32
    %c0_i32_0 = arith.constant 0 : i32
    %c0_i32_1 = arith.constant 0 : i32
    %c0_i32_2 = arith.constant 0 : i32
    return %c0_i32, %c0_i32_0, %c0_i32_1 : i32, i32, i32
  }
  func.func @transform_7(%arg0: i32, %arg1: i32) -> (i32, i32) {
    %c0_i32 = arith.constant 0 : i32
    %c0_i32_0 = arith.constant 0 : i32
    %c0_i32_1 = arith.constant 0 : i32
    return %c0_i32, %c0_i32_0 : i32, i32
  }
  func.func @transform_8(%arg0: i32, %arg1: i32) -> (i32, i32, i32, i32) {
    %c0_i32 = arith.constant 0 : i32
    %c0_i32_0 = arith.constant 0 : i32
    %c0_i32_1 = arith.constant 0 : i32
    return %arg0, %arg1, %c0_i32, %c0_i32_0 : i32, i32, i32, i32
  }
}

</mosaic_0001>

<llo_original>
// kernel: down_conv_forward.1
$region0: #{down_conv_forward.1}
  #allocation0 [shape = 'u32[]', space=smem, size = 0x4, offset = 0x4, fixed_abs, tag = 'smem constant byte address 0x4 - core index']
  #allocation1 [shape = 'u32[72,128]{1,0:T(1,128)}', space=vmem, size = 0x9000, scoped, tag = 'internal scratch']
  %s0 = inlined_call_operand.vmem [shape: bf16[2,10,16,128], index: 0, kind: input, shape index: {}, may-alias: {0,1,2,3,4,5}]
  %s1 = inlined_call_operand.vmem [shape: bf16[2,10,16,128], index: 1, kind: input, shape index: {}, may-alias: {0,1,2,3,4,5}]
  %s2 = inlined_call_operand.vmem [shape: bf16[2,10,16,128], index: 2, kind: input, shape index: {}, may-alias: {0,1,2,3,4,5}]
  %s3 = inlined_call_operand.vmem [shape: bf16[2,10,16,128], index: 3, kind: input, shape index: {}, may-alias: {0,1,2,3,4,5}]
  %s4 = inlined_call_operand.vmem [shape: bf16[2,10,16,128], index: 4, kind: input, shape index: {}, may-alias: {0,1,2,3,4,5}]
  %s5 = inlined_call_operand.vmem [shape: bf16[2,10,16,128], index: 5, kind: input, shape index: {}, may-alias: {0,1,2,3,4,5}]
  %s6 = inlined_call_operand.vmem [shape: bf16[27,8,16], index: 6, kind: input, shape index: {}]
  %s7 = inlined_call_operand.vmem [shape: f32[8,1], index: 7, kind: input, shape index: {}]
  %s8 = inlined_call_operand.vmem [shape: f32[2,8,8,128], index: 8, kind: output, shape index: {}]
  %s9 = sld [smem:[#allocation0]]
  $region65: #{down_conv_forward.1} parent=0
    _
  %s11 = ssub.s32 1, %s9
  %s12 = scalar_select 0, %s11, %s9
  loop: start=0, step=1, limit=6
  $region2: #{down_conv_forward.1} parent=0 // loop_pre_header
    _
  $region3: #{down_conv_forward.1} parent=0 // loop_header
    %s14 = sphi 0, %s18
    %p15 = scmp.ge.s32.totalorder %s14, 6
    %s21 = sphi 0, %s33
    %s22 = sphi 0, %s29
    %s23 = sphi 0, %s21
    %s24 = sphi 0, %s22
    %s25 = sphi 0, %s23
    %s26 = sphi 0, %s24
    %s40 = sphi 0, %s42
    %s43 = sphi 0, %s40
    %s44 = sphi 0, %s43
    %s60 = sphi 0, %s44
    %s72 = sphi 0, %s74
    %s75 = sphi 0, %s72
    %s76 = sphi 0, %s75
    %s92 = sphi 0, %s76
    %s104 = sphi 0, %s106
    %s107 = sphi 0, %s104
    %s108 = sphi 0, %s107
    %s124 = sphi 0, %s108
    %s136 = sphi 0, %s138
    %s139 = sphi 0, %s136
    %s140 = sphi 0, %s139
    %s156 = sphi 0, %s140
    %s168 = sphi 0, %s170
    %s171 = sphi 0, %s168
    %s172 = sphi 0, %s171
    %s188 = sphi 0, %s172
    %s200 = sphi 0, %s202
    %s203 = sphi 0, %s200
    %s204 = sphi 0, %s203
    %s220 = sphi 0, %s204
    %s224 = sphi 0, %s224
    %s226 = sphi 0, %s224
    %s227 = sphi 0, %s226
    %s241 = sphi 0, %s227
    %s245 = sphi 0, %s245
    %s247 = sphi 0, %s245
    %s248 = sphi 0, %s247
    %s262 = sphi 0, %s248
    %s270 = sphi 0, %s272
    %s273 = sphi 0, %s270
    %s274 = sphi 0, %s273
    %s290 = sphi 0, %s274
  $region4: #{down_conv_forward.1} parent=0 // loop_header_branch
    %17 = sbr.rel (%p15) target = $region8
  $region5: #{down_conv_forward.1} parent=0 // loop_body
    %s19 = ssub.s32 %s14, 1
    %s20 = ssub.s32 %s14, 2
    %s27 = sadd.s32 1, %s22
    %p28 = scmp.ge.s32.totalorder %s27, 2
    %s29 = scalar_select %p28, 0, %s27
    %s30 = sadd.s32 1, %s21
    %s31 = scalar_select %p28, %s30, %s21
    %p32 = scmp.ge.s32.totalorder %s31, 2
    %s33 = scalar_select %p32, 0, %s31
    %s34 = smul.u32 %s22, 4
    %s35 = smul.u32 %s29, 4
    %s36 = ssub.s32 %s21, %s33
    %s37 = ssub.s32 %s34, %s35
    %s38 = sor.u32 %s36, %s37
    %p39 = scmp.eq.s32.totalorder %s38, 0
    %s41 = sadd.s32 %s40, 1
    %s42 = scalar_select %p39, %s40, %s41
    %p45 = pneg %p39
    %p46 = scmp.eq.s32.totalorder %s14, 3
    %p47 = por %p45, %p46
    %p48 = scmp.ne.s32.totalorder %s40, %s43
    %p49 = scmp.eq.s32.totalorder %s14, 0
    %p50 = por %p48, %p49
    %p51 = scmp.ne.s32.totalorder %s40, %s43
    %p52 = scmp.eq.s32.totalorder %s19, 3
    %p53 = por %p51, %p52
    %p54 = scmp.ne.s32.totalorder %s43, %s44
    %p55 = scmp.eq.s32.totalorder %s19, 0
    %p56 = por %p54, %p55
    %p57 = scmp.ne.s32.totalorder %s43, %s44
    %p58 = scmp.eq.s32.totalorder %s20, 3
    %p59 = por %p57, %p58
    %p61 = scmp.ne.s32.totalorder %s44, %s60
    %p62 = scmp.eq.s32.totalorder %s20, 0
    %p63 = por %p61, %p62
    %s64 = smul.u32 %s22, 4
    %s65 = sadd.s32 %s64, 1
    %s66 = smul.u32 %s29, 4
    %s67 = sadd.s32 %s66, 1
    %s68 = ssub.s32 %s21, %s33
    %s69 = ssub.s32 %s65, %s67
    %s70 = sor.u32 %s68, %s69
    %p71 = scmp.eq.s32.totalorder %s70, 0
    %s73 = sadd.s32 %s72, 1
    %s74 = scalar_select %p71, %s72, %s73
    %p77 = pneg %p71
    %p78 = scmp.eq.s32.totalorder %s14, 3
    %p79 = por %p77, %p78
    %p80 = scmp.ne.s32.totalorder %s72, %s75
    %p81 = scmp.eq.s32.totalorder %s14, 0
    %p82 = por %p80, %p81
    %p83 = scmp.ne.s32.totalorder %s72, %s75
    %p84 = scmp.eq.s32.totalorder %s19, 3
    %p85 = por %p83, %p84
    %p86 = scmp.ne.s32.totalorder %s75, %s76
    %p87 = scmp.eq.s32.totalorder %s19, 0
    %p88 = por %p86, %p87
    %p89 = scmp.ne.s32.totalorder %s75, %s76
    %p90 = scmp.eq.s32.totalorder %s20, 3
    %p91 = por %p89, %p90
    %p93 = scmp.ne.s32.totalorder %s76, %s92
    %p94 = scmp.eq.s32.totalorder %s20, 0
    %p95 = por %p93, %p94
    %s96 = smul.u32 %s22, 4
    %s97 = sadd.s32 %s96, 2
    %s98 = smul.u32 %s29, 4
    %s99 = sadd.s32 %s98, 2
    %s100 = ssub.s32 %s21, %s33
    %s101 = ssub.s32 %s97, %s99
    %s102 = sor.u32 %s100, %s101
    %p103 = scmp.eq.s32.totalorder %s102, 0
    %s105 = sadd.s32 %s104, 1
    %s106 = scalar_select %p103, %s104, %s105
    %p109 = pneg %p103
    %p110 = scmp.eq.s32.totalorder %s14, 3
    %p111 = por %p109, %p110
    %p112 = scmp.ne.s32.totalorder %s104, %s107
    %p113 = scmp.eq.s32.totalorder %s14, 0
    %p114 = por %p112, %p113
    %p115 = scmp.ne.s32.totalorder %s104, %s107
    %p116 = scmp.eq.s32.totalorder %s19, 3
    %p117 = por %p115, %p116
    %p118 = scmp.ne.s32.totalorder %s107, %s108
    %p119 = scmp.eq.s32.totalorder %s19, 0
    %p120 = por %p118, %p119
    %p121 = scmp.ne.s32.totalorder %s107, %s108
    %p122 = scmp.eq.s32.totalorder %s20, 3
    %p123 = por %p121, %p122
    %p125 = scmp.ne.s32.totalorder %s108, %s124
    %p126 = scmp.eq.s32.totalorder %s20, 0
    %p127 = por %p125, %p126
    %s128 = smul.u32 %s22, 4
    %s129 = sadd.s32 %s128, 3
    %s130 = smul.u32 %s29, 4
    %s131 = sadd.s32 %s130, 3
    %s132 = ssub.s32 %s21, %s33
    %s133 = ssub.s32 %s129, %s131
    %s134 = sor.u32 %s132, %s133
    %p135 = scmp.eq.s32.totalorder %s134, 0
    %s137 = sadd.s32 %s136, 1
    %s138 = scalar_select %p135, %s136, %s137
    %p141 = pneg %p135
    %p142 = scmp.eq.s32.totalorder %s14, 3
    %p143 = por %p141, %p142
    %p144 = scmp.ne.s32.totalorder %s136, %s139
    %p145 = scmp.eq.s32.totalorder %s14, 0
    %p146 = por %p144, %p145
    %p147 = scmp.ne.s32.totalorder %s136, %s139
    %p148 = scmp.eq.s32.totalorder %s19, 3
    %p149 = por %p147, %p148
    %p150 = scmp.ne.s32.totalorder %s139, %s140
    %p151 = scmp.eq.s32.totalorder %s19, 0
    %p152 = por %p150, %p151
    %p153 = scmp.ne.s32.totalorder %s139, %s140
    %p154 = scmp.eq.s32.totalorder %s20, 3
    %p155 = por %p153, %p154
    %p157 = scmp.ne.s32.totalorder %s140, %s156
    %p158 = scmp.eq.s32.totalorder %s20, 0
    %p159 = por %p157, %p158
    %s160 = smul.u32 %s22, 4
    %s161 = sadd.s32 %s160, 4
    %s162 = smul.u32 %s29, 4
    %s163 = sadd.s32 %s162, 4
    %s164 = ssub.s32 %s21, %s33
    %s165 = ssub.s32 %s161, %s163
    %s166 = sor.u32 %s164, %s165
    %p167 = scmp.eq.s32.totalorder %s166, 0
    %s169 = sadd.s32 %s168, 1
    %s170 = scalar_select %p167, %s168, %s169
    %p173 = pneg %p167
    %p174 = scmp.eq.s32.totalorder %s14, 3
    %p175 = por %p173, %p174
    %p176 = scmp.ne.s32.totalorder %s168, %s171
    %p177 = scmp.eq.s32.totalorder %s14, 0
    %p178 = por %p176, %p177
    %p179 = scmp.ne.s32.totalorder %s168, %s171
    %p180 = scmp.eq.s32.totalorder %s19, 3
    %p181 = por %p179, %p180
    %p182 = scmp.ne.s32.totalorder %s171, %s172
    %p183 = scmp.eq.s32.totalorder %s19, 0
    %p184 = por %p182, %p183
    %p185 = scmp.ne.s32.totalorder %s171, %s172
    %p186 = scmp.eq.s32.totalorder %s20, 3
    %p187 = por %p185, %p186
    %p189 = scmp.ne.s32.totalorder %s172, %s188
    %p190 = scmp.eq.s32.totalorder %s20, 0
    %p191 = por %p189, %p190
    %s192 = smul.u32 %s22, 4
    %s193 = sadd.s32 %s192, 5
    %s194 = smul.u32 %s29, 4
    %s195 = sadd.s32 %s194, 5
    %s196 = ssub.s32 %s21, %s33
    %s197 = ssub.s32 %s193, %s195
    %s198 = sor.u32 %s196, %s197
    %p199 = scmp.eq.s32.totalorder %s198, 0
    %s201 = sadd.s32 %s200, 1
    %s202 = scalar_select %p199, %s200, %s201
    %p205 = pneg %p199
    %p206 = scmp.eq.s32.totalorder %s14, 3
    %p207 = por %p205, %p206
    %p208 = scmp.ne.s32.totalorder %s200, %s203
    %p209 = scmp.eq.s32.totalorder %s14, 0
    %p210 = por %p208, %p209
    %p211 = scmp.ne.s32.totalorder %s200, %s203
    %p212 = scmp.eq.s32.totalorder %s19, 3
    %p213 = por %p211, %p212
    %p214 = scmp.ne.s32.totalorder %s203, %s204
    %p215 = scmp.eq.s32.totalorder %s19, 0
    %p216 = por %p214, %p215
    %p217 = scmp.ne.s32.totalorder %s203, %s204
    %p218 = scmp.eq.s32.totalorder %s20, 3
    %p219 = por %p217, %p218
    %p221 = scmp.ne.s32.totalorder %s204, %s220
    %p222 = scmp.eq.s32.totalorder %s20, 0
    %p223 = por %p221, %p222
    %s225 = sadd.s32 %s224, 1
    %p228 = scmp.eq.s32.totalorder %s14, 3
    %p229 = scmp.ne.s32.totalorder %s224, %s226
    %p230 = scmp.eq.s32.totalorder %s14, 0
    %p231 = por %p229, %p230
    %p232 = scmp.ne.s32.totalorder %s224, %s226
    %p233 = scmp.eq.s32.totalorder %s19, 3
    %p234 = por %p232, %p233
    %p235 = scmp.ne.s32.totalorder %s226, %s227
    %p236 = scmp.eq.s32.totalorder %s19, 0
    %p237 = por %p235, %p236
    %p238 = scmp.ne.s32.totalorder %s226, %s227
    %p239 = scmp.eq.s32.totalorder %s20, 3
    %p240 = por %p238, %p239
    %p242 = scmp.ne.s32.totalorder %s227, %s241
    %p243 = scmp.eq.s32.totalorder %s20, 0
    %p244 = por %p242, %p243
    %s246 = sadd.s32 %s245, 1
    %p249 = scmp.eq.s32.totalorder %s14, 3
    %p250 = scmp.ne.s32.totalorder %s245, %s247
    %p251 = scmp.eq.s32.totalorder %s14, 0
    %p252 = por %p250, %p251
    %p253 = scmp.ne.s32.totalorder %s245, %s247
    %p254 = scmp.eq.s32.totalorder %s19, 3
    %p255 = por %p253, %p254
    %p256 = scmp.ne.s32.totalorder %s247, %s248
    %p257 = scmp.eq.s32.totalorder %s19, 0
    %p258 = por %p256, %p257
    %p259 = scmp.ne.s32.totalorder %s247, %s248
    %p260 = scmp.eq.s32.totalorder %s20, 3
    %p261 = por %p259, %p260
    %p263 = scmp.ne.s32.totalorder %s248, %s262
    %p264 = scmp.eq.s32.totalorder %s20, 0
    %p265 = por %p263, %p264
    %s266 = ssub.s32 %s21, %s33
    %s267 = ssub.s32 %s22, %s29
    %s268 = sor.u32 %s266, %s267
    %p269 = scmp.eq.s32.totalorder %s268, 0
    %s271 = sadd.s32 %s270, 1
    %s272 = scalar_select %p269, %s270, %s271
    %p275 = pneg %p269
    %p276 = scmp.eq.s32.totalorder %s14, 3
    %p277 = por %p275, %p276
    %p278 = scmp.ne.s32.totalorder %s270, %s273
    %p279 = scmp.eq.s32.totalorder %s14, 0
    %p280 = por %p278, %p279
    %p281 = scmp.ne.s32.totalorder %s270, %s273
    %p282 = scmp.eq.s32.totalorder %s19, 3
    %p283 = por %p281, %p282
    %p284 = scmp.ne.s32.totalorder %s273, %s274
    %p285 = scmp.eq.s32.totalorder %s19, 0
    %p286 = por %p284, %p285
    %p287 = scmp.ne.s32.totalorder %s273, %s274
    %p288 = scmp.eq.s32.totalorder %s20, 3
    %p289 = por %p287, %p288
    %p291 = scmp.ne.s32.totalorder %s274, %s290
    %p292 = scmp.eq.s32.totalorder %s20, 0
    %p293 = por %p291, %p292
    %p294 = scmp.le.s32.totalorder 1, %s14
    %p295 = scmp.lt.s32.totalorder %s14, 5
    %p296 = pnand %p294, %p295
    %p297 = pneg %p296
    // Predicated region
    $region9: #{down_conv_forward.1} parent=5 // pred_check
      _
    $region10: #{down_conv_forward.1} parent=5 // pred_check_branch
      %299 = sbr.rel (%p296) target = $region12
    $region11: #{down_conv_forward.1} parent=5 // pred_region
      %s300 = ssub.s32 %s14, 1
      // Predicated region
      $region13: #{down_conv_forward.1} parent=11 // pred_check
        %p301 = pneg %p237
      $region14: #{down_conv_forward.1} parent=11 // pred_check_branch
        %303 = sbr.rel (%p301) target = $region16
      $region15: #{down_conv_forward.1} parent=11 // pred_region
        _
      $region16: #{down_conv_forward.1} parent=11 // pred_fallthru
        _
      // Predicated region
      $region17: #{down_conv_forward.1} parent=11 // pred_check
        %p304 = pneg %p258
      $region18: #{down_conv_forward.1} parent=11 // pred_check_branch
        %306 = sbr.rel (%p304) target = $region20
      $region19: #{down_conv_forward.1} parent=11 // pred_region
        _
      $region20: #{down_conv_forward.1} parent=11 // pred_fallthru
        _
    $region12: #{down_conv_forward.1} parent=5 // pred_fallthru
      _
    %p307 = scmp.lt.s32.totalorder %s14, 4
    // Predicated region
    $region21: #{down_conv_forward.1} parent=5 // pred_check
      %p308 = pneg %p307
    $region22: #{down_conv_forward.1} parent=5 // pred_check_branch
      %310 = sbr.rel (%p308) target = $region24
    $region23: #{down_conv_forward.1} parent=5 // pred_region
      // Predicated region
      $region25: #{down_conv_forward.1} parent=23 // pred_check
        %p311 = pneg %p50
      $region26: #{down_conv_forward.1} parent=23 // pred_check_branch
        %313 = sbr.rel (%p311) target = $region28
      $region27: #{down_conv_forward.1} parent=23 // pred_region
        %s314 = smul.u32 %s22, 4
        %p315 = scmp.lt.s32.totalorder %s21, 1
        %s316 = scalar_select %p315, %s21, 1
        %p317 = scmp.lt.s32.totalorder %s314, 9
        %s318 = scalar_select %p317, %s314, 9
        %s319 = smul.addr %s318, 2
        %s320 = smul.addr %s316, 20
        %s321 = sadd.s32 %s319, %s320
        %s322 = smul.addr %s321, 4
        %s323 = scalar_lea.vmem %s0, %s322
        %s324 = smul.u32 %s22, 4
      $region28: #{down_conv_forward.1} parent=23 // pred_fallthru
        _
      // Predicated region
      $region29: #{down_conv_forward.1} parent=23 // pred_check
        %p325 = pneg %p82
      $region30: #{down_conv_forward.1} parent=23 // pred_check_branch
        %327 = sbr.rel (%p325) target = $region32
      $region31: #{down_conv_forward.1} parent=23 // pred_region
        %s328 = smul.u32 %s22, 4
        %s329 = sadd.s32 %s328, 1
        %p330 = scmp.lt.s32.totalorder %s21, 1
        %s331 = scalar_select %p330, %s21, 1
        %p332 = scmp.lt.s32.totalorder %s329, 9
        %s333 = scalar_select %p332, %s329, 9
        %s334 = smul.addr %s333, 2
        %s335 = smul.addr %s331, 20
        %s336 = sadd.s32 %s334, %s335
        %s337 = smul.addr %s336, 4
        %s338 = scalar_lea.vmem %s1, %s337
        %s339 = smul.u32 %s22, 4
        %s340 = sadd.s32 %s339, 1
      $region32: #{down_conv_forward.1} parent=23 // pred_fallthru
        _
      // Predicated region
      $region33: #{down_conv_forward.1} parent=23 // pred_check
        %p341 = pneg %p114
      $region34: #{down_conv_forward.1} parent=23 // pred_check_branch
        %343 = sbr.rel (%p341) target = $region36
      $region35: #{down_conv_forward.1} parent=23 // pred_region
        %s344 = smul.u32 %s22, 4
        %s345 = sadd.s32 %s344, 2
        %p346 = scmp.lt.s32.totalorder %s21, 1
        %s347 = scalar_select %p346, %s21, 1
        %p348 = scmp.lt.s32.totalorder %s345, 9
        %s349 = scalar_select %p348, %s345, 9
        %s350 = smul.addr %s349, 2
        %s351 = smul.addr %s347, 20
        %s352 = sadd.s32 %s350, %s351
        %s353 = smul.addr %s352, 4
        %s354 = scalar_lea.vmem %s2, %s353
        %s355 = smul.u32 %s22, 4
        %s356 = sadd.s32 %s355, 2
      $region36: #{down_conv_forward.1} parent=23 // pred_fallthru
        _
      // Predicated region
      $region37: #{down_conv_forward.1} parent=23 // pred_check
        %p357 = pneg %p146
      $region38: #{down_conv_forward.1} parent=23 // pred_check_branch
        %359 = sbr.rel (%p357) target = $region40
      $region39: #{down_conv_forward.1} parent=23 // pred_region
        %s360 = smul.u32 %s22, 4
        %s361 = sadd.s32 %s360, 3
        %p362 = scmp.lt.s32.totalorder %s21, 1
        %s363 = scalar_select %p362, %s21, 1
        %p364 = scmp.lt.s32.totalorder %s361, 9
        %s365 = scalar_select %p364, %s361, 9
        %s366 = smul.addr %s365, 2
        %s367 = smul.addr %s363, 20
        %s368 = sadd.s32 %s366, %s367
        %s369 = smul.addr %s368, 4
        %s370 = scalar_lea.vmem %s3, %s369
        %s371 = smul.u32 %s22, 4
        %s372 = sadd.s32 %s371, 3
      $region40: #{down_conv_forward.1} parent=23 // pred_fallthru
        _
      // Predicated region
      $region41: #{down_conv_forward.1} parent=23 // pred_check
        %p373 = pneg %p178
      $region42: #{down_conv_forward.1} parent=23 // pred_check_branch
        %375 = sbr.rel (%p373) target = $region44
      $region43: #{down_conv_forward.1} parent=23 // pred_region
        %s376 = smul.u32 %s22, 4
        %s377 = sadd.s32 %s376, 4
        %p378 = scmp.lt.s32.totalorder %s21, 1
        %s379 = scalar_select %p378, %s21, 1
        %p380 = scmp.lt.s32.totalorder %s377, 9
        %s381 = scalar_select %p380, %s377, 9
        %s382 = smul.addr %s381, 2
        %s383 = smul.addr %s379, 20
        %s384 = sadd.s32 %s382, %s383
        %s385 = smul.addr %s384, 4
        %s386 = scalar_lea.vmem %s4, %s385
        %s387 = smul.u32 %s22, 4
        %s388 = sadd.s32 %s387, 4
      $region44: #{down_conv_forward.1} parent=23 // pred_fallthru
        _
      // Predicated region
      $region45: #{down_conv_forward.1} parent=23 // pred_check
        %p389 = pneg %p210
      $region46: #{down_conv_forward.1} parent=23 // pred_check_branch
        %391 = sbr.rel (%p389) target = $region48
      $region47: #{down_conv_forward.1} parent=23 // pred_region
        %s392 = smul.u32 %s22, 4
        %s393 = sadd.s32 %s392, 5
        %p394 = scmp.lt.s32.totalorder %s21, 1
        %s395 = scalar_select %p394, %s21, 1
        %p396 = scmp.lt.s32.totalorder %s393, 9
        %s397 = scalar_select %p396, %s393, 9
        %s398 = smul.addr %s397, 2
        %s399 = smul.addr %s395, 20
        %s400 = sadd.s32 %s398, %s399
        %s401 = smul.addr %s400, 4
        %s402 = scalar_lea.vmem %s5, %s401
        %s403 = smul.u32 %s22, 4
        %s404 = sadd.s32 %s403, 5
      $region48: #{down_conv_forward.1} parent=23 // pred_fallthru
        _
    $region24: #{down_conv_forward.1} parent=5 // pred_fallthru
      _
    %p405 = scmp.le.s32.totalorder 1, %s14
    %p406 = scmp.lt.s32.totalorder %s14, 5
    %p407 = pnand %p405, %p406
    %p408 = pneg %p407
    // Predicated region
    $region49: #{down_conv_forward.1} parent=5 // pred_check
      _
    $region50: #{down_conv_forward.1} parent=5 // pred_check_branch
      %410 = sbr.rel (%p407) target = $region52
    $region51: #{down_conv_forward.1} parent=5 // pred_region
      %s411 = ssub.s32 %s14, 1
      %s412 = smul.u32 %s24, 4
      %p413 = scmp.lt.s32.totalorder %s23, 1
      %s414 = scalar_select %p413, %s23, 1
      %p415 = scmp.lt.s32.totalorder %s412, 9
      %s416 = scalar_select %p415, %s412, 9
      %s417 = smul.addr %s416, 2
      %s418 = smul.addr %s414, 20
      %s419 = sadd.s32 %s417, %s418
      %s420 = smul.addr %s419, 4
      %s421 = scalar_lea.vmem %s0, %s420
      %p422 = pneg %p56
      %p423 = pneg %p53
      %s424 = smul.u32 %s24, 4
      %s425 = sadd.s32 %s424, 1
      %p426 = scmp.lt.s32.totalorder %s23, 1
      %s427 = scalar_select %p426, %s23, 1
      %p428 = scmp.lt.s32.totalorder %s425, 9
      %s429 = scalar_select %p428, %s425, 9
      %s430 = smul.addr %s429, 2
      %s431 = smul.addr %s427, 20
      %s432 = sadd.s32 %s430, %s431
      %s433 = smul.addr %s432, 4
      %s434 = scalar_lea.vmem %s1, %s433
      %p435 = pneg %p88
      %p436 = pneg %p85
      %s437 = smul.u32 %s24, 4
      %s438 = sadd.s32 %s437, 2
      %p439 = scmp.lt.s32.totalorder %s23, 1
      %s440 = scalar_select %p439, %s23, 1
      %p441 = scmp.lt.s32.totalorder %s438, 9
      %s442 = scalar_select %p441, %s438, 9
      %s443 = smul.addr %s442, 2
      %s444 = smul.addr %s440, 20
      %s445 = sadd.s32 %s443, %s444
      %s446 = smul.addr %s445, 4
      %s447 = scalar_lea.vmem %s2, %s446
      %p448 = pneg %p120
      %p449 = pneg %p117
      %s450 = smul.u32 %s24, 4
      %s451 = sadd.s32 %s450, 3
      %p452 = scmp.lt.s32.totalorder %s23, 1
      %s453 = scalar_select %p452, %s23, 1
      %p454 = scmp.lt.s32.totalorder %s451, 9
      %s455 = scalar_select %p454, %s451, 9
      %s456 = smul.addr %s455, 2
      %s457 = smul.addr %s453, 20
      %s458 = sadd.s32 %s456, %s457
      %s459 = smul.addr %s458, 4
      %s460 = scalar_lea.vmem %s3, %s459
      %p461 = pneg %p152
      %p462 = pneg %p149
      %s463 = smul.u32 %s24, 4
      %s464 = sadd.s32 %s463, 4
      %p465 = scmp.lt.s32.totalorder %s23, 1
      %s466 = scalar_select %p465, %s23, 1
      %p467 = scmp.lt.s32.totalorder %s464, 9
      %s468 = scalar_select %p467, %s464, 9
      %s469 = smul.addr %s468, 2
      %s470 = smul.addr %s466, 20
      %s471 = sadd.s32 %s469, %s470
      %s472 = smul.addr %s471, 4
      %s473 = scalar_lea.vmem %s4, %s472
      %p474 = pneg %p184
      %p475 = pneg %p181
      %s476 = smul.u32 %s24, 4
      %s477 = sadd.s32 %s476, 5
      %p478 = scmp.lt.s32.totalorder %s23, 1
      %s479 = scalar_select %p478, %s23, 1
      %p480 = scmp.lt.s32.totalorder %s477, 9
      %s481 = scalar_select %p480, %s477, 9
      %s482 = smul.addr %s481, 2
      %s483 = smul.addr %s479, 20
      %s484 = sadd.s32 %s482, %s483
      %s485 = smul.addr %s484, 4
      %s486 = scalar_lea.vmem %s5, %s485
      %p487 = pneg %p216
      %p488 = pneg %p213
      %p489 = pneg %p237
      %p490 = pneg %p234
      %p491 = pneg %p258
      %p492 = pneg %p255
      %p493 = pneg %p286
      %p494 = pneg %p283
      %s495 = smul.u32 4, %s24
      %p496 = scmp.lt.s32.totalorder %s23, 1
      %s497 = scalar_select %p496, %s23, 1
      %p498 = scmp.lt.s32.totalorder %s495, 7
      %s499 = scalar_select %p498, %s495, 7
      %s500 = smul.addr %s497, 8
      %s501 = sadd.s32 %s499, %s500
      %s502 = smul.addr %s501, 8
      %s503 = scalar_lea.vmem %s8, %s502
      %s504 = smul.u32 %s24, 4
      %p505 = scmp.lt.s32.totalorder %s23, 1
      %s506 = scalar_select %p505, %s23, 1
      %p507 = scmp.lt.s32.totalorder %s504, 9
      %s508 = scalar_select %p507, %s504, 9
      %s509 = smul.addr %s508, 2
      %s510 = smul.addr %s506, 20
      %s511 = sadd.s32 %s509, %s510
      %s512 = smul.addr %s511, 4
      %s513 = scalar_lea.vmem %s0, %s512
      %s514 = smul.u32 %s24, 4
      %s515 = smul.u32 %s24, 4
      %s516 = sadd.s32 %s515, 1
      %p517 = scmp.lt.s32.totalorder %s23, 1
      %s518 = scalar_select %p517, %s23, 1
      %p519 = scmp.lt.s32.totalorder %s516, 9
      %s520 = scalar_select %p519, %s516, 9
      %s521 = smul.addr %s520, 2
      %s522 = smul.addr %s518, 20
      %s523 = sadd.s32 %s521, %s522
      %s524 = smul.addr %s523, 4
      %s525 = scalar_lea.vmem %s1, %s524
      %s526 = smul.u32 %s24, 4
      %s527 = sadd.s32 %s526, 1
      %s528 = smul.u32 %s24, 4
      %s529 = sadd.s32 %s528, 2
      %p530 = scmp.lt.s32.totalorder %s23, 1
      %s531 = scalar_select %p530, %s23, 1
      %p532 = scmp.lt.s32.totalorder %s529, 9
      %s533 = scalar_select %p532, %s529, 9
      %s534 = smul.addr %s533, 2
      %s535 = smul.addr %s531, 20
      %s536 = sadd.s32 %s534, %s535
      %s537 = smul.addr %s536, 4
      %s538 = scalar_lea.vmem %s2, %s537
      %s539 = smul.u32 %s24, 4
      %s540 = sadd.s32 %s539, 2
      %s541 = smul.u32 %s24, 4
      %s542 = sadd.s32 %s541, 3
      %p543 = scmp.lt.s32.totalorder %s23, 1
      %s544 = scalar_select %p543, %s23, 1
      %p545 = scmp.lt.s32.totalorder %s542, 9
      %s546 = scalar_select %p545, %s542, 9
      %s547 = smul.addr %s546, 2
      %s548 = smul.addr %s544, 20
      %s549 = sadd.s32 %s547, %s548
      %s550 = smul.addr %s549, 4
      %s551 = scalar_lea.vmem %s3, %s550
      %s552 = smul.u32 %s24, 4
      %s553 = sadd.s32 %s552, 3
      %s554 = smul.u32 %s24, 4
      %s555 = sadd.s32 %s554, 4
      %p556 = scmp.lt.s32.totalorder %s23, 1
      %s557 = scalar_select %p556, %s23, 1
      %p558 = scmp.lt.s32.totalorder %s555, 9
      %s559 = scalar_select %p558, %s555, 9
      %s560 = smul.addr %s559, 2
      %s561 = smul.addr %s557, 20
      %s562 = sadd.s32 %s560, %s561
      %s563 = smul.addr %s562, 4
      %s564 = scalar_lea.vmem %s4, %s563
      %s565 = smul.u32 %s24, 4
      %s566 = sadd.s32 %s565, 4
      %s567 = smul.u32 %s24, 4
      %s568 = sadd.s32 %s567, 5
      %p569 = scmp.lt.s32.totalorder %s23, 1
      %s570 = scalar_select %p569, %s23, 1
      %p571 = scmp.lt.s32.totalorder %s568, 9
      %s572 = scalar_select %p571, %s568, 9
      %s573 = smul.addr %s572, 2
      %s574 = smul.addr %s570, 20
      %s575 = sadd.s32 %s573, %s574
      %s576 = smul.addr %s575, 4
      %s577 = scalar_lea.vmem %s5, %s576
      %s578 = smul.u32 %s24, 4
      %s579 = sadd.s32 %s578, 5
      %s580 = smul.u32 4, %s24
      %p581 = scmp.lt.s32.totalorder %s23, 1
      %s582 = scalar_select %p581, %s23, 1
      %p583 = scmp.lt.s32.totalorder %s580, 7
      %s584 = scalar_select %p583, %s580, 7
      %s585 = smul.addr %s582, 8
      %s586 = sadd.s32 %s584, %s585
      %s587 = smul.addr %s586, 8
      %s588 = scalar_lea.vmem %s8, %s587
      %s589 = smul.u32 4, %s24
      %v591 = vld [vmem:[%s513] sm:$0xf]
      %v592 = vld [vmem:[%s513 + $0x4] sm:$0xf]
      %v593 = vld [vmem:[%s525] sm:$0xf]
      %v594 = vld [vmem:[%s525 + $0x4] sm:$0xf]
      %v595 = vld [vmem:[%s538] sm:$0xf]
      %v596 = vld [vmem:[%s538 + $0x4] sm:$0xf]
      %v597 = vld [vmem:[%s551] sm:$0xf]
      %v598 = vld [vmem:[%s551 + $0x4] sm:$0xf]
      %v599 = vld [vmem:[%s564] sm:$0xf]
      %v600 = vld [vmem:[%s564 + $0x4] sm:$0xf]
      %v601 = vld [vmem:[%s577] sm:$0xf]
      %v602 = vld [vmem:[%s577 + $0x4] sm:$0xf]
      %v603 = vld [vmem:[%s7] sm:$0xff]
      %v604 = vld [vmem:[%s6] sm:$0xf]
      %s605 = scalar_lea.vmem %s6, 4
      %v606 = vld [vmem:[%s605] sm:$0xf]
      %v609 = vunpack.c.l.b16 %v591
      %v610 = vunpack.c.l.b16 %v592
      %v611 = vpack.c.b16 %v610, %v609
      %vm613 = vcmask 130048
      %v615 = vsel %vm613, %v606, 0
      %617 = vmatpush.bf16.msra.mxu0 0
      %618 = vmatpush.bf16.msra.mxu0 0
      %619 = vmatpush.bf16.msra.mxu0 0
      %620 = vmatpush.bf16.msra.mxu0 0
      %621 = vmatpush.bf16.msra.mxu0 0
      %622 = vmatpush.bf16.msra.mxu0 0
      %623 = vmatpush.bf16.msra.mxu0 0
      %624 = vmatpush.bf16.msra.mxu0 %v611
      %625 = vmatmul.bf16.gmra.mxu0 %v615
      %v626 = vpop.f32.mrf.mxu0
      %v627 = vadd.f32 0.0, %v626
      %v628 = vpop.f32.mrf.mxu0
      %629 = vdwg.mxu0
      %630 = vrot.lane.b32.xlu0 %v627, 127
      %v631 = vpop.permute.xlu0 %630
      %v633 = vsel %vm613, %v604, 0
      %635 = vmatpush.bf16.msra.mxu0 0
      %636 = vmatpush.bf16.msra.mxu0 0
      %637 = vmatpush.bf16.msra.mxu0 0
      %638 = vmatpush.bf16.msra.mxu0 0
      %639 = vmatpush.bf16.msra.mxu0 0
      %640 = vmatpush.bf16.msra.mxu0 0
      %641 = vmatpush.bf16.msra.mxu0 0
      %642 = vmatpush.bf16.msra.mxu0 %v611
      %643 = vmatmul.bf16.gmra.mxu0 %v633
      %v644 = vpop.f32.mrf.mxu0
      %v645 = vadd.f32 %v631, %v644
      %v646 = vpop.f32.mrf.mxu0
      %647 = vdwg.mxu0
      %s648 = scalar_lea.vmem %s6, 8
      %v649 = vld [vmem:[%s648] sm:$0xf]
      %v651 = vsel %vm613, %v649, 0
      %653 = vmatpush.bf16.msra.mxu0 0
      %654 = vmatpush.bf16.msra.mxu0 0
      %655 = vmatpush.bf16.msra.mxu0 0
      %656 = vmatpush.bf16.msra.mxu0 0
      %657 = vmatpush.bf16.msra.mxu0 0
      %658 = vmatpush.bf16.msra.mxu0 0
      %659 = vmatpush.bf16.msra.mxu0 0
      %660 = vmatpush.bf16.msra.mxu0 %v611
      %661 = vmatmul.bf16.gmra.mxu0 %v651
      %v662 = vpop.f32.mrf.mxu0
      %v663 = vadd.f32 0.0, %v662
      %v664 = vpop.f32.mrf.mxu0
      %665 = vdwg.mxu0
      %666 = vrot.lane.b32.xlu0 %v663, 126
      %v667 = vpop.permute.xlu0 %666
      %v668 = vadd.f32 %v645, %v667
      %s669 = scalar_lea.vmem %s6, 12
      %v670 = vld [vmem:[%s669] sm:$0xf]
      %v672 = vsel %vm613, %v670, 0
      %674 = vmatpush.bf16.msra.mxu0 0
      %675 = vmatpush.bf16.msra.mxu0 0
      %676 = vmatpush.bf16.msra.mxu0 0
      %677 = vmatpush.bf16.msra.mxu0 0
      %678 = vmatpush.bf16.msra.mxu0 0
      %679 = vmatpush.bf16.msra.mxu0 0
      %680 = vmatpush.bf16.msra.mxu0 0
      %681 = vmatpush.bf16.msra.mxu0 %v611
      %682 = vmatmul.bf16.gmra.mxu0 %v672
      %v683 = vpop.f32.mrf.mxu0
      %v684 = vadd.f32 0.0, %v683
      %v685 = vpop.f32.mrf.mxu0
      %686 = vdwg.mxu0
      %687 = vrot.lane.b32.xlu0 %v684, 120
      %v688 = vpop.permute.xlu0 %687
      %v689 = vadd.f32 %v668, %v688
      %s690 = scalar_lea.vmem %s6, 16
      %v691 = vld [vmem:[%s690] sm:$0xf]
      %v693 = vsel %vm613, %v691, 0
      %695 = vmatpush.bf16.msra.mxu0 0
      %696 = vmatpush.bf16.msra.mxu0 0
      %697 = vmatpush.bf16.msra.mxu0 0
      %698 = vmatpush.bf16.msra.mxu0 0
      %699 = vmatpush.bf16.msra.mxu0 0
      %700 = vmatpush.bf16.msra.mxu0 0
      %701 = vmatpush.bf16.msra.mxu0 0
      %702 = vmatpush.bf16.msra.mxu0 %v611
      %703 = vmatmul.bf16.gmra.mxu0 %v693
      %v704 = vpop.f32.mrf.mxu0
      %v705 = vadd.f32 0.0, %v704
      %v706 = vpop.f32.mrf.mxu0
      %707 = vdwg.mxu0
      %708 = vrot.lane.b32.xlu0 %v705, 119
      %v709 = vpop.permute.xlu0 %708
      %v710 = vadd.f32 %v689, %v709
      %s711 = scalar_lea.vmem %s6, 20
      %v712 = vld [vmem:[%s711] sm:$0xf]
      %v714 = vsel %vm613, %v712, 0
      %716 = vmatpush.bf16.msra.mxu0 0
      %717 = vmatpush.bf16.msra.mxu0 0
      %718 = vmatpush.bf16.msra.mxu0 0
      %719 = vmatpush.bf16.msra.mxu0 0
      %720 = vmatpush.bf16.msra.mxu0 0
      %721 = vmatpush.bf16.msra.mxu0 0
      %722 = vmatpush.bf16.msra.mxu0 0
      %723 = vmatpush.bf16.msra.mxu0 %v611
      %724 = vmatmul.bf16.gmra.mxu0 %v714
      %v725 = vpop.f32.mrf.mxu0
      %v726 = vadd.f32 0.0, %v725
      %v727 = vpop.f32.mrf.mxu0
      %728 = vdwg.mxu0
      %729 = vrot.lane.b32.xlu0 %v726, 118
      %v730 = vpop.permute.xlu0 %729
      %v731 = vadd.f32 %v710, %v730
      %s732 = scalar_lea.vmem %s6, 24
      %v733 = vld [vmem:[%s732] sm:$0xf]
      %v735 = vsel %vm613, %v733, 0
      %737 = vmatpush.bf16.msra.mxu0 0
      %738 = vmatpush.bf16.msra.mxu0 0
      %739 = vmatpush.bf16.msra.mxu0 0
      %740 = vmatpush.bf16.msra.mxu0 0
      %741 = vmatpush.bf16.msra.mxu0 0
      %742 = vmatpush.bf16.msra.mxu0 0
      %743 = vmatpush.bf16.msra.mxu0 0
      %744 = vmatpush.bf16.msra.mxu0 %v611
      %745 = vmatmul.bf16.gmra.mxu0 %v735
      %v746 = vpop.f32.mrf.mxu0
      %v747 = vadd.f32 0.0, %v746
      %v748 = vpop.f32.mrf.mxu0
      %749 = vdwg.mxu0
      %750 = vrot.lane.b32.xlu0 %v747, 112
      %v751 = vpop.permute.xlu0 %750
      %v752 = vadd.f32 %v731, %v751
      %s753 = scalar_lea.vmem %s6, 28
      %v754 = vld [vmem:[%s753] sm:$0xf]
      %v756 = vsel %vm613, %v754, 0
      %758 = vmatpush.bf16.msra.mxu0 0
      %759 = vmatpush.bf16.msra.mxu0 0
      %760 = vmatpush.bf16.msra.mxu0 0
      %761 = vmatpush.bf16.msra.mxu0 0
      %762 = vmatpush.bf16.msra.mxu0 0
      %763 = vmatpush.bf16.msra.mxu0 0
      %764 = vmatpush.bf16.msra.mxu0 0
      %765 = vmatpush.bf16.msra.mxu0 %v611
      %766 = vmatmul.bf16.gmra.mxu0 %v756
      %v767 = vpop.f32.mrf.mxu0
      %v768 = vadd.f32 0.0, %v767
      %v769 = vpop.f32.mrf.mxu0
      %770 = vdwg.mxu0
      %771 = vrot.lane.b32.xlu0 %v768, 111
      %v772 = vpop.permute.xlu0 %771
      %v773 = vadd.f32 %v752, %v772
      %s774 = scalar_lea.vmem %s6, 32
      %v775 = vld [vmem:[%s774] sm:$0xf]
      %v777 = vsel %vm613, %v775, 0
      %779 = vmatpush.bf16.msra.mxu0 0
      %780 = vmatpush.bf16.msra.mxu0 0
      %781 = vmatpush.bf16.msra.mxu0 0
      %782 = vmatpush.bf16.msra.mxu0 0
      %783 = vmatpush.bf16.msra.mxu0 0
      %784 = vmatpush.bf16.msra.mxu0 0
      %785 = vmatpush.bf16.msra.mxu0 0
      %786 = vmatpush.bf16.msra.mxu0 %v611
      %787 = vmatmul.bf16.gmra.mxu0 %v777
      %v788 = vpop.f32.mrf.mxu0
      %v789 = vadd.f32 0.0, %v788
      %v790 = vpop.f32.mrf.mxu0
      %791 = vdwg.mxu0
      %792 = vrot.lane.b32.xlu0 %v789, 110
      %v793 = vpop.permute.xlu0 %792
      %v794 = vadd.f32 %v773, %v793
      %s795 = scalar_lea.vmem %s6, 36
      %v796 = vld [vmem:[%s795] sm:$0xf]
      %v799 = vunpack.c.l.b16 %v593
      %v800 = vunpack.c.l.b16 %v594
      %v801 = vpack.c.b16 %v800, %v799
      %v804 = vsel %vm613, %v796, 0
      %806 = vmatpush.bf16.msra.mxu0 0
      %807 = vmatpush.bf16.msra.mxu0 0
      %808 = vmatpush.bf16.msra.mxu0 0
      %809 = vmatpush.bf16.msra.mxu0 0
      %810 = vmatpush.bf16.msra.mxu0 0
      %811 = vmatpush.bf16.msra.mxu0 0
      %812 = vmatpush.bf16.msra.mxu0 0
      %813 = vmatpush.bf16.msra.mxu0 %v801
      %814 = vmatmul.bf16.gmra.mxu0 %v804
      %v815 = vpop.f32.mrf.mxu0
      %v816 = vadd.f32 0.0, %v815
      %v817 = vpop.f32.mrf.mxu0
      %818 = vdwg.mxu0
      %v819 = vadd.f32 %v794, %v816
      %s820 = scalar_lea.vmem %s6, 40
      %v821 = vld [vmem:[%s820] sm:$0xf]
      %v823 = vsel %vm613, %v821, 0
      %825 = vmatpush.bf16.msra.mxu0 0
      %826 = vmatpush.bf16.msra.mxu0 0
      %827 = vmatpush.bf16.msra.mxu0 0
      %828 = vmatpush.bf16.msra.mxu0 0
      %829 = vmatpush.bf16.msra.mxu0 0
      %830 = vmatpush.bf16.msra.mxu0 0
      %831 = vmatpush.bf16.msra.mxu0 0
      %832 = vmatpush.bf16.msra.mxu0 %v801
      %833 = vmatmul.bf16.gmra.mxu0 %v823
      %v834 = vpop.f32.mrf.mxu0
      %v835 = vadd.f32 0.0, %v834
      %v836 = vpop.f32.mrf.mxu0
      %837 = vdwg.mxu0
      %838 = vrot.lane.b32.xlu0 %v835, 127
      %v839 = vpop.permute.xlu0 %838
      %v840 = vadd.f32 %v819, %v839
      %s841 = scalar_lea.vmem %s6, 44
      %v842 = vld [vmem:[%s841] sm:$0xf]
      %v844 = vsel %vm613, %v842, 0
      %846 = vmatpush.bf16.msra.mxu0 0
      %847 = vmatpush.bf16.msra.mxu0 0
      %848 = vmatpush.bf16.msra.mxu0 0
      %849 = vmatpush.bf16.msra.mxu0 0
      %850 = vmatpush.bf16.msra.mxu0 0
      %851 = vmatpush.bf16.msra.mxu0 0
      %852 = vmatpush.bf16.msra.mxu0 0
      %853 = vmatpush.bf16.msra.mxu0 %v801
      %854 = vmatmul.bf16.gmra.mxu0 %v844
      %v855 = vpop.f32.mrf.mxu0
      %v856 = vadd.f32 0.0, %v855
      %v857 = vpop.f32.mrf.mxu0
      %858 = vdwg.mxu0
      %859 = vrot.lane.b32.xlu0 %v856, 126
      %v860 = vpop.permute.xlu0 %859
      %v861 = vadd.f32 %v840, %v860
      %s862 = scalar_lea.vmem %s6, 48
      %v863 = vld [vmem:[%s862] sm:$0xf]
      %v865 = vsel %vm613, %v863, 0
      %867 = vmatpush.bf16.msra.mxu0 0
      %868 = vmatpush.bf16.msra.mxu0 0
      %869 = vmatpush.bf16.msra.mxu0 0
      %870 = vmatpush.bf16.msra.mxu0 0
      %871 = vmatpush.bf16.msra.mxu0 0
      %872 = vmatpush.bf16.msra.mxu0 0
      %873 = vmatpush.bf16.msra.mxu0 0
      %874 = vmatpush.bf16.msra.mxu0 %v801
      %875 = vmatmul.bf16.gmra.mxu0 %v865
      %v876 = vpop.f32.mrf.mxu0
      %v877 = vadd.f32 0.0, %v876
      %v878 = vpop.f32.mrf.mxu0
      %879 = vdwg.mxu0
      %880 = vrot.lane.b32.xlu0 %v877, 120
      %v881 = vpop.permute.xlu0 %880
      %v882 = vadd.f32 %v861, %v881
      %s883 = scalar_lea.vmem %s6, 52
      %v884 = vld [vmem:[%s883] sm:$0xf]
      %v886 = vsel %vm613, %v884, 0
      %888 = vmatpush.bf16.msra.mxu0 0
      %889 = vmatpush.bf16.msra.mxu0 0
      %890 = vmatpush.bf16.msra.mxu0 0
      %891 = vmatpush.bf16.msra.mxu0 0
      %892 = vmatpush.bf16.msra.mxu0 0
      %893 = vmatpush.bf16.msra.mxu0 0
      %894 = vmatpush.bf16.msra.mxu0 0
      %895 = vmatpush.bf16.msra.mxu0 %v801
      %896 = vmatmul.bf16.gmra.mxu0 %v886
      %v897 = vpop.f32.mrf.mxu0
      %v898 = vadd.f32 0.0, %v897
      %v899 = vpop.f32.mrf.mxu0
      %900 = vdwg.mxu0
      %901 = vrot.lane.b32.xlu0 %v898, 119
      %v902 = vpop.permute.xlu0 %901
      %v903 = vadd.f32 %v882, %v902
      %s904 = scalar_lea.vmem %s6, 56
      %v905 = vld [vmem:[%s904] sm:$0xf]
      %v907 = vsel %vm613, %v905, 0
      %909 = vmatpush.bf16.msra.mxu0 0
      %910 = vmatpush.bf16.msra.mxu0 0
      %911 = vmatpush.bf16.msra.mxu0 0
      %912 = vmatpush.bf16.msra.mxu0 0
      %913 = vmatpush.bf16.msra.mxu0 0
      %914 = vmatpush.bf16.msra.mxu0 0
      %915 = vmatpush.bf16.msra.mxu0 0
      %916 = vmatpush.bf16.msra.mxu0 %v801
      %917 = vmatmul.bf16.gmra.mxu0 %v907
      %v918 = vpop.f32.mrf.mxu0
      %v919 = vadd.f32 0.0, %v918
      %v920 = vpop.f32.mrf.mxu0
      %921 = vdwg.mxu0
      %922 = vrot.lane.b32.xlu0 %v919, 118
      %v923 = vpop.permute.xlu0 %922
      %v924 = vadd.f32 %v903, %v923
      %s925 = scalar_lea.vmem %s6, 60
      %v926 = vld [vmem:[%s925] sm:$0xf]
      %v928 = vsel %vm613, %v926, 0
      %930 = vmatpush.bf16.msra.mxu0 0
      %931 = vmatpush.bf16.msra.mxu0 0
      %932 = vmatpush.bf16.msra.mxu0 0
      %933 = vmatpush.bf16.msra.mxu0 0
      %934 = vmatpush.bf16.msra.mxu0 0
      %935 = vmatpush.bf16.msra.mxu0 0
      %936 = vmatpush.bf16.msra.mxu0 0
      %937 = vmatpush.bf16.msra.mxu0 %v801
      %938 = vmatmul.bf16.gmra.mxu0 %v928
      %v939 = vpop.f32.mrf.mxu0
      %v940 = vadd.f32 0.0, %v939
      %v941 = vpop.f32.mrf.mxu0
      %942 = vdwg.mxu0
      %943 = vrot.lane.b32.xlu0 %v940, 112
      %v944 = vpop.permute.xlu0 %943
      %v945 = vadd.f32 %v924, %v944
      %s946 = scalar_lea.vmem %s6, 64
      %v947 = vld [vmem:[%s946] sm:$0xf]
      %v949 = vsel %vm613, %v947, 0
      %951 = vmatpush.bf16.msra.mxu0 0
      %952 = vmatpush.bf16.msra.mxu0 0
      %953 = vmatpush.bf16.msra.mxu0 0
      %954 = vmatpush.bf16.msra.mxu0 0
      %955 = vmatpush.bf16.msra.mxu0 0
      %956 = vmatpush.bf16.msra.mxu0 0
      %957 = vmatpush.bf16.msra.mxu0 0
      %958 = vmatpush.bf16.msra.mxu0 %v801
      %959 = vmatmul.bf16.gmra.mxu0 %v949
      %v960 = vpop.f32.mrf.mxu0
      %v961 = vadd.f32 0.0, %v960
      %v962 = vpop.f32.mrf.mxu0
      %963 = vdwg.mxu0
      %964 = vrot.lane.b32.xlu0 %v961, 111
      %v965 = vpop.permute.xlu0 %964
      %v966 = vadd.f32 %v945, %v965
      %s967 = scalar_lea.vmem %s6, 68
      %v968 = vld [vmem:[%s967] sm:$0xf]
      %v970 = vsel %vm613, %v968, 0
      %972 = vmatpush.bf16.msra.mxu0 0
      %973 = vmatpush.bf16.msra.mxu0 0
      %974 = vmatpush.bf16.msra.mxu0 0
      %975 = vmatpush.bf16.msra.mxu0 0
      %976 = vmatpush.bf16.msra.mxu0 0
      %977 = vmatpush.bf16.msra.mxu0 0
      %978 = vmatpush.bf16.msra.mxu0 0
      %979 = vmatpush.bf16.msra.mxu0 %v801
      %980 = vmatmul.bf16.gmra.mxu0 %v970
      %v981 = vpop.f32.mrf.mxu0
      %v982 = vadd.f32 0.0, %v981
      %v983 = vpop.f32.mrf.mxu0
      %984 = vdwg.mxu0
      %985 = vrot.lane.b32.xlu0 %v982, 110
      %v986 = vpop.permute.xlu0 %985
      %v987 = vadd.f32 %v966, %v986
      %s988 = scalar_lea.vmem %s6, 72
      %v989 = vld [vmem:[%s988] sm:$0xf]
      %v992 = vunpack.c.l.b16 %v595
      %v993 = vunpack.c.l.b16 %v596
      %v994 = vpack.c.b16 %v993, %v992
      %v997 = vsel %vm613, %v989, 0
      %999 = vmatpush.bf16.msra.mxu0 0
      %1000 = vmatpush.bf16.msra.mxu0 0
      %1001 = vmatpush.bf16.msra.mxu0 0
      %1002 = vmatpush.bf16.msra.mxu0 0
      %1003 = vmatpush.bf16.msra.mxu0 0
      %1004 = vmatpush.bf16.msra.mxu0 0
      %1005 = vmatpush.bf16.msra.mxu0 0
      %1006 = vmatpush.bf16.msra.mxu0 %v994
      %1007 = vmatmul.bf16.gmra.mxu0 %v997
      %v1008 = vpop.f32.mrf.mxu0
      %v1009 = vadd.f32 0.0, %v1008
      %v1010 = vpop.f32.mrf.mxu0
      %1011 = vdwg.mxu0
      %v1012 = vadd.f32 %v987, %v1009
      %s1013 = scalar_lea.vmem %s6, 76
      %v1014 = vld [vmem:[%s1013] sm:$0xf]
      %v1016 = vsel %vm613, %v1014, 0
      %1018 = vmatpush.bf16.msra.mxu0 0
      %1019 = vmatpush.bf16.msra.mxu0 0
      %1020 = vmatpush.bf16.msra.mxu0 0
      %1021 = vmatpush.bf16.msra.mxu0 0
      %1022 = vmatpush.bf16.msra.mxu0 0
      %1023 = vmatpush.bf16.msra.mxu0 0
      %1024 = vmatpush.bf16.msra.mxu0 0
      %1025 = vmatpush.bf16.msra.mxu0 %v994
      %1026 = vmatmul.bf16.gmra.mxu0 %v1016
      %v1027 = vpop.f32.mrf.mxu0
      %v1028 = vadd.f32 0.0, %v1027
      %v1029 = vpop.f32.mrf.mxu0
      %1030 = vdwg.mxu0
      %1031 = vrot.lane.b32.xlu0 %v1028, 127
      %v1032 = vpop.permute.xlu0 %1031
      %v1033 = vadd.f32 %v1012, %v1032
      %s1034 = scalar_lea.vmem %s6, 80
      %v1035 = vld [vmem:[%s1034] sm:$0xf]
      %v1037 = vsel %vm613, %v1035, 0
      %1039 = vmatpush.bf16.msra.mxu0 0
      %1040 = vmatpush.bf16.msra.mxu0 0
      %1041 = vmatpush.bf16.msra.mxu0 0
      %1042 = vmatpush.bf16.msra.mxu0 0
      %1043 = vmatpush.bf16.msra.mxu0 0
      %1044 = vmatpush.bf16.msra.mxu0 0
      %1045 = vmatpush.bf16.msra.mxu0 0
      %1046 = vmatpush.bf16.msra.mxu0 %v994
      %1047 = vmatmul.bf16.gmra.mxu0 %v1037
      %v1048 = vpop.f32.mrf.mxu0
      %v1049 = vadd.f32 0.0, %v1048
      %v1050 = vpop.f32.mrf.mxu0
      %1051 = vdwg.mxu0
      %1052 = vrot.lane.b32.xlu0 %v1049, 126
      %v1053 = vpop.permute.xlu0 %1052
      %v1054 = vadd.f32 %v1033, %v1053
      %s1055 = scalar_lea.vmem %s6, 84
      %v1056 = vld [vmem:[%s1055] sm:$0xf]
      %v1058 = vsel %vm613, %v1056, 0
      %1060 = vmatpush.bf16.msra.mxu0 0
      %1061 = vmatpush.bf16.msra.mxu0 0
      %1062 = vmatpush.bf16.msra.mxu0 0
      %1063 = vmatpush.bf16.msra.mxu0 0
      %1064 = vmatpush.bf16.msra.mxu0 0
      %1065 = vmatpush.bf16.msra.mxu0 0
      %1066 = vmatpush.bf16.msra.mxu0 0
      %1067 = vmatpush.bf16.msra.mxu0 %v994
      %1068 = vmatmul.bf16.gmra.mxu0 %v1058
      %v1069 = vpop.f32.mrf.mxu0
      %v1070 = vadd.f32 0.0, %v1069
      %v1071 = vpop.f32.mrf.mxu0
      %1072 = vdwg.mxu0
      %1073 = vrot.lane.b32.xlu0 %v1070, 120
      %v1074 = vpop.permute.xlu0 %1073
      %v1075 = vadd.f32 %v1054, %v1074
      %s1076 = scalar_lea.vmem %s6, 88
      %v1077 = vld [vmem:[%s1076] sm:$0xf]
      %v1079 = vsel %vm613, %v1077, 0
      %1081 = vmatpush.bf16.msra.mxu0 0
      %1082 = vmatpush.bf16.msra.mxu0 0
      %1083 = vmatpush.bf16.msra.mxu0 0
      %1084 = vmatpush.bf16.msra.mxu0 0
      %1085 = vmatpush.bf16.msra.mxu0 0
      %1086 = vmatpush.bf16.msra.mxu0 0
      %1087 = vmatpush.bf16.msra.mxu0 0
      %1088 = vmatpush.bf16.msra.mxu0 %v994
      %1089 = vmatmul.bf16.gmra.mxu0 %v1079
      %v1090 = vpop.f32.mrf.mxu0
      %v1091 = vadd.f32 0.0, %v1090
      %v1092 = vpop.f32.mrf.mxu0
      %1093 = vdwg.mxu0
      %1094 = vrot.lane.b32.xlu0 %v1091, 119
      %v1095 = vpop.permute.xlu0 %1094
      %v1096 = vadd.f32 %v1075, %v1095
      %s1097 = scalar_lea.vmem %s6, 92
      %v1098 = vld [vmem:[%s1097] sm:$0xf]
      %v1100 = vsel %vm613, %v1098, 0
      %1102 = vmatpush.bf16.msra.mxu0 0
      %1103 = vmatpush.bf16.msra.mxu0 0
      %1104 = vmatpush.bf16.msra.mxu0 0
      %1105 = vmatpush.bf16.msra.mxu0 0
      %1106 = vmatpush.bf16.msra.mxu0 0
      %1107 = vmatpush.bf16.msra.mxu0 0
      %1108 = vmatpush.bf16.msra.mxu0 0
      %1109 = vmatpush.bf16.msra.mxu0 %v994
      %1110 = vmatmul.bf16.gmra.mxu0 %v1100
      %v1111 = vpop.f32.mrf.mxu0
      %v1112 = vadd.f32 0.0, %v1111
      %v1113 = vpop.f32.mrf.mxu0
      %1114 = vdwg.mxu0
      %1115 = vrot.lane.b32.xlu0 %v1112, 118
      %v1116 = vpop.permute.xlu0 %1115
      %v1117 = vadd.f32 %v1096, %v1116
      %s1118 = scalar_lea.vmem %s6, 96
      %v1119 = vld [vmem:[%s1118] sm:$0xf]
      %v1121 = vsel %vm613, %v1119, 0
      %1123 = vmatpush.bf16.msra.mxu0 0
      %1124 = vmatpush.bf16.msra.mxu0 0
      %1125 = vmatpush.bf16.msra.mxu0 0
      %1126 = vmatpush.bf16.msra.mxu0 0
      %1127 = vmatpush.bf16.msra.mxu0 0
      %1128 = vmatpush.bf16.msra.mxu0 0
      %1129 = vmatpush.bf16.msra.mxu0 0
      %1130 = vmatpush.bf16.msra.mxu0 %v994
      %1131 = vmatmul.bf16.gmra.mxu0 %v1121
      %v1132 = vpop.f32.mrf.mxu0
      %v1133 = vadd.f32 0.0, %v1132
      %v1134 = vpop.f32.mrf.mxu0
      %1135 = vdwg.mxu0
      %1136 = vrot.lane.b32.xlu0 %v1133, 112
      %v1137 = vpop.permute.xlu0 %1136
      %v1138 = vadd.f32 %v1117, %v1137
      %s1139 = scalar_lea.vmem %s6, 100
      %v1140 = vld [vmem:[%s1139] sm:$0xf]
      %v1142 = vsel %vm613, %v1140, 0
      %1144 = vmatpush.bf16.msra.mxu0 0
      %1145 = vmatpush.bf16.msra.mxu0 0
      %1146 = vmatpush.bf16.msra.mxu0 0
      %1147 = vmatpush.bf16.msra.mxu0 0
      %1148 = vmatpush.bf16.msra.mxu0 0
      %1149 = vmatpush.bf16.msra.mxu0 0
      %1150 = vmatpush.bf16.msra.mxu0 0
      %1151 = vmatpush.bf16.msra.mxu0 %v994
      %1152 = vmatmul.bf16.gmra.mxu0 %v1142
      %v1153 = vpop.f32.mrf.mxu0
      %v1154 = vadd.f32 0.0, %v1153
      %v1155 = vpop.f32.mrf.mxu0
      %1156 = vdwg.mxu0
      %1157 = vrot.lane.b32.xlu0 %v1154, 111
      %v1158 = vpop.permute.xlu0 %1157
      %v1159 = vadd.f32 %v1138, %v1158
      %s1160 = scalar_lea.vmem %s6, 104
      %v1161 = vld [vmem:[%s1160] sm:$0xf]
      %v1163 = vsel %vm613, %v1161, 0
      %1165 = vmatpush.bf16.msra.mxu0 0
      %1166 = vmatpush.bf16.msra.mxu0 0
      %1167 = vmatpush.bf16.msra.mxu0 0
      %1168 = vmatpush.bf16.msra.mxu0 0
      %1169 = vmatpush.bf16.msra.mxu0 0
      %1170 = vmatpush.bf16.msra.mxu0 0
      %1171 = vmatpush.bf16.msra.mxu0 0
      %1172 = vmatpush.bf16.msra.mxu0 %v994
      %1173 = vmatmul.bf16.gmra.mxu0 %v1163
      %v1174 = vpop.f32.mrf.mxu0
      %v1175 = vadd.f32 0.0, %v1174
      %v1176 = vpop.f32.mrf.mxu0
      %1177 = vdwg.mxu0
      %1178 = vrot.lane.b32.xlu0 %v1175, 110
      %v1179 = vpop.permute.xlu0 %1178
      %v1180 = vadd.f32 %v1159, %v1179
      %1182 = vset.pattern.permute.xlu0 0
      %1183 = vperm.xlu0 %1182, %v603
      %v1184 = vpop.permute.xlu0 %1183
      %v1186 = vadd.f32 %v1180, %v1184
      %v1187 = vmax.f32 %v1186, 0.0
      %1188 = vst [vmem:[%s588] sm:$0xff] %v1187
      %v1189 = vld [vmem:[%s6] sm:$0xf]
      %v1190 = vld [vmem:[%s605] sm:$0xf]
      %v1192 = vsel %vm613, %v1190, 0
      %1194 = vmatpush.bf16.msra.mxu0 0
      %1195 = vmatpush.bf16.msra.mxu0 0
      %1196 = vmatpush.bf16.msra.mxu0 0
      %1197 = vmatpush.bf16.msra.mxu0 0
      %1198 = vmatpush.bf16.msra.mxu0 0
      %1199 = vmatpush.bf16.msra.mxu0 0
      %1200 = vmatpush.bf16.msra.mxu0 0
      %1201 = vmatpush.bf16.msra.mxu0 %v801
      %1202 = vmatmul.bf16.gmra.mxu0 %v1192
      %v1203 = vpop.f32.mrf.mxu0
      %v1204 = vadd.f32 0.0, %v1203
      %v1205 = vpop.f32.mrf.mxu0
      %1206 = vdwg.mxu0
      %1207 = vrot.lane.b32.xlu0 %v1204, 127
      %v1208 = vpop.permute.xlu0 %1207
      %v1210 = vsel %vm613, %v1189, 0
      %1212 = vmatpush.bf16.msra.mxu0 0
      %1213 = vmatpush.bf16.msra.mxu0 0
      %1214 = vmatpush.bf16.msra.mxu0 0
      %1215 = vmatpush.bf16.msra.mxu0 0
      %1216 = vmatpush.bf16.msra.mxu0 0
      %1217 = vmatpush.bf16.msra.mxu0 0
      %1218 = vmatpush.bf16.msra.mxu0 0
      %1219 = vmatpush.bf16.msra.mxu0 %v801
      %1220 = vmatmul.bf16.gmra.mxu0 %v1210
      %v1221 = vpop.f32.mrf.mxu0
      %v1222 = vadd.f32 %v1208, %v1221
      %v1223 = vpop.f32.mrf.mxu0
      %1224 = vdwg.mxu0
      %v1225 = vld [vmem:[%s648] sm:$0xf]
      %v1227 = vsel %vm613, %v1225, 0
      %1229 = vmatpush.bf16.msra.mxu0 0
      %1230 = vmatpush.bf16.msra.mxu0 0
      %1231 = vmatpush.bf16.msra.mxu0 0
      %1232 = vmatpush.bf16.msra.mxu0 0
      %1233 = vmatpush.bf16.msra.mxu0 0
      %1234 = vmatpush.bf16.msra.mxu0 0
      %1235 = vmatpush.bf16.msra.mxu0 0
      %1236 = vmatpush.bf16.msra.mxu0 %v801
      %1237 = vmatmul.bf16.gmra.mxu0 %v1227
      %v1238 = vpop.f32.mrf.mxu0
      %v1239 = vadd.f32 0.0, %v1238
      %v1240 = vpop.f32.mrf.mxu0
      %1241 = vdwg.mxu0
      %1242 = vrot.lane.b32.xlu0 %v1239, 126
      %v1243 = vpop.permute.xlu0 %1242
      %v1244 = vadd.f32 %v1222, %v1243
      %v1245 = vld [vmem:[%s669] sm:$0xf]
      %v1247 = vsel %vm613, %v1245, 0
      %1249 = vmatpush.bf16.msra.mxu0 0
      %1250 = vmatpush.bf16.msra.mxu0 0
      %1251 = vmatpush.bf16.msra.mxu0 0
      %1252 = vmatpush.bf16.msra.mxu0 0
      %1253 = vmatpush.bf16.msra.mxu0 0
      %1254 = vmatpush.bf16.msra.mxu0 0
      %1255 = vmatpush.bf16.msra.mxu0 0
      %1256 = vmatpush.bf16.msra.mxu0 %v801
      %1257 = vmatmul.bf16.gmra.mxu0 %v1247
      %v1258 = vpop.f32.mrf.mxu0
      %v1259 = vadd.f32 0.0, %v1258
      %v1260 = vpop.f32.mrf.mxu0
      %1261 = vdwg.mxu0
      %1262 = vrot.lane.b32.xlu0 %v1259, 120
      %v1263 = vpop.permute.xlu0 %1262
      %v1264 = vadd.f32 %v1244, %v1263
      %v1265 = vld [vmem:[%s690] sm:$0xf]
      %v1267 = vsel %vm613, %v1265, 0
      %1269 = vmatpush.bf16.msra.mxu0 0
      %1270 = vmatpush.bf16.msra.mxu0 0
      %1271 = vmatpush.bf16.msra.mxu0 0
      %1272 = vmatpush.bf16.msra.mxu0 0
      %1273 = vmatpush.bf16.msra.mxu0 0
      %1274 = vmatpush.bf16.msra.mxu0 0
      %1275 = vmatpush.bf16.msra.mxu0 0
      %1276 = vmatpush.bf16.msra.mxu0 %v801
      %1277 = vmatmul.bf16.gmra.mxu0 %v1267
      %v1278 = vpop.f32.mrf.mxu0
      %v1279 = vadd.f32 0.0, %v1278
      %v1280 = vpop.f32.mrf.mxu0
      %1281 = vdwg.mxu0
      %1282 = vrot.lane.b32.xlu0 %v1279, 119
      %v1283 = vpop.permute.xlu0 %1282
      %v1284 = vadd.f32 %v1264, %v1283
      %v1285 = vld [vmem:[%s711] sm:$0xf]
      %v1287 = vsel %vm613, %v1285, 0
      %1289 = vmatpush.bf16.msra.mxu0 0
      %1290 = vmatpush.bf16.msra.mxu0 0
      %1291 = vmatpush.bf16.msra.mxu0 0
      %1292 = vmatpush.bf16.msra.mxu0 0
      %1293 = vmatpush.bf16.msra.mxu0 0
      %1294 = vmatpush.bf16.msra.mxu0 0
      %1295 = vmatpush.bf16.msra.mxu0 0
      %1296 = vmatpush.bf16.msra.mxu0 %v801
      %1297 = vmatmul.bf16.gmra.mxu0 %v1287
      %v1298 = vpop.f32.mrf.mxu0
      %v1299 = vadd.f32 0.0, %v1298
      %v1300 = vpop.f32.mrf.mxu0
      %1301 = vdwg.mxu0
      %1302 = vrot.lane.b32.xlu0 %v1299, 118
      %v1303 = vpop.permute.xlu0 %1302
      %v1304 = vadd.f32 %v1284, %v1303
      %v1305 = vld [vmem:[%s732] sm:$0xf]
      %v1307 = vsel %vm613, %v1305, 0
      %1309 = vmatpush.bf16.msra.mxu0 0
      %1310 = vmatpush.bf16.msra.mxu0 0
      %1311 = vmatpush.bf16.msra.mxu0 0
      %1312 = vmatpush.bf16.msra.mxu0 0
      %1313 = vmatpush.bf16.msra.mxu0 0
      %1314 = vmatpush.bf16.msra.mxu0 0
      %1315 = vmatpush.bf16.msra.mxu0 0
      %1316 = vmatpush.bf16.msra.mxu0 %v801
      %1317 = vmatmul.bf16.gmra.mxu0 %v1307
      %v1318 = vpop.f32.mrf.mxu0
      %v1319 = vadd.f32 0.0, %v1318
      %v1320 = vpop.f32.mrf.mxu0
      %1321 = vdwg.mxu0
      %1322 = vrot.lane.b32.xlu0 %v1319, 112
      %v1323 = vpop.permute.xlu0 %1322
      %v1324 = vadd.f32 %v1304, %v1323
      %v1325 = vld [vmem:[%s753] sm:$0xf]
      %v1327 = vsel %vm613, %v1325, 0
      %1329 = vmatpush.bf16.msra.mxu0 0
      %1330 = vmatpush.bf16.msra.mxu0 0
      %1331 = vmatpush.bf16.msra.mxu0 0
      %1332 = vmatpush.bf16.msra.mxu0 0
      %1333 = vmatpush.bf16.msra.mxu0 0
      %1334 = vmatpush.bf16.msra.mxu0 0
      %1335 = vmatpush.bf16.msra.mxu0 0
      %1336 = vmatpush.bf16.msra.mxu0 %v801
      %1337 = vmatmul.bf16.gmra.mxu0 %v1327
      %v1338 = vpop.f32.mrf.mxu0
      %v1339 = vadd.f32 0.0, %v1338
      %v1340 = vpop.f32.mrf.mxu0
      %1341 = vdwg.mxu0
      %1342 = vrot.lane.b32.xlu0 %v1339, 111
      %v1343 = vpop.permute.xlu0 %1342
      %v1344 = vadd.f32 %v1324, %v1343
      %v1345 = vld [vmem:[%s774] sm:$0xf]
      %v1347 = vsel %vm613, %v1345, 0
      %1349 = vmatpush.bf16.msra.mxu0 0
      %1350 = vmatpush.bf16.msra.mxu0 0
      %1351 = vmatpush.bf16.msra.mxu0 0
      %1352 = vmatpush.bf16.msra.mxu0 0
      %1353 = vmatpush.bf16.msra.mxu0 0
      %1354 = vmatpush.bf16.msra.mxu0 0
      %1355 = vmatpush.bf16.msra.mxu0 0
      %1356 = vmatpush.bf16.msra.mxu0 %v801
      %1357 = vmatmul.bf16.gmra.mxu0 %v1347
      %v1358 = vpop.f32.mrf.mxu0
      %v1359 = vadd.f32 0.0, %v1358
      %v1360 = vpop.f32.mrf.mxu0
      %1361 = vdwg.mxu0
      %1362 = vrot.lane.b32.xlu0 %v1359, 110
      %v1363 = vpop.permute.xlu0 %1362
      %v1364 = vadd.f32 %v1344, %v1363
      %v1365 = vld [vmem:[%s795] sm:$0xf]
      %v1367 = vsel %vm613, %v1365, 0
      %1369 = vmatpush.bf16.msra.mxu0 0
      %1370 = vmatpush.bf16.msra.mxu0 0
      %1371 = vmatpush.bf16.msra.mxu0 0
      %1372 = vmatpush.bf16.msra.mxu0 0
      %1373 = vmatpush.bf16.msra.mxu0 0
      %1374 = vmatpush.bf16.msra.mxu0 0
      %1375 = vmatpush.bf16.msra.mxu0 0
      %1376 = vmatpush.bf16.msra.mxu0 %v994
      %1377 = vmatmul.bf16.gmra.mxu0 %v1367
      %v1378 = vpop.f32.mrf.mxu0
      %v1379 = vadd.f32 0.0, %v1378
      %v1380 = vpop.f32.mrf.mxu0
      %1381 = vdwg.mxu0
      %v1382 = vadd.f32 %v1364, %v1379
      %v1383 = vld [vmem:[%s820] sm:$0xf]
      %v1385 = vsel %vm613, %v1383, 0
      %1387 = vmatpush.bf16.msra.mxu0 0
      %1388 = vmatpush.bf16.msra.mxu0 0
      %1389 = vmatpush.bf16.msra.mxu0 0
      %1390 = vmatpush.bf16.msra.mxu0 0
      %1391 = vmatpush.bf16.msra.mxu0 0
      %1392 = vmatpush.bf16.msra.mxu0 0
      %1393 = vmatpush.bf16.msra.mxu0 0
      %1394 = vmatpush.bf16.msra.mxu0 %v994
      %1395 = vmatmul.bf16.gmra.mxu0 %v1385
      %v1396 = vpop.f32.mrf.mxu0
      %v1397 = vadd.f32 0.0, %v1396
      %v1398 = vpop.f32.mrf.mxu0
      %1399 = vdwg.mxu0
      %1400 = vrot.lane.b32.xlu0 %v1397, 127
      %v1401 = vpop.permute.xlu0 %1400
      %v1402 = vadd.f32 %v1382, %v1401
      %v1403 = vld [vmem:[%s841] sm:$0xf]
      %v1405 = vsel %vm613, %v1403, 0
      %1407 = vmatpush.bf16.msra.mxu0 0
      %1408 = vmatpush.bf16.msra.mxu0 0
      %1409 = vmatpush.bf16.msra.mxu0 0
      %1410 = vmatpush.bf16.msra.mxu0 0
      %1411 = vmatpush.bf16.msra.mxu0 0
      %1412 = vmatpush.bf16.msra.mxu0 0
      %1413 = vmatpush.bf16.msra.mxu0 0
      %1414 = vmatpush.bf16.msra.mxu0 %v994
      %1415 = vmatmul.bf16.gmra.mxu0 %v1405
      %v1416 = vpop.f32.mrf.mxu0
      %v1417 = vadd.f32 0.0, %v1416
      %v1418 = vpop.f32.mrf.mxu0
      %1419 = vdwg.mxu0
      %1420 = vrot.lane.b32.xlu0 %v1417, 126
      %v1421 = vpop.permute.xlu0 %1420
      %v1422 = vadd.f32 %v1402, %v1421
      %v1423 = vld [vmem:[%s862] sm:$0xf]
      %v1425 = vsel %vm613, %v1423, 0
      %1427 = vmatpush.bf16.msra.mxu0 0
      %1428 = vmatpush.bf16.msra.mxu0 0
      %1429 = vmatpush.bf16.msra.mxu0 0
      %1430 = vmatpush.bf16.msra.mxu0 0
      %1431 = vmatpush.bf16.msra.mxu0 0
      %1432 = vmatpush.bf16.msra.mxu0 0
      %1433 = vmatpush.bf16.msra.mxu0 0
      %1434 = vmatpush.bf16.msra.mxu0 %v994
      %1435 = vmatmul.bf16.gmra.mxu0 %v1425
      %v1436 = vpop.f32.mrf.mxu0
      %v1437 = vadd.f32 0.0, %v1436
      %v1438 = vpop.f32.mrf.mxu0
      %1439 = vdwg.mxu0
      %1440 = vrot.lane.b32.xlu0 %v1437, 120
      %v1441 = vpop.permute.xlu0 %1440
      %v1442 = vadd.f32 %v1422, %v1441
      %v1443 = vld [vmem:[%s883] sm:$0xf]
      %v1445 = vsel %vm613, %v1443, 0
      %1447 = vmatpush.bf16.msra.mxu0 0
      %1448 = vmatpush.bf16.msra.mxu0 0
      %1449 = vmatpush.bf16.msra.mxu0 0
      %1450 = vmatpush.bf16.msra.mxu0 0
      %1451 = vmatpush.bf16.msra.mxu0 0
      %1452 = vmatpush.bf16.msra.mxu0 0
      %1453 = vmatpush.bf16.msra.mxu0 0
      %1454 = vmatpush.bf16.msra.mxu0 %v994
      %1455 = vmatmul.bf16.gmra.mxu0 %v1445
      %v1456 = vpop.f32.mrf.mxu0
      %v1457 = vadd.f32 0.0, %v1456
      %v1458 = vpop.f32.mrf.mxu0
      %1459 = vdwg.mxu0
      %1460 = vrot.lane.b32.xlu0 %v1457, 119
      %v1461 = vpop.permute.xlu0 %1460
      %v1462 = vadd.f32 %v1442, %v1461
      %v1463 = vld [vmem:[%s904] sm:$0xf]
      %v1465 = vsel %vm613, %v1463, 0
      %1467 = vmatpush.bf16.msra.mxu0 0
      %1468 = vmatpush.bf16.msra.mxu0 0
      %1469 = vmatpush.bf16.msra.mxu0 0
      %1470 = vmatpush.bf16.msra.mxu0 0
      %1471 = vmatpush.bf16.msra.mxu0 0
      %1472 = vmatpush.bf16.msra.mxu0 0
      %1473 = vmatpush.bf16.msra.mxu0 0
      %1474 = vmatpush.bf16.msra.mxu0 %v994
      %1475 = vmatmul.bf16.gmra.mxu0 %v1465
      %v1476 = vpop.f32.mrf.mxu0
      %v1477 = vadd.f32 0.0, %v1476
      %v1478 = vpop.f32.mrf.mxu0
      %1479 = vdwg.mxu0
      %1480 = vrot.lane.b32.xlu0 %v1477, 118
      %v1481 = vpop.permute.xlu0 %1480
      %v1482 = vadd.f32 %v1462, %v1481
      %v1483 = vld [vmem:[%s925] sm:$0xf]
      %v1485 = vsel %vm613, %v1483, 0
      %1487 = vmatpush.bf16.msra.mxu0 0
      %1488 = vmatpush.bf16.msra.mxu0 0
      %1489 = vmatpush.bf16.msra.mxu0 0
      %1490 = vmatpush.bf16.msra.mxu0 0
      %1491 = vmatpush.bf16.msra.mxu0 0
      %1492 = vmatpush.bf16.msra.mxu0 0
      %1493 = vmatpush.bf16.msra.mxu0 0
      %1494 = vmatpush.bf16.msra.mxu0 %v994
      %1495 = vmatmul.bf16.gmra.mxu0 %v1485
      %v1496 = vpop.f32.mrf.mxu0
      %v1497 = vadd.f32 0.0, %v1496
      %v1498 = vpop.f32.mrf.mxu0
      %1499 = vdwg.mxu0
      %1500 = vrot.lane.b32.xlu0 %v1497, 112
      %v1501 = vpop.permute.xlu0 %1500
      %v1502 = vadd.f32 %v1482, %v1501
      %v1503 = vld [vmem:[%s946] sm:$0xf]
      %v1505 = vsel %vm613, %v1503, 0
      %1507 = vmatpush.bf16.msra.mxu0 0
      %1508 = vmatpush.bf16.msra.mxu0 0
      %1509 = vmatpush.bf16.msra.mxu0 0
      %1510 = vmatpush.bf16.msra.mxu0 0
      %1511 = vmatpush.bf16.msra.mxu0 0
      %1512 = vmatpush.bf16.msra.mxu0 0
      %1513 = vmatpush.bf16.msra.mxu0 0
      %1514 = vmatpush.bf16.msra.mxu0 %v994
      %1515 = vmatmul.bf16.gmra.mxu0 %v1505
      %v1516 = vpop.f32.mrf.mxu0
      %v1517 = vadd.f32 0.0, %v1516
      %v1518 = vpop.f32.mrf.mxu0
      %1519 = vdwg.mxu0
      %1520 = vrot.lane.b32.xlu0 %v1517, 111
      %v1521 = vpop.permute.xlu0 %1520
      %v1522 = vadd.f32 %v1502, %v1521
      %v1523 = vld [vmem:[%s967] sm:$0xf]
      %v1525 = vsel %vm613, %v1523, 0
      %1527 = vmatpush.bf16.msra.mxu0 0
      %1528 = vmatpush.bf16.msra.mxu0 0
      %1529 = vmatpush.bf16.msra.mxu0 0
      %1530 = vmatpush.bf16.msra.mxu0 0
      %1531 = vmatpush.bf16.msra.mxu0 0
      %1532 = vmatpush.bf16.msra.mxu0 0
      %1533 = vmatpush.bf16.msra.mxu0 0
      %1534 = vmatpush.bf16.msra.mxu0 %v994
      %1535 = vmatmul.bf16.gmra.mxu0 %v1525
      %v1536 = vpop.f32.mrf.mxu0
      %v1537 = vadd.f32 0.0, %v1536
      %v1538 = vpop.f32.mrf.mxu0
      %1539 = vdwg.mxu0
      %1540 = vrot.lane.b32.xlu0 %v1537, 110
      %v1541 = vpop.permute.xlu0 %1540
      %v1542 = vadd.f32 %v1522, %v1541
      %v1543 = vld [vmem:[%s988] sm:$0xf]
      %v1546 = vunpack.c.l.b16 %v597
      %v1547 = vunpack.c.l.b16 %v598
      %v1548 = vpack.c.b16 %v1547, %v1546
      %v1551 = vsel %vm613, %v1543, 0
      %1553 = vmatpush.bf16.msra.mxu0 0
      %1554 = vmatpush.bf16.msra.mxu0 0
      %1555 = vmatpush.bf16.msra.mxu0 0
      %1556 = vmatpush.bf16.msra.mxu0 0
      %1557 = vmatpush.bf16.msra.mxu0 0
      %1558 = vmatpush.bf16.msra.mxu0 0
      %1559 = vmatpush.bf16.msra.mxu0 0
      %1560 = vmatpush.bf16.msra.mxu0 %v1548
      %1561 = vmatmul.bf16.gmra.mxu0 %v1551
      %v1562 = vpop.f32.mrf.mxu0
      %v1563 = vadd.f32 0.0, %v1562
      %v1564 = vpop.f32.mrf.mxu0
      %1565 = vdwg.mxu0
      %v1566 = vadd.f32 %v1542, %v1563
      %v1567 = vld [vmem:[%s1013] sm:$0xf]
      %v1569 = vsel %vm613, %v1567, 0
      %1571 = vmatpush.bf16.msra.mxu0 0
      %1572 = vmatpush.bf16.msra.mxu0 0
      %1573 = vmatpush.bf16.msra.mxu0 0
      %1574 = vmatpush.bf16.msra.mxu0 0
      %1575 = vmatpush.bf16.msra.mxu0 0
      %1576 = vmatpush.bf16.msra.mxu0 0
      %1577 = vmatpush.bf16.msra.mxu0 0
      %1578 = vmatpush.bf16.msra.mxu0 %v1548
      %1579 = vmatmul.bf16.gmra.mxu0 %v1569
      %v1580 = vpop.f32.mrf.mxu0
      %v1581 = vadd.f32 0.0, %v1580
      %v1582 = vpop.f32.mrf.mxu0
      %1583 = vdwg.mxu0
      %1584 = vrot.lane.b32.xlu0 %v1581, 127
      %v1585 = vpop.permute.xlu0 %1584
      %v1586 = vadd.f32 %v1566, %v1585
      %v1587 = vld [vmem:[%s1034] sm:$0xf]
      %v1589 = vsel %vm613, %v1587, 0
      %1591 = vmatpush.bf16.msra.mxu0 0
      %1592 = vmatpush.bf16.msra.mxu0 0
      %1593 = vmatpush.bf16.msra.mxu0 0
      %1594 = vmatpush.bf16.msra.mxu0 0
      %1595 = vmatpush.bf16.msra.mxu0 0
      %1596 = vmatpush.bf16.msra.mxu0 0
      %1597 = vmatpush.bf16.msra.mxu0 0
      %1598 = vmatpush.bf16.msra.mxu0 %v1548
      %1599 = vmatmul.bf16.gmra.mxu0 %v1589
      %v1600 = vpop.f32.mrf.mxu0
      %v1601 = vadd.f32 0.0, %v1600
      %v1602 = vpop.f32.mrf.mxu0
      %1603 = vdwg.mxu0
      %1604 = vrot.lane.b32.xlu0 %v1601, 126
      %v1605 = vpop.permute.xlu0 %1604
      %v1606 = vadd.f32 %v1586, %v1605
      %v1607 = vld [vmem:[%s1055] sm:$0xf]
      %v1609 = vsel %vm613, %v1607, 0
      %1611 = vmatpush.bf16.msra.mxu0 0
      %1612 = vmatpush.bf16.msra.mxu0 0
      %1613 = vmatpush.bf16.msra.mxu0 0
      %1614 = vmatpush.bf16.msra.mxu0 0
      %1615 = vmatpush.bf16.msra.mxu0 0
      %1616 = vmatpush.bf16.msra.mxu0 0
      %1617 = vmatpush.bf16.msra.mxu0 0
      %1618 = vmatpush.bf16.msra.mxu0 %v1548
      %1619 = vmatmul.bf16.gmra.mxu0 %v1609
      %v1620 = vpop.f32.mrf.mxu0
      %v1621 = vadd.f32 0.0, %v1620
      %v1622 = vpop.f32.mrf.mxu0
      %1623 = vdwg.mxu0
      %1624 = vrot.lane.b32.xlu0 %v1621, 120
      %v1625 = vpop.permute.xlu0 %1624
      %v1626 = vadd.f32 %v1606, %v1625
      %v1627 = vld [vmem:[%s1076] sm:$0xf]
      %v1629 = vsel %vm613, %v1627, 0
      %1631 = vmatpush.bf16.msra.mxu0 0
      %1632 = vmatpush.bf16.msra.mxu0 0
      %1633 = vmatpush.bf16.msra.mxu0 0
      %1634 = vmatpush.bf16.msra.mxu0 0
      %1635 = vmatpush.bf16.msra.mxu0 0
      %1636 = vmatpush.bf16.msra.mxu0 0
      %1637 = vmatpush.bf16.msra.mxu0 0
      %1638 = vmatpush.bf16.msra.mxu0 %v1548
      %1639 = vmatmul.bf16.gmra.mxu0 %v1629
      %v1640 = vpop.f32.mrf.mxu0
      %v1641 = vadd.f32 0.0, %v1640
      %v1642 = vpop.f32.mrf.mxu0
      %1643 = vdwg.mxu0
      %1644 = vrot.lane.b32.xlu0 %v1641, 119
      %v1645 = vpop.permute.xlu0 %1644
      %v1646 = vadd.f32 %v1626, %v1645
      %v1647 = vld [vmem:[%s1097] sm:$0xf]
      %v1649 = vsel %vm613, %v1647, 0
      %1651 = vmatpush.bf16.msra.mxu0 0
      %1652 = vmatpush.bf16.msra.mxu0 0
      %1653 = vmatpush.bf16.msra.mxu0 0
      %1654 = vmatpush.bf16.msra.mxu0 0
      %1655 = vmatpush.bf16.msra.mxu0 0
      %1656 = vmatpush.bf16.msra.mxu0 0
      %1657 = vmatpush.bf16.msra.mxu0 0
      %1658 = vmatpush.bf16.msra.mxu0 %v1548
      %1659 = vmatmul.bf16.gmra.mxu0 %v1649
      %v1660 = vpop.f32.mrf.mxu0
      %v1661 = vadd.f32 0.0, %v1660
      %v1662 = vpop.f32.mrf.mxu0
      %1663 = vdwg.mxu0
      %1664 = vrot.lane.b32.xlu0 %v1661, 118
      %v1665 = vpop.permute.xlu0 %1664
      %v1666 = vadd.f32 %v1646, %v1665
      %v1667 = vld [vmem:[%s1118] sm:$0xf]
      %v1669 = vsel %vm613, %v1667, 0
      %1671 = vmatpush.bf16.msra.mxu0 0
      %1672 = vmatpush.bf16.msra.mxu0 0
      %1673 = vmatpush.bf16.msra.mxu0 0
      %1674 = vmatpush.bf16.msra.mxu0 0
      %1675 = vmatpush.bf16.msra.mxu0 0
      %1676 = vmatpush.bf16.msra.mxu0 0
      %1677 = vmatpush.bf16.msra.mxu0 0
      %1678 = vmatpush.bf16.msra.mxu0 %v1548
      %1679 = vmatmul.bf16.gmra.mxu0 %v1669
      %v1680 = vpop.f32.mrf.mxu0
      %v1681 = vadd.f32 0.0, %v1680
      %v1682 = vpop.f32.mrf.mxu0
      %1683 = vdwg.mxu0
      %1684 = vrot.lane.b32.xlu0 %v1681, 112
      %v1685 = vpop.permute.xlu0 %1684
      %v1686 = vadd.f32 %v1666, %v1685
      %v1687 = vld [vmem:[%s1139] sm:$0xf]
      %v1689 = vsel %vm613, %v1687, 0
      %1691 = vmatpush.bf16.msra.mxu0 0
      %1692 = vmatpush.bf16.msra.mxu0 0
      %1693 = vmatpush.bf16.msra.mxu0 0
      %1694 = vmatpush.bf16.msra.mxu0 0
      %1695 = vmatpush.bf16.msra.mxu0 0
      %1696 = vmatpush.bf16.msra.mxu0 0
      %1697 = vmatpush.bf16.msra.mxu0 0
      %1698 = vmatpush.bf16.msra.mxu0 %v1548
      %1699 = vmatmul.bf16.gmra.mxu0 %v1689
      %v1700 = vpop.f32.mrf.mxu0
      %v1701 = vadd.f32 0.0, %v1700
      %v1702 = vpop.f32.mrf.mxu0
      %1703 = vdwg.mxu0
      %1704 = vrot.lane.b32.xlu0 %v1701, 111
      %v1705 = vpop.permute.xlu0 %1704
      %v1706 = vadd.f32 %v1686, %v1705
      %v1707 = vld [vmem:[%s1160] sm:$0xf]
      %v1709 = vsel %vm613, %v1707, 0
      %1711 = vmatpush.bf16.msra.mxu0 0
      %1712 = vmatpush.bf16.msra.mxu0 0
      %1713 = vmatpush.bf16.msra.mxu0 0
      %1714 = vmatpush.bf16.msra.mxu0 0
      %1715 = vmatpush.bf16.msra.mxu0 0
      %1716 = vmatpush.bf16.msra.mxu0 0
      %1717 = vmatpush.bf16.msra.mxu0 0
      %1718 = vmatpush.bf16.msra.mxu0 %v1548
      %1719 = vmatmul.bf16.gmra.mxu0 %v1709
      %v1720 = vpop.f32.mrf.mxu0
      %v1721 = vadd.f32 0.0, %v1720
      %v1722 = vpop.f32.mrf.mxu0
      %1723 = vdwg.mxu0
      %1724 = vrot.lane.b32.xlu0 %v1721, 110
      %v1725 = vpop.permute.xlu0 %1724
      %v1726 = vadd.f32 %v1706, %v1725
      %v1727 = vadd.f32 %v1726, %v1184
      %v1728 = vmax.f32 %v1727, 0.0
      %s1729 = scalar_lea.vmem %s588, 8
      %1730 = vst [vmem:[%s1729] sm:$0xff] %v1728
      %v1731 = vld [vmem:[%s6] sm:$0xf]
      %v1732 = vld [vmem:[%s605] sm:$0xf]
      %v1734 = vsel %vm613, %v1732, 0
      %1736 = vmatpush.bf16.msra.mxu0 0
      %1737 = vmatpush.bf16.msra.mxu0 0
      %1738 = vmatpush.bf16.msra.mxu0 0
      %1739 = vmatpush.bf16.msra.mxu0 0
      %1740 = vmatpush.bf16.msra.mxu0 0
      %1741 = vmatpush.bf16.msra.mxu0 0
      %1742 = vmatpush.bf16.msra.mxu0 0
      %1743 = vmatpush.bf16.msra.mxu0 %v994
      %1744 = vmatmul.bf16.gmra.mxu0 %v1734
      %v1745 = vpop.f32.mrf.mxu0
      %v1746 = vadd.f32 0.0, %v1745
      %v1747 = vpop.f32.mrf.mxu0
      %1748 = vdwg.mxu0
      %1749 = vrot.lane.b32.xlu0 %v1746, 127
      %v1750 = vpop.permute.xlu0 %1749
      %v1752 = vsel %vm613, %v1731, 0
      %1754 = vmatpush.bf16.msra.mxu0 0
      %1755 = vmatpush.bf16.msra.mxu0 0
      %1756 = vmatpush.bf16.msra.mxu0 0
      %1757 = vmatpush.bf16.msra.mxu0 0
      %1758 = vmatpush.bf16.msra.mxu0 0
      %1759 = vmatpush.bf16.msra.mxu0 0
      %1760 = vmatpush.bf16.msra.mxu0 0
      %1761 = vmatpush.bf16.msra.mxu0 %v994
      %1762 = vmatmul.bf16.gmra.mxu0 %v1752
      %v1763 = vpop.f32.mrf.mxu0
      %v1764 = vadd.f32 %v1750, %v1763
      %v1765 = vpop.f32.mrf.mxu0
      %1766 = vdwg.mxu0
      %v1767 = vld [vmem:[%s648] sm:$0xf]
      %v1769 = vsel %vm613, %v1767, 0
      %1771 = vmatpush.bf16.msra.mxu0 0
      %1772 = vmatpush.bf16.msra.mxu0 0
      %1773 = vmatpush.bf16.msra.mxu0 0
      %1774 = vmatpush.bf16.msra.mxu0 0
      %1775 = vmatpush.bf16.msra.mxu0 0
      %1776 = vmatpush.bf16.msra.mxu0 0
      %1777 = vmatpush.bf16.msra.mxu0 0
      %1778 = vmatpush.bf16.msra.mxu0 %v994
      %1779 = vmatmul.bf16.gmra.mxu0 %v1769
      %v1780 = vpop.f32.mrf.mxu0
      %v1781 = vadd.f32 0.0, %v1780
      %v1782 = vpop.f32.mrf.mxu0
      %1783 = vdwg.mxu0
      %1784 = vrot.lane.b32.xlu0 %v1781, 126
      %v1785 = vpop.permute.xlu0 %1784
      %v1786 = vadd.f32 %v1764, %v1785
      %v1787 = vld [vmem:[%s669] sm:$0xf]
      %v1789 = vsel %vm613, %v1787, 0
      %1791 = vmatpush.bf16.msra.mxu0 0
      %1792 = vmatpush.bf16.msra.mxu0 0
      %1793 = vmatpush.bf16.msra.mxu0 0
      %1794 = vmatpush.bf16.msra.mxu0 0
      %1795 = vmatpush.bf16.msra.mxu0 0
      %1796 = vmatpush.bf16.msra.mxu0 0
      %1797 = vmatpush.bf16.msra.mxu0 0
      %1798 = vmatpush.bf16.msra.mxu0 %v994
      %1799 = vmatmul.bf16.gmra.mxu0 %v1789
      %v1800 = vpop.f32.mrf.mxu0
      %v1801 = vadd.f32 0.0, %v1800
      %v1802 = vpop.f32.mrf.mxu0
      %1803 = vdwg.mxu0
      %1804 = vrot.lane.b32.xlu0 %v1801, 120
      %v1805 = vpop.permute.xlu0 %1804
      %v1806 = vadd.f32 %v1786, %v1805
      %v1807 = vld [vmem:[%s690] sm:$0xf]
      %v1809 = vsel %vm613, %v1807, 0
      %1811 = vmatpush.bf16.msra.mxu0 0
      %1812 = vmatpush.bf16.msra.mxu0 0
      %1813 = vmatpush.bf16.msra.mxu0 0
      %1814 = vmatpush.bf16.msra.mxu0 0
      %1815 = vmatpush.bf16.msra.mxu0 0
      %1816 = vmatpush.bf16.msra.mxu0 0
      %1817 = vmatpush.bf16.msra.mxu0 0
      %1818 = vmatpush.bf16.msra.mxu0 %v994
      %1819 = vmatmul.bf16.gmra.mxu0 %v1809
      %v1820 = vpop.f32.mrf.mxu0
      %v1821 = vadd.f32 0.0, %v1820
      %v1822 = vpop.f32.mrf.mxu0
      %1823 = vdwg.mxu0
      %1824 = vrot.lane.b32.xlu0 %v1821, 119
      %v1825 = vpop.permute.xlu0 %1824
      %v1826 = vadd.f32 %v1806, %v1825
      %v1827 = vld [vmem:[%s711] sm:$0xf]
      %v1829 = vsel %vm613, %v1827, 0
      %1831 = vmatpush.bf16.msra.mxu0 0
      %1832 = vmatpush.bf16.msra.mxu0 0
      %1833 = vmatpush.bf16.msra.mxu0 0
      %1834 = vmatpush.bf16.msra.mxu0 0
      %1835 = vmatpush.bf16.msra.mxu0 0
      %1836 = vmatpush.bf16.msra.mxu0 0
      %1837 = vmatpush.bf16.msra.mxu0 0
      %1838 = vmatpush.bf16.msra.mxu0 %v994
      %1839 = vmatmul.bf16.gmra.mxu0 %v1829
      %v1840 = vpop.f32.mrf.mxu0
      %v1841 = vadd.f32 0.0, %v1840
      %v1842 = vpop.f32.mrf.mxu0
      %1843 = vdwg.mxu0
      %1844 = vrot.lane.b32.xlu0 %v1841, 118
      %v1845 = vpop.permute.xlu0 %1844
      %v1846 = vadd.f32 %v1826, %v1845
      %v1847 = vld [vmem:[%s732] sm:$0xf]
      %v1849 = vsel %vm613, %v1847, 0
      %1851 = vmatpush.bf16.msra.mxu0 0
      %1852 = vmatpush.bf16.msra.mxu0 0
      %1853 = vmatpush.bf16.msra.mxu0 0
      %1854 = vmatpush.bf16.msra.mxu0 0
      %1855 = vmatpush.bf16.msra.mxu0 0
      %1856 = vmatpush.bf16.msra.mxu0 0
      %1857 = vmatpush.bf16.msra.mxu0 0
      %1858 = vmatpush.bf16.msra.mxu0 %v994
      %1859 = vmatmul.bf16.gmra.mxu0 %v1849
      %v1860 = vpop.f32.mrf.mxu0
      %v1861 = vadd.f32 0.0, %v1860
      %v1862 = vpop.f32.mrf.mxu0
      %1863 = vdwg.mxu0
      %1864 = vrot.lane.b32.xlu0 %v1861, 112
      %v1865 = vpop.permute.xlu0 %1864
      %v1866 = vadd.f32 %v1846, %v1865
      %v1867 = vld [vmem:[%s753] sm:$0xf]
      %v1869 = vsel %vm613, %v1867, 0
      %1871 = vmatpush.bf16.msra.mxu0 0
      %1872 = vmatpush.bf16.msra.mxu0 0
      %1873 = vmatpush.bf16.msra.mxu0 0
      %1874 = vmatpush.bf16.msra.mxu0 0
      %1875 = vmatpush.bf16.msra.mxu0 0
      %1876 = vmatpush.bf16.msra.mxu0 0
      %1877 = vmatpush.bf16.msra.mxu0 0
      %1878 = vmatpush.bf16.msra.mxu0 %v994
      %1879 = vmatmul.bf16.gmra.mxu0 %v1869
      %v1880 = vpop.f32.mrf.mxu0
      %v1881 = vadd.f32 0.0, %v1880
      %v1882 = vpop.f32.mrf.mxu0
      %1883 = vdwg.mxu0
      %1884 = vrot.lane.b32.xlu0 %v1881, 111
      %v1885 = vpop.permute.xlu0 %1884
      %v1886 = vadd.f32 %v1866, %v1885
      %v1887 = vld [vmem:[%s774] sm:$0xf]
      %v1889 = vsel %vm613, %v1887, 0
      %1891 = vmatpush.bf16.msra.mxu0 0
      %1892 = vmatpush.bf16.msra.mxu0 0
      %1893 = vmatpush.bf16.msra.mxu0 0
      %1894 = vmatpush.bf16.msra.mxu0 0
      %1895 = vmatpush.bf16.msra.mxu0 0
      %1896 = vmatpush.bf16.msra.mxu0 0
      %1897 = vmatpush.bf16.msra.mxu0 0
      %1898 = vmatpush.bf16.msra.mxu0 %v994
      %1899 = vmatmul.bf16.gmra.mxu0 %v1889
      %v1900 = vpop.f32.mrf.mxu0
      %v1901 = vadd.f32 0.0, %v1900
      %v1902 = vpop.f32.mrf.mxu0
      %1903 = vdwg.mxu0
      %1904 = vrot.lane.b32.xlu0 %v1901, 110
      %v1905 = vpop.permute.xlu0 %1904
      %v1906 = vadd.f32 %v1886, %v1905
      %v1907 = vld [vmem:[%s795] sm:$0xf]
      %v1909 = vsel %vm613, %v1907, 0
      %1911 = vmatpush.bf16.msra.mxu0 0
      %1912 = vmatpush.bf16.msra.mxu0 0
      %1913 = vmatpush.bf16.msra.mxu0 0
      %1914 = vmatpush.bf16.msra.mxu0 0
      %1915 = vmatpush.bf16.msra.mxu0 0
      %1916 = vmatpush.bf16.msra.mxu0 0
      %1917 = vmatpush.bf16.msra.mxu0 0
      %1918 = vmatpush.bf16.msra.mxu0 %v1548
      %1919 = vmatmul.bf16.gmra.mxu0 %v1909
      %v1920 = vpop.f32.mrf.mxu0
      %v1921 = vadd.f32 0.0, %v1920
      %v1922 = vpop.f32.mrf.mxu0
      %1923 = vdwg.mxu0
      %v1924 = vadd.f32 %v1906, %v1921
      %v1925 = vld [vmem:[%s820] sm:$0xf]
      %v1927 = vsel %vm613, %v1925, 0
      %1929 = vmatpush.bf16.msra.mxu0 0
      %1930 = vmatpush.bf16.msra.mxu0 0
      %1931 = vmatpush.bf16.msra.mxu0 0
      %1932 = vmatpush.bf16.msra.mxu0 0
      %1933 = vmatpush.bf16.msra.mxu0 0
      %1934 = vmatpush.bf16.msra.mxu0 0
      %1935 = vmatpush.bf16.msra.mxu0 0
      %1936 = vmatpush.bf16.msra.mxu0 %v1548
      %1937 = vmatmul.bf16.gmra.mxu0 %v1927
      %v1938 = vpop.f32.mrf.mxu0
      %v1939 = vadd.f32 0.0, %v1938
      %v1940 = vpop.f32.mrf.mxu0
      %1941 = vdwg.mxu0
      %1942 = vrot.lane.b32.xlu0 %v1939, 127
      %v1943 = vpop.permute.xlu0 %1942
      %v1944 = vadd.f32 %v1924, %v1943
      %v1945 = vld [vmem:[%s841] sm:$0xf]
      %v1947 = vsel %vm613, %v1945, 0
      %1949 = vmatpush.bf16.msra.mxu0 0
      %1950 = vmatpush.bf16.msra.mxu0 0
      %1951 = vmatpush.bf16.msra.mxu0 0
      %1952 = vmatpush.bf16.msra.mxu0 0
      %1953 = vmatpush.bf16.msra.mxu0 0
      %1954 = vmatpush.bf16.msra.mxu0 0
      %1955 = vmatpush.bf16.msra.mxu0 0
      %1956 = vmatpush.bf16.msra.mxu0 %v1548
      %1957 = vmatmul.bf16.gmra.mxu0 %v1947
      %v1958 = vpop.f32.mrf.mxu0
      %v1959 = vadd.f32 0.0, %v1958
      %v1960 = vpop.f32.mrf.mxu0
      %1961 = vdwg.mxu0
      %1962 = vrot.lane.b32.xlu0 %v1959, 126
      %v1963 = vpop.permute.xlu0 %1962
      %v1964 = vadd.f32 %v1944, %v1963
      %v1965 = vld [vmem:[%s862] sm:$0xf]
      %v1967 = vsel %vm613, %v1965, 0
      %1969 = vmatpush.bf16.msra.mxu0 0
      %1970 = vmatpush.bf16.msra.mxu0 0
      %1971 = vmatpush.bf16.msra.mxu0 0
      %1972 = vmatpush.bf16.msra.mxu0 0
      %1973 = vmatpush.bf16.msra.mxu0 0
      %1974 = vmatpush.bf16.msra.mxu0 0
      %1975 = vmatpush.bf16.msra.mxu0 0
      %1976 = vmatpush.bf16.msra.mxu0 %v1548
      %1977 = vmatmul.bf16.gmra.mxu0 %v1967
      %v1978 = vpop.f32.mrf.mxu0
      %v1979 = vadd.f32 0.0, %v1978
      %v1980 = vpop.f32.mrf.mxu0
      %1981 = vdwg.mxu0
      %1982 = vrot.lane.b32.xlu0 %v1979, 120
      %v1983 = vpop.permute.xlu0 %1982
      %v1984 = vadd.f32 %v1964, %v1983
      %v1985 = vld [vmem:[%s883] sm:$0xf]
      %v1987 = vsel %vm613, %v1985, 0
      %1989 = vmatpush.bf16.msra.mxu0 0
      %1990 = vmatpush.bf16.msra.mxu0 0
      %1991 = vmatpush.bf16.msra.mxu0 0
      %1992 = vmatpush.bf16.msra.mxu0 0
      %1993 = vmatpush.bf16.msra.mxu0 0
      %1994 = vmatpush.bf16.msra.mxu0 0
      %1995 = vmatpush.bf16.msra.mxu0 0
      %1996 = vmatpush.bf16.msra.mxu0 %v1548
      %1997 = vmatmul.bf16.gmra.mxu0 %v1987
      %v1998 = vpop.f32.mrf.mxu0
      %v1999 = vadd.f32 0.0, %v1998
      %v2000 = vpop.f32.mrf.mxu0
      %2001 = vdwg.mxu0
      %2002 = vrot.lane.b32.xlu0 %v1999, 119
      %v2003 = vpop.permute.xlu0 %2002
      %v2004 = vadd.f32 %v1984, %v2003
      %v2005 = vld [vmem:[%s904] sm:$0xf]
      %v2007 = vsel %vm613, %v2005, 0
      %2009 = vmatpush.bf16.msra.mxu0 0
      %2010 = vmatpush.bf16.msra.mxu0 0
      %2011 = vmatpush.bf16.msra.mxu0 0
      %2012 = vmatpush.bf16.msra.mxu0 0
      %2013 = vmatpush.bf16.msra.mxu0 0
      %2014 = vmatpush.bf16.msra.mxu0 0
      %2015 = vmatpush.bf16.msra.mxu0 0
      %2016 = vmatpush.bf16.msra.mxu0 %v1548
      %2017 = vmatmul.bf16.gmra.mxu0 %v2007
      %v2018 = vpop.f32.mrf.mxu0
      %v2019 = vadd.f32 0.0, %v2018
      %v2020 = vpop.f32.mrf.mxu0
      %2021 = vdwg.mxu0
      %2022 = vrot.lane.b32.xlu0 %v2019, 118
      %v2023 = vpop.permute.xlu0 %2022
      %v2024 = vadd.f32 %v2004, %v2023
      %v2025 = vld [vmem:[%s925] sm:$0xf]
      %v2027 = vsel %vm613, %v2025, 0
      %2029 = vmatpush.bf16.msra.mxu0 0
      %2030 = vmatpush.bf16.msra.mxu0 0
      %2031 = vmatpush.bf16.msra.mxu0 0
      %2032 = vmatpush.bf16.msra.mxu0 0
      %2033 = vmatpush.bf16.msra.mxu0 0
      %2034 = vmatpush.bf16.msra.mxu0 0
      %2035 = vmatpush.bf16.msra.mxu0 0
      %2036 = vmatpush.bf16.msra.mxu0 %v1548
      %2037 = vmatmul.bf16.gmra.mxu0 %v2027
      %v2038 = vpop.f32.mrf.mxu0
      %v2039 = vadd.f32 0.0, %v2038
      %v2040 = vpop.f32.mrf.mxu0
      %2041 = vdwg.mxu0
      %2042 = vrot.lane.b32.xlu0 %v2039, 112
      %v2043 = vpop.permute.xlu0 %2042
      %v2044 = vadd.f32 %v2024, %v2043
      %v2045 = vld [vmem:[%s946] sm:$0xf]
      %v2047 = vsel %vm613, %v2045, 0
      %2049 = vmatpush.bf16.msra.mxu0 0
      %2050 = vmatpush.bf16.msra.mxu0 0
      %2051 = vmatpush.bf16.msra.mxu0 0
      %2052 = vmatpush.bf16.msra.mxu0 0
      %2053 = vmatpush.bf16.msra.mxu0 0
      %2054 = vmatpush.bf16.msra.mxu0 0
      %2055 = vmatpush.bf16.msra.mxu0 0
      %2056 = vmatpush.bf16.msra.mxu0 %v1548
      %2057 = vmatmul.bf16.gmra.mxu0 %v2047
      %v2058 = vpop.f32.mrf.mxu0
      %v2059 = vadd.f32 0.0, %v2058
      %v2060 = vpop.f32.mrf.mxu0
      %2061 = vdwg.mxu0
      %2062 = vrot.lane.b32.xlu0 %v2059, 111
      %v2063 = vpop.permute.xlu0 %2062
      %v2064 = vadd.f32 %v2044, %v2063
      %v2065 = vld [vmem:[%s967] sm:$0xf]
      %v2067 = vsel %vm613, %v2065, 0
      %2069 = vmatpush.bf16.msra.mxu0 0
      %2070 = vmatpush.bf16.msra.mxu0 0
      %2071 = vmatpush.bf16.msra.mxu0 0
      %2072 = vmatpush.bf16.msra.mxu0 0
      %2073 = vmatpush.bf16.msra.mxu0 0
      %2074 = vmatpush.bf16.msra.mxu0 0
      %2075 = vmatpush.bf16.msra.mxu0 0
      %2076 = vmatpush.bf16.msra.mxu0 %v1548
      %2077 = vmatmul.bf16.gmra.mxu0 %v2067
      %v2078 = vpop.f32.mrf.mxu0
      %v2079 = vadd.f32 0.0, %v2078
      %v2080 = vpop.f32.mrf.mxu0
      %2081 = vdwg.mxu0
      %2082 = vrot.lane.b32.xlu0 %v2079, 110
      %v2083 = vpop.permute.xlu0 %2082
      %v2084 = vadd.f32 %v2064, %v2083
      %v2085 = vld [vmem:[%s988] sm:$0xf]
      %v2088 = vunpack.c.l.b16 %v599
      %v2089 = vunpack.c.l.b16 %v600
      %v2090 = vpack.c.b16 %v2089, %v2088
      %v2093 = vsel %vm613, %v2085, 0
      %2095 = vmatpush.bf16.msra.mxu0 0
      %2096 = vmatpush.bf16.msra.mxu0 0
      %2097 = vmatpush.bf16.msra.mxu0 0
      %2098 = vmatpush.bf16.msra.mxu0 0
      %2099 = vmatpush.bf16.msra.mxu0 0
      %2100 = vmatpush.bf16.msra.mxu0 0
      %2101 = vmatpush.bf16.msra.mxu0 0
      %2102 = vmatpush.bf16.msra.mxu0 %v2090
      %2103 = vmatmul.bf16.gmra.mxu0 %v2093
      %v2104 = vpop.f32.mrf.mxu0
      %v2105 = vadd.f32 0.0, %v2104
      %v2106 = vpop.f32.mrf.mxu0
      %2107 = vdwg.mxu0
      %v2108 = vadd.f32 %v2084, %v2105
      %v2109 = vld [vmem:[%s1013] sm:$0xf]
      %v2111 = vsel %vm613, %v2109, 0
      %2113 = vmatpush.bf16.msra.mxu0 0
      %2114 = vmatpush.bf16.msra.mxu0 0
      %2115 = vmatpush.bf16.msra.mxu0 0
      %2116 = vmatpush.bf16.msra.mxu0 0
      %2117 = vmatpush.bf16.msra.mxu0 0
      %2118 = vmatpush.bf16.msra.mxu0 0
      %2119 = vmatpush.bf16.msra.mxu0 0
      %2120 = vmatpush.bf16.msra.mxu0 %v2090
      %2121 = vmatmul.bf16.gmra.mxu0 %v2111
      %v2122 = vpop.f32.mrf.mxu0
      %v2123 = vadd.f32 0.0, %v2122
      %v2124 = vpop.f32.mrf.mxu0
      %2125 = vdwg.mxu0
      %2126 = vrot.lane.b32.xlu0 %v2123, 127
      %v2127 = vpop.permute.xlu0 %2126
      %v2128 = vadd.f32 %v2108, %v2127
      %v2129 = vld [vmem:[%s1034] sm:$0xf]
      %v2131 = vsel %vm613, %v2129, 0
      %2133 = vmatpush.bf16.msra.mxu0 0
      %2134 = vmatpush.bf16.msra.mxu0 0
      %2135 = vmatpush.bf16.msra.mxu0 0
      %2136 = vmatpush.bf16.msra.mxu0 0
      %2137 = vmatpush.bf16.msra.mxu0 0
      %2138 = vmatpush.bf16.msra.mxu0 0
      %2139 = vmatpush.bf16.msra.mxu0 0
      %2140 = vmatpush.bf16.msra.mxu0 %v2090
      %2141 = vmatmul.bf16.gmra.mxu0 %v2131
      %v2142 = vpop.f32.mrf.mxu0
      %v2143 = vadd.f32 0.0, %v2142
      %v2144 = vpop.f32.mrf.mxu0
      %2145 = vdwg.mxu0
      %2146 = vrot.lane.b32.xlu0 %v2143, 126
      %v2147 = vpop.permute.xlu0 %2146
      %v2148 = vadd.f32 %v2128, %v2147
      %v2149 = vld [vmem:[%s1055] sm:$0xf]
      %v2151 = vsel %vm613, %v2149, 0
      %2153 = vmatpush.bf16.msra.mxu0 0
      %2154 = vmatpush.bf16.msra.mxu0 0
      %2155 = vmatpush.bf16.msra.mxu0 0
      %2156 = vmatpush.bf16.msra.mxu0 0
      %2157 = vmatpush.bf16.msra.mxu0 0
      %2158 = vmatpush.bf16.msra.mxu0 0
      %2159 = vmatpush.bf16.msra.mxu0 0
      %2160 = vmatpush.bf16.msra.mxu0 %v2090
      %2161 = vmatmul.bf16.gmra.mxu0 %v2151
      %v2162 = vpop.f32.mrf.mxu0
      %v2163 = vadd.f32 0.0, %v2162
      %v2164 = vpop.f32.mrf.mxu0
      %2165 = vdwg.mxu0
      %2166 = vrot.lane.b32.xlu0 %v2163, 120
      %v2167 = vpop.permute.xlu0 %2166
      %v2168 = vadd.f32 %v2148, %v2167
      %v2169 = vld [vmem:[%s1076] sm:$0xf]
      %v2171 = vsel %vm613, %v2169, 0
      %2173 = vmatpush.bf16.msra.mxu0 0
      %2174 = vmatpush.bf16.msra.mxu0 0
      %2175 = vmatpush.bf16.msra.mxu0 0
      %2176 = vmatpush.bf16.msra.mxu0 0
      %2177 = vmatpush.bf16.msra.mxu0 0
      %2178 = vmatpush.bf16.msra.mxu0 0
      %2179 = vmatpush.bf16.msra.mxu0 0
      %2180 = vmatpush.bf16.msra.mxu0 %v2090
      %2181 = vmatmul.bf16.gmra.mxu0 %v2171
      %v2182 = vpop.f32.mrf.mxu0
      %v2183 = vadd.f32 0.0, %v2182
      %v2184 = vpop.f32.mrf.mxu0
      %2185 = vdwg.mxu0
      %2186 = vrot.lane.b32.xlu0 %v2183, 119
      %v2187 = vpop.permute.xlu0 %2186
      %v2188 = vadd.f32 %v2168, %v2187
      %v2189 = vld [vmem:[%s1097] sm:$0xf]
      %v2191 = vsel %vm613, %v2189, 0
      %2193 = vmatpush.bf16.msra.mxu0 0
      %2194 = vmatpush.bf16.msra.mxu0 0
      %2195 = vmatpush.bf16.msra.mxu0 0
      %2196 = vmatpush.bf16.msra.mxu0 0
      %2197 = vmatpush.bf16.msra.mxu0 0
      %2198 = vmatpush.bf16.msra.mxu0 0
      %2199 = vmatpush.bf16.msra.mxu0 0
      %2200 = vmatpush.bf16.msra.mxu0 %v2090
      %2201 = vmatmul.bf16.gmra.mxu0 %v2191
      %v2202 = vpop.f32.mrf.mxu0
      %v2203 = vadd.f32 0.0, %v2202
      %v2204 = vpop.f32.mrf.mxu0
      %2205 = vdwg.mxu0
      %2206 = vrot.lane.b32.xlu0 %v2203, 118
      %v2207 = vpop.permute.xlu0 %2206
      %v2208 = vadd.f32 %v2188, %v2207
      %v2209 = vld [vmem:[%s1118] sm:$0xf]
      %v2211 = vsel %vm613, %v2209, 0
      %2213 = vmatpush.bf16.msra.mxu0 0
      %2214 = vmatpush.bf16.msra.mxu0 0
      %2215 = vmatpush.bf16.msra.mxu0 0
      %2216 = vmatpush.bf16.msra.mxu0 0
      %2217 = vmatpush.bf16.msra.mxu0 0
      %2218 = vmatpush.bf16.msra.mxu0 0
      %2219 = vmatpush.bf16.msra.mxu0 0
      %2220 = vmatpush.bf16.msra.mxu0 %v2090
      %2221 = vmatmul.bf16.gmra.mxu0 %v2211
      %v2222 = vpop.f32.mrf.mxu0
      %v2223 = vadd.f32 0.0, %v2222
      %v2224 = vpop.f32.mrf.mxu0
      %2225 = vdwg.mxu0
      %2226 = vrot.lane.b32.xlu0 %v2223, 112
      %v2227 = vpop.permute.xlu0 %2226
      %v2228 = vadd.f32 %v2208, %v2227
      %v2229 = vld [vmem:[%s1139] sm:$0xf]
      %v2231 = vsel %vm613, %v2229, 0
      %2233 = vmatpush.bf16.msra.mxu0 0
      %2234 = vmatpush.bf16.msra.mxu0 0
      %2235 = vmatpush.bf16.msra.mxu0 0
      %2236 = vmatpush.bf16.msra.mxu0 0
      %2237 = vmatpush.bf16.msra.mxu0 0
      %2238 = vmatpush.bf16.msra.mxu0 0
      %2239 = vmatpush.bf16.msra.mxu0 0
      %2240 = vmatpush.bf16.msra.mxu0 %v2090
      %2241 = vmatmul.bf16.gmra.mxu0 %v2231
      %v2242 = vpop.f32.mrf.mxu0
      %v2243 = vadd.f32 0.0, %v2242
      %v2244 = vpop.f32.mrf.mxu0
      %2245 = vdwg.mxu0
      %2246 = vrot.lane.b32.xlu0 %v2243, 111
      %v2247 = vpop.permute.xlu0 %2246
      %v2248 = vadd.f32 %v2228, %v2247
      %v2249 = vld [vmem:[%s1160] sm:$0xf]
      %v2251 = vsel %vm613, %v2249, 0
      %2253 = vmatpush.bf16.msra.mxu0 0
      %2254 = vmatpush.bf16.msra.mxu0 0
      %2255 = vmatpush.bf16.msra.mxu0 0
      %2256 = vmatpush.bf16.msra.mxu0 0
      %2257 = vmatpush.bf16.msra.mxu0 0
      %2258 = vmatpush.bf16.msra.mxu0 0
      %2259 = vmatpush.bf16.msra.mxu0 0
      %2260 = vmatpush.bf16.msra.mxu0 %v2090
      %2261 = vmatmul.bf16.gmra.mxu0 %v2251
      %v2262 = vpop.f32.mrf.mxu0
      %v2263 = vadd.f32 0.0, %v2262
      %v2264 = vpop.f32.mrf.mxu0
      %2265 = vdwg.mxu0
      %2266 = vrot.lane.b32.xlu0 %v2263, 110
      %v2267 = vpop.permute.xlu0 %2266
      %v2268 = vadd.f32 %v2248, %v2267
      %v2269 = vadd.f32 %v2268, %v1184
      %v2270 = vmax.f32 %v2269, 0.0
      %s2271 = scalar_lea.vmem %s588, 16
      %2272 = vst [vmem:[%s2271] sm:$0xff] %v2270
      %v2273 = vld [vmem:[%s6] sm:$0xf]
      %v2274 = vld [vmem:[%s605] sm:$0xf]
      %v2276 = vsel %vm613, %v2274, 0
      %2278 = vmatpush.bf16.msra.mxu0 0
      %2279 = vmatpush.bf16.msra.mxu0 0
      %2280 = vmatpush.bf16.msra.mxu0 0
      %2281 = vmatpush.bf16.msra.mxu0 0
      %2282 = vmatpush.bf16.msra.mxu0 0
      %2283 = vmatpush.bf16.msra.mxu0 0
      %2284 = vmatpush.bf16.msra.mxu0 0
      %2285 = vmatpush.bf16.msra.mxu0 %v1548
      %2286 = vmatmul.bf16.gmra.mxu0 %v2276
      %v2287 = vpop.f32.mrf.mxu0
      %v2288 = vadd.f32 0.0, %v2287
      %v2289 = vpop.f32.mrf.mxu0
      %2290 = vdwg.mxu0
      %2291 = vrot.lane.b32.xlu0 %v2288, 127
      %v2292 = vpop.permute.xlu0 %2291
      %v2294 = vsel %vm613, %v2273, 0
      %2296 = vmatpush.bf16.msra.mxu0 0
      %2297 = vmatpush.bf16.msra.mxu0 0
      %2298 = vmatpush.bf16.msra.mxu0 0
      %2299 = vmatpush.bf16.msra.mxu0 0
      %2300 = vmatpush.bf16.msra.mxu0 0
      %2301 = vmatpush.bf16.msra.mxu0 0
      %2302 = vmatpush.bf16.msra.mxu0 0
      %2303 = vmatpush.bf16.msra.mxu0 %v1548
      %2304 = vmatmul.bf16.gmra.mxu0 %v2294
      %v2305 = vpop.f32.mrf.mxu0
      %v2306 = vadd.f32 %v2292, %v2305
      %v2307 = vpop.f32.mrf.mxu0
      %2308 = vdwg.mxu0
      %v2309 = vld [vmem:[%s648] sm:$0xf]
      %v2311 = vsel %vm613, %v2309, 0
      %2313 = vmatpush.bf16.msra.mxu0 0
      %2314 = vmatpush.bf16.msra.mxu0 0
      %2315 = vmatpush.bf16.msra.mxu0 0
      %2316 = vmatpush.bf16.msra.mxu0 0
      %2317 = vmatpush.bf16.msra.mxu0 0
      %2318 = vmatpush.bf16.msra.mxu0 0
      %2319 = vmatpush.bf16.msra.mxu0 0
      %2320 = vmatpush.bf16.msra.mxu0 %v1548
      %2321 = vmatmul.bf16.gmra.mxu0 %v2311
      %v2322 = vpop.f32.mrf.mxu0
      %v2323 = vadd.f32 0.0, %v2322
      %v2324 = vpop.f32.mrf.mxu0
      %2325 = vdwg.mxu0
      %2326 = vrot.lane.b32.xlu0 %v2323, 126
      %v2327 = vpop.permute.xlu0 %2326
      %v2328 = vadd.f32 %v2306, %v2327
      %v2329 = vld [vmem:[%s669] sm:$0xf]
      %v2331 = vsel %vm613, %v2329, 0
      %2333 = vmatpush.bf16.msra.mxu0 0
      %2334 = vmatpush.bf16.msra.mxu0 0
      %2335 = vmatpush.bf16.msra.mxu0 0
      %2336 = vmatpush.bf16.msra.mxu0 0
      %2337 = vmatpush.bf16.msra.mxu0 0
      %2338 = vmatpush.bf16.msra.mxu0 0
      %2339 = vmatpush.bf16.msra.mxu0 0
      %2340 = vmatpush.bf16.msra.mxu0 %v1548
      %2341 = vmatmul.bf16.gmra.mxu0 %v2331
      %v2342 = vpop.f32.mrf.mxu0
      %v2343 = vadd.f32 0.0, %v2342
      %v2344 = vpop.f32.mrf.mxu0
      %2345 = vdwg.mxu0
      %2346 = vrot.lane.b32.xlu0 %v2343, 120
      %v2347 = vpop.permute.xlu0 %2346
      %v2348 = vadd.f32 %v2328, %v2347
      %v2349 = vld [vmem:[%s690] sm:$0xf]
      %v2351 = vsel %vm613, %v2349, 0
      %2353 = vmatpush.bf16.msra.mxu0 0
      %2354 = vmatpush.bf16.msra.mxu0 0
      %2355 = vmatpush.bf16.msra.mxu0 0
      %2356 = vmatpush.bf16.msra.mxu0 0
      %2357 = vmatpush.bf16.msra.mxu0 0
      %2358 = vmatpush.bf16.msra.mxu0 0
      %2359 = vmatpush.bf16.msra.mxu0 0
      %2360 = vmatpush.bf16.msra.mxu0 %v1548
      %2361 = vmatmul.bf16.gmra.mxu0 %v2351
      %v2362 = vpop.f32.mrf.mxu0
      %v2363 = vadd.f32 0.0, %v2362
      %v2364 = vpop.f32.mrf.mxu0
      %2365 = vdwg.mxu0
      %2366 = vrot.lane.b32.xlu0 %v2363, 119
      %v2367 = vpop.permute.xlu0 %2366
      %v2368 = vadd.f32 %v2348, %v2367
      %v2369 = vld [vmem:[%s711] sm:$0xf]
      %v2371 = vsel %vm613, %v2369, 0
      %2373 = vmatpush.bf16.msra.mxu0 0
      %2374 = vmatpush.bf16.msra.mxu0 0
      %2375 = vmatpush.bf16.msra.mxu0 0
      %2376 = vmatpush.bf16.msra.mxu0 0
      %2377 = vmatpush.bf16.msra.mxu0 0
      %2378 = vmatpush.bf16.msra.mxu0 0
      %2379 = vmatpush.bf16.msra.mxu0 0
      %2380 = vmatpush.bf16.msra.mxu0 %v1548
      %2381 = vmatmul.bf16.gmra.mxu0 %v2371
      %v2382 = vpop.f32.mrf.mxu0
      %v2383 = vadd.f32 0.0, %v2382
      %v2384 = vpop.f32.mrf.mxu0
      %2385 = vdwg.mxu0
      %2386 = vrot.lane.b32.xlu0 %v2383, 118
      %v2387 = vpop.permute.xlu0 %2386
      %v2388 = vadd.f32 %v2368, %v2387
      %v2389 = vld [vmem:[%s732] sm:$0xf]
      %v2391 = vsel %vm613, %v2389, 0
      %2393 = vmatpush.bf16.msra.mxu0 0
      %2394 = vmatpush.bf16.msra.mxu0 0
      %2395 = vmatpush.bf16.msra.mxu0 0
      %2396 = vmatpush.bf16.msra.mxu0 0
      %2397 = vmatpush.bf16.msra.mxu0 0
      %2398 = vmatpush.bf16.msra.mxu0 0
      %2399 = vmatpush.bf16.msra.mxu0 0
      %2400 = vmatpush.bf16.msra.mxu0 %v1548
      %2401 = vmatmul.bf16.gmra.mxu0 %v2391
      %v2402 = vpop.f32.mrf.mxu0
      %v2403 = vadd.f32 0.0, %v2402
      %v2404 = vpop.f32.mrf.mxu0
      %2405 = vdwg.mxu0
      %2406 = vrot.lane.b32.xlu0 %v2403, 112
      %v2407 = vpop.permute.xlu0 %2406
      %v2408 = vadd.f32 %v2388, %v2407
      %v2409 = vld [vmem:[%s753] sm:$0xf]
      %v2411 = vsel %vm613, %v2409, 0
      %2413 = vmatpush.bf16.msra.mxu0 0
      %2414 = vmatpush.bf16.msra.mxu0 0
      %2415 = vmatpush.bf16.msra.mxu0 0
      %2416 = vmatpush.bf16.msra.mxu0 0
      %2417 = vmatpush.bf16.msra.mxu0 0
      %2418 = vmatpush.bf16.msra.mxu0 0
      %2419 = vmatpush.bf16.msra.mxu0 0
      %2420 = vmatpush.bf16.msra.mxu0 %v1548
      %2421 = vmatmul.bf16.gmra.mxu0 %v2411
      %v2422 = vpop.f32.mrf.mxu0
      %v2423 = vadd.f32 0.0, %v2422
      %v2424 = vpop.f32.mrf.mxu0
      %2425 = vdwg.mxu0
      %2426 = vrot.lane.b32.xlu0 %v2423, 111
      %v2427 = vpop.permute.xlu0 %2426
      %v2428 = vadd.f32 %v2408, %v2427
      %v2429 = vld [vmem:[%s774] sm:$0xf]
      %v2431 = vsel %vm613, %v2429, 0
      %2433 = vmatpush.bf16.msra.mxu0 0
      %2434 = vmatpush.bf16.msra.mxu0 0
      %2435 = vmatpush.bf16.msra.mxu0 0
      %2436 = vmatpush.bf16.msra.mxu0 0
      %2437 = vmatpush.bf16.msra.mxu0 0
      %2438 = vmatpush.bf16.msra.mxu0 0
      %2439 = vmatpush.bf16.msra.mxu0 0
      %2440 = vmatpush.bf16.msra.mxu0 %v1548
      %2441 = vmatmul.bf16.gmra.mxu0 %v2431
      %v2442 = vpop.f32.mrf.mxu0
      %v2443 = vadd.f32 0.0, %v2442
      %v2444 = vpop.f32.mrf.mxu0
      %2445 = vdwg.mxu0
      %2446 = vrot.lane.b32.xlu0 %v2443, 110
      %v2447 = vpop.permute.xlu0 %2446
      %v2448 = vadd.f32 %v2428, %v2447
      %v2449 = vld [vmem:[%s795] sm:$0xf]
      %v2451 = vsel %vm613, %v2449, 0
      %2453 = vmatpush.bf16.msra.mxu0 0
      %2454 = vmatpush.bf16.msra.mxu0 0
      %2455 = vmatpush.bf16.msra.mxu0 0
      %2456 = vmatpush.bf16.msra.mxu0 0
      %2457 = vmatpush.bf16.msra.mxu0 0
      %2458 = vmatpush.bf16.msra.mxu0 0
      %2459 = vmatpush.bf16.msra.mxu0 0
      %2460 = vmatpush.bf16.msra.mxu0 %v2090
      %2461 = vmatmul.bf16.gmra.mxu0 %v2451
      %v2462 = vpop.f32.mrf.mxu0
      %v2463 = vadd.f32 0.0, %v2462
      %v2464 = vpop.f32.mrf.mxu0
      %2465 = vdwg.mxu0
      %v2466 = vadd.f32 %v2448, %v2463
      %v2467 = vld [vmem:[%s820] sm:$0xf]
      %v2469 = vsel %vm613, %v2467, 0
      %2471 = vmatpush.bf16.msra.mxu0 0
      %2472 = vmatpush.bf16.msra.mxu0 0
      %2473 = vmatpush.bf16.msra.mxu0 0
      %2474 = vmatpush.bf16.msra.mxu0 0
      %2475 = vmatpush.bf16.msra.mxu0 0
      %2476 = vmatpush.bf16.msra.mxu0 0
      %2477 = vmatpush.bf16.msra.mxu0 0
      %2478 = vmatpush.bf16.msra.mxu0 %v2090
      %2479 = vmatmul.bf16.gmra.mxu0 %v2469
      %v2480 = vpop.f32.mrf.mxu0
      %v2481 = vadd.f32 0.0, %v2480
      %v2482 = vpop.f32.mrf.mxu0
      %2483 = vdwg.mxu0
      %2484 = vrot.lane.b32.xlu0 %v2481, 127
      %v2485 = vpop.permute.xlu0 %2484
      %v2486 = vadd.f32 %v2466, %v2485
      %v2487 = vld [vmem:[%s841] sm:$0xf]
      %v2489 = vsel %vm613, %v2487, 0
      %2491 = vmatpush.bf16.msra.mxu0 0
      %2492 = vmatpush.bf16.msra.mxu0 0
      %2493 = vmatpush.bf16.msra.mxu0 0
      %2494 = vmatpush.bf16.msra.mxu0 0
      %2495 = vmatpush.bf16.msra.mxu0 0
      %2496 = vmatpush.bf16.msra.mxu0 0
      %2497 = vmatpush.bf16.msra.mxu0 0
      %2498 = vmatpush.bf16.msra.mxu0 %v2090
      %2499 = vmatmul.bf16.gmra.mxu0 %v2489
      %v2500 = vpop.f32.mrf.mxu0
      %v2501 = vadd.f32 0.0, %v2500
      %v2502 = vpop.f32.mrf.mxu0
      %2503 = vdwg.mxu0
      %2504 = vrot.lane.b32.xlu0 %v2501, 126
      %v2505 = vpop.permute.xlu0 %2504
      %v2506 = vadd.f32 %v2486, %v2505
      %v2507 = vld [vmem:[%s862] sm:$0xf]
      %v2509 = vsel %vm613, %v2507, 0
      %2511 = vmatpush.bf16.msra.mxu0 0
      %2512 = vmatpush.bf16.msra.mxu0 0
      %2513 = vmatpush.bf16.msra.mxu0 0
      %2514 = vmatpush.bf16.msra.mxu0 0
      %2515 = vmatpush.bf16.msra.mxu0 0
      %2516 = vmatpush.bf16.msra.mxu0 0
      %2517 = vmatpush.bf16.msra.mxu0 0
      %2518 = vmatpush.bf16.msra.mxu0 %v2090
      %2519 = vmatmul.bf16.gmra.mxu0 %v2509
      %v2520 = vpop.f32.mrf.mxu0
      %v2521 = vadd.f32 0.0, %v2520
      %v2522 = vpop.f32.mrf.mxu0
      %2523 = vdwg.mxu0
      %2524 = vrot.lane.b32.xlu0 %v2521, 120
      %v2525 = vpop.permute.xlu0 %2524
      %v2526 = vadd.f32 %v2506, %v2525
      %v2527 = vld [vmem:[%s883] sm:$0xf]
      %v2529 = vsel %vm613, %v2527, 0
      %2531 = vmatpush.bf16.msra.mxu0 0
      %2532 = vmatpush.bf16.msra.mxu0 0
      %2533 = vmatpush.bf16.msra.mxu0 0
      %2534 = vmatpush.bf16.msra.mxu0 0
      %2535 = vmatpush.bf16.msra.mxu0 0
      %2536 = vmatpush.bf16.msra.mxu0 0
      %2537 = vmatpush.bf16.msra.mxu0 0
      %2538 = vmatpush.bf16.msra.mxu0 %v2090
      %2539 = vmatmul.bf16.gmra.mxu0 %v2529
      %v2540 = vpop.f32.mrf.mxu0
      %v2541 = vadd.f32 0.0, %v2540
      %v2542 = vpop.f32.mrf.mxu0
      %2543 = vdwg.mxu0
      %2544 = vrot.lane.b32.xlu0 %v2541, 119
      %v2545 = vpop.permute.xlu0 %2544
      %v2546 = vadd.f32 %v2526, %v2545
      %v2547 = vld [vmem:[%s904] sm:$0xf]
      %v2549 = vsel %vm613, %v2547, 0
      %2551 = vmatpush.bf16.msra.mxu0 0
      %2552 = vmatpush.bf16.msra.mxu0 0
      %2553 = vmatpush.bf16.msra.mxu0 0
      %2554 = vmatpush.bf16.msra.mxu0 0
      %2555 = vmatpush.bf16.msra.mxu0 0
      %2556 = vmatpush.bf16.msra.mxu0 0
      %2557 = vmatpush.bf16.msra.mxu0 0
      %2558 = vmatpush.bf16.msra.mxu0 %v2090
      %2559 = vmatmul.bf16.gmra.mxu0 %v2549
      %v2560 = vpop.f32.mrf.mxu0
      %v2561 = vadd.f32 0.0, %v2560
      %v2562 = vpop.f32.mrf.mxu0
      %2563 = vdwg.mxu0
      %2564 = vrot.lane.b32.xlu0 %v2561, 118
      %v2565 = vpop.permute.xlu0 %2564
      %v2566 = vadd.f32 %v2546, %v2565
      %v2567 = vld [vmem:[%s925] sm:$0xf]
      %v2569 = vsel %vm613, %v2567, 0
      %2571 = vmatpush.bf16.msra.mxu0 0
      %2572 = vmatpush.bf16.msra.mxu0 0
      %2573 = vmatpush.bf16.msra.mxu0 0
      %2574 = vmatpush.bf16.msra.mxu0 0
      %2575 = vmatpush.bf16.msra.mxu0 0
      %2576 = vmatpush.bf16.msra.mxu0 0
      %2577 = vmatpush.bf16.msra.mxu0 0
      %2578 = vmatpush.bf16.msra.mxu0 %v2090
      %2579 = vmatmul.bf16.gmra.mxu0 %v2569
      %v2580 = vpop.f32.mrf.mxu0
      %v2581 = vadd.f32 0.0, %v2580
      %v2582 = vpop.f32.mrf.mxu0
      %2583 = vdwg.mxu0
      %2584 = vrot.lane.b32.xlu0 %v2581, 112
      %v2585 = vpop.permute.xlu0 %2584
      %v2586 = vadd.f32 %v2566, %v2585
      %v2587 = vld [vmem:[%s946] sm:$0xf]
      %v2589 = vsel %vm613, %v2587, 0
      %2591 = vmatpush.bf16.msra.mxu0 0
      %2592 = vmatpush.bf16.msra.mxu0 0
      %2593 = vmatpush.bf16.msra.mxu0 0
      %2594 = vmatpush.bf16.msra.mxu0 0
      %2595 = vmatpush.bf16.msra.mxu0 0
      %2596 = vmatpush.bf16.msra.mxu0 0
      %2597 = vmatpush.bf16.msra.mxu0 0
      %2598 = vmatpush.bf16.msra.mxu0 %v2090
      %2599 = vmatmul.bf16.gmra.mxu0 %v2589
      %v2600 = vpop.f32.mrf.mxu0
      %v2601 = vadd.f32 0.0, %v2600
      %v2602 = vpop.f32.mrf.mxu0
      %2603 = vdwg.mxu0
      %2604 = vrot.lane.b32.xlu0 %v2601, 111
      %v2605 = vpop.permute.xlu0 %2604
      %v2606 = vadd.f32 %v2586, %v2605
      %v2607 = vld [vmem:[%s967] sm:$0xf]
      %v2609 = vsel %vm613, %v2607, 0
      %2611 = vmatpush.bf16.msra.mxu0 0
      %2612 = vmatpush.bf16.msra.mxu0 0
      %2613 = vmatpush.bf16.msra.mxu0 0
      %2614 = vmatpush.bf16.msra.mxu0 0
      %2615 = vmatpush.bf16.msra.mxu0 0
      %2616 = vmatpush.bf16.msra.mxu0 0
      %2617 = vmatpush.bf16.msra.mxu0 0
      %2618 = vmatpush.bf16.msra.mxu0 %v2090
      %2619 = vmatmul.bf16.gmra.mxu0 %v2609
      %v2620 = vpop.f32.mrf.mxu0
      %v2621 = vadd.f32 0.0, %v2620
      %v2622 = vpop.f32.mrf.mxu0
      %2623 = vdwg.mxu0
      %2624 = vrot.lane.b32.xlu0 %v2621, 110
      %v2625 = vpop.permute.xlu0 %2624
      %v2626 = vadd.f32 %v2606, %v2625
      %v2627 = vld [vmem:[%s988] sm:$0xf]
      %v2630 = vunpack.c.l.b16 %v601
      %v2631 = vunpack.c.l.b16 %v602
      %v2632 = vpack.c.b16 %v2631, %v2630
      %v2635 = vsel %vm613, %v2627, 0
      %2637 = vmatpush.bf16.msra.mxu0 0
      %2638 = vmatpush.bf16.msra.mxu0 0
      %2639 = vmatpush.bf16.msra.mxu0 0
      %2640 = vmatpush.bf16.msra.mxu0 0
      %2641 = vmatpush.bf16.msra.mxu0 0
      %2642 = vmatpush.bf16.msra.mxu0 0
      %2643 = vmatpush.bf16.msra.mxu0 0
      %2644 = vmatpush.bf16.msra.mxu0 %v2632
      %2645 = vmatmul.bf16.gmra.mxu0 %v2635
      %v2646 = vpop.f32.mrf.mxu0
      %v2647 = vadd.f32 0.0, %v2646
      %v2648 = vpop.f32.mrf.mxu0
      %2649 = vdwg.mxu0
      %v2650 = vadd.f32 %v2626, %v2647
      %v2651 = vld [vmem:[%s1013] sm:$0xf]
      %v2653 = vsel %vm613, %v2651, 0
      %2655 = vmatpush.bf16.msra.mxu0 0
      %2656 = vmatpush.bf16.msra.mxu0 0
      %2657 = vmatpush.bf16.msra.mxu0 0
      %2658 = vmatpush.bf16.msra.mxu0 0
      %2659 = vmatpush.bf16.msra.mxu0 0
      %2660 = vmatpush.bf16.msra.mxu0 0
      %2661 = vmatpush.bf16.msra.mxu0 0
      %2662 = vmatpush.bf16.msra.mxu0 %v2632
      %2663 = vmatmul.bf16.gmra.mxu0 %v2653
      %v2664 = vpop.f32.mrf.mxu0
      %v2665 = vadd.f32 0.0, %v2664
      %v2666 = vpop.f32.mrf.mxu0
      %2667 = vdwg.mxu0
      %2668 = vrot.lane.b32.xlu0 %v2665, 127
      %v2669 = vpop.permute.xlu0 %2668
      %v2670 = vadd.f32 %v2650, %v2669
      %v2671 = vld [vmem:[%s1034] sm:$0xf]
      %v2673 = vsel %vm613, %v2671, 0
      %2675 = vmatpush.bf16.msra.mxu0 0
      %2676 = vmatpush.bf16.msra.mxu0 0
      %2677 = vmatpush.bf16.msra.mxu0 0
      %2678 = vmatpush.bf16.msra.mxu0 0
      %2679 = vmatpush.bf16.msra.mxu0 0
      %2680 = vmatpush.bf16.msra.mxu0 0
      %2681 = vmatpush.bf16.msra.mxu0 0
      %2682 = vmatpush.bf16.msra.mxu0 %v2632
      %2683 = vmatmul.bf16.gmra.mxu0 %v2673
      %v2684 = vpop.f32.mrf.mxu0
      %v2685 = vadd.f32 0.0, %v2684
      %v2686 = vpop.f32.mrf.mxu0
      %2687 = vdwg.mxu0
      %2688 = vrot.lane.b32.xlu0 %v2685, 126
      %v2689 = vpop.permute.xlu0 %2688
      %v2690 = vadd.f32 %v2670, %v2689
      %v2691 = vld [vmem:[%s1055] sm:$0xf]
      %v2693 = vsel %vm613, %v2691, 0
      %2695 = vmatpush.bf16.msra.mxu0 0
      %2696 = vmatpush.bf16.msra.mxu0 0
      %2697 = vmatpush.bf16.msra.mxu0 0
      %2698 = vmatpush.bf16.msra.mxu0 0
      %2699 = vmatpush.bf16.msra.mxu0 0
      %2700 = vmatpush.bf16.msra.mxu0 0
      %2701 = vmatpush.bf16.msra.mxu0 0
      %2702 = vmatpush.bf16.msra.mxu0 %v2632
      %2703 = vmatmul.bf16.gmra.mxu0 %v2693
      %v2704 = vpop.f32.mrf.mxu0
      %v2705 = vadd.f32 0.0, %v2704
      %v2706 = vpop.f32.mrf.mxu0
      %2707 = vdwg.mxu0
      %2708 = vrot.lane.b32.xlu0 %v2705, 120
      %v2709 = vpop.permute.xlu0 %2708
      %v2710 = vadd.f32 %v2690, %v2709
      %v2711 = vld [vmem:[%s1076] sm:$0xf]
      %v2713 = vsel %vm613, %v2711, 0
      %2715 = vmatpush.bf16.msra.mxu0 0
      %2716 = vmatpush.bf16.msra.mxu0 0
      %2717 = vmatpush.bf16.msra.mxu0 0
      %2718 = vmatpush.bf16.msra.mxu0 0
      %2719 = vmatpush.bf16.msra.mxu0 0
      %2720 = vmatpush.bf16.msra.mxu0 0
      %2721 = vmatpush.bf16.msra.mxu0 0
      %2722 = vmatpush.bf16.msra.mxu0 %v2632
      %2723 = vmatmul.bf16.gmra.mxu0 %v2713
      %v2724 = vpop.f32.mrf.mxu0
      %v2725 = vadd.f32 0.0, %v2724
      %v2726 = vpop.f32.mrf.mxu0
      %2727 = vdwg.mxu0
      %2728 = vrot.lane.b32.xlu0 %v2725, 119
      %v2729 = vpop.permute.xlu0 %2728
      %v2730 = vadd.f32 %v2710, %v2729
      %v2731 = vld [vmem:[%s1097] sm:$0xf]
      %v2733 = vsel %vm613, %v2731, 0
      %2735 = vmatpush.bf16.msra.mxu0 0
      %2736 = vmatpush.bf16.msra.mxu0 0
      %2737 = vmatpush.bf16.msra.mxu0 0
      %2738 = vmatpush.bf16.msra.mxu0 0
      %2739 = vmatpush.bf16.msra.mxu0 0
      %2740 = vmatpush.bf16.msra.mxu0 0
      %2741 = vmatpush.bf16.msra.mxu0 0
      %2742 = vmatpush.bf16.msra.mxu0 %v2632
      %2743 = vmatmul.bf16.gmra.mxu0 %v2733
      %v2744 = vpop.f32.mrf.mxu0
      %v2745 = vadd.f32 0.0, %v2744
      %v2746 = vpop.f32.mrf.mxu0
      %2747 = vdwg.mxu0
      %2748 = vrot.lane.b32.xlu0 %v2745, 118
      %v2749 = vpop.permute.xlu0 %2748
      %v2750 = vadd.f32 %v2730, %v2749
      %v2751 = vld [vmem:[%s1118] sm:$0xf]
      %v2753 = vsel %vm613, %v2751, 0
      %2755 = vmatpush.bf16.msra.mxu0 0
      %2756 = vmatpush.bf16.msra.mxu0 0
      %2757 = vmatpush.bf16.msra.mxu0 0
      %2758 = vmatpush.bf16.msra.mxu0 0
      %2759 = vmatpush.bf16.msra.mxu0 0
      %2760 = vmatpush.bf16.msra.mxu0 0
      %2761 = vmatpush.bf16.msra.mxu0 0
      %2762 = vmatpush.bf16.msra.mxu0 %v2632
      %2763 = vmatmul.bf16.gmra.mxu0 %v2753
      %v2764 = vpop.f32.mrf.mxu0
      %v2765 = vadd.f32 0.0, %v2764
      %v2766 = vpop.f32.mrf.mxu0
      %2767 = vdwg.mxu0
      %2768 = vrot.lane.b32.xlu0 %v2765, 112
      %v2769 = vpop.permute.xlu0 %2768
      %v2770 = vadd.f32 %v2750, %v2769
      %v2771 = vld [vmem:[%s1139] sm:$0xf]
      %v2773 = vsel %vm613, %v2771, 0
      %2775 = vmatpush.bf16.msra.mxu0 0
      %2776 = vmatpush.bf16.msra.mxu0 0
      %2777 = vmatpush.bf16.msra.mxu0 0
      %2778 = vmatpush.bf16.msra.mxu0 0
      %2779 = vmatpush.bf16.msra.mxu0 0
      %2780 = vmatpush.bf16.msra.mxu0 0
      %2781 = vmatpush.bf16.msra.mxu0 0
      %2782 = vmatpush.bf16.msra.mxu0 %v2632
      %2783 = vmatmul.bf16.gmra.mxu0 %v2773
      %v2784 = vpop.f32.mrf.mxu0
      %v2785 = vadd.f32 0.0, %v2784
      %v2786 = vpop.f32.mrf.mxu0
      %2787 = vdwg.mxu0
      %2788 = vrot.lane.b32.xlu0 %v2785, 111
      %v2789 = vpop.permute.xlu0 %2788
      %v2790 = vadd.f32 %v2770, %v2789
      %v2791 = vld [vmem:[%s1160] sm:$0xf]
      %v2793 = vsel %vm613, %v2791, 0
      %2795 = vmatpush.bf16.msra.mxu0 0
      %2796 = vmatpush.bf16.msra.mxu0 0
      %2797 = vmatpush.bf16.msra.mxu0 0
      %2798 = vmatpush.bf16.msra.mxu0 0
      %2799 = vmatpush.bf16.msra.mxu0 0
      %2800 = vmatpush.bf16.msra.mxu0 0
      %2801 = vmatpush.bf16.msra.mxu0 0
      %2802 = vmatpush.bf16.msra.mxu0 %v2632
      %2803 = vmatmul.bf16.gmra.mxu0 %v2793
      %v2804 = vpop.f32.mrf.mxu0
      %v2805 = vadd.f32 0.0, %v2804
      %v2806 = vpop.f32.mrf.mxu0
      %2807 = vdwg.mxu0
      %2808 = vrot.lane.b32.xlu0 %v2805, 110
      %v2809 = vpop.permute.xlu0 %2808
      %v2810 = vadd.f32 %v2790, %v2809
      %v2811 = vadd.f32 %v2810, %v1184
      %v2812 = vmax.f32 %v2811, 0.0
      %s2813 = scalar_lea.vmem %s588, 24
      %2814 = vst [vmem:[%s2813] sm:$0xff] %v2812
      %s2815 = smul.u32 4, %s24
      %p2816 = scmp.lt.s32.totalorder %s23, 1
      %s2817 = scalar_select %p2816, %s23, 1
      %p2818 = scmp.lt.s32.totalorder %s2815, 7
      %s2819 = scalar_select %p2818, %s2815, 7
      %s2820 = smul.addr %s2817, 8
      %s2821 = sadd.s32 %s2819, %s2820
      %s2822 = smul.addr %s2821, 8
      %s2823 = scalar_lea.vmem %s8, %s2822
      // Predicated region
      $region53: #{down_conv_forward.1} parent=51 // pred_check
        %p2824 = pneg %p283
      $region54: #{down_conv_forward.1} parent=51 // pred_check_branch
        %2826 = sbr.rel (%p2824) target = $region56
      $region55: #{down_conv_forward.1} parent=51 // pred_region
        %s2827 = smul.u32 4, %s24
      $region56: #{down_conv_forward.1} parent=51 // pred_fallthru
        _
    $region52: #{down_conv_forward.1} parent=5 // pred_fallthru
      _
    %p2828 = scmp.le.s32.totalorder 2, %s14
    // Predicated region
    $region57: #{down_conv_forward.1} parent=5 // pred_check
      %p2829 = pneg %p2828
    $region58: #{down_conv_forward.1} parent=5 // pred_check_branch
      %2831 = sbr.rel (%p2829) target = $region60
    $region59: #{down_conv_forward.1} parent=5 // pred_region
      %s2832 = ssub.s32 %s14, 2
      // Predicated region
      $region61: #{down_conv_forward.1} parent=59 // pred_check
        %p2833 = pneg %p289
      $region62: #{down_conv_forward.1} parent=59 // pred_check_branch
        %2835 = sbr.rel (%p2833) target = $region64
      $region63: #{down_conv_forward.1} parent=59 // pred_region
        %s2836 = smul.u32 4, %s26
        %p2837 = scmp.lt.s32.totalorder %s25, 1
        %s2838 = scalar_select %p2837, %s25, 1
        %p2839 = scmp.lt.s32.totalorder %s2836, 7
        %s2840 = scalar_select %p2839, %s2836, 7
        %s2841 = smul.addr %s2838, 8
        %s2842 = sadd.s32 %s2840, %s2841
        %s2843 = smul.addr %s2842, 8
        %s2844 = scalar_lea.vmem %s8, %s2843
      $region64: #{down_conv_forward.1} parent=59 // pred_fallthru
        _
    $region60: #{down_conv_forward.1} parent=5 // pred_fallthru
      _
  $region6: #{down_conv_forward.1} parent=0 // loop_footer
    %s18 = sadd.s32 1, %s14
  $region7: #{down_conv_forward.1} parent=0 // loop_footer_branch
    %13 = sbr.rel target = $region3
  $region8: #{down_conv_forward.1} parent=0 // loop_exit
    _

</llo_original>
